<compile_context>
chip_gen: v7x
topology: tpu7x:2x2x1
jax: 0.10.0
libtpu: 0.0.40
codegen_flags: <defaults>
</compile_context>

<pallas_src>
import math
from functools import partial

import numpy as np
import jax
import jax.numpy as jnp
from jax import lax
from jax.experimental import pallas as pl
from jax.experimental.pallas import tpu as pltpu

_SQRT_2_OVER_PI = math.sqrt(2.0 / math.pi)


def _round_up(x, m):
    return (x + m - 1) // m * m


# ---------------------------------------------------------------------------
# Kernel 1: matmul (bf16 operands, f32 acc) + per-column sum / sumsq side outputs
# ---------------------------------------------------------------------------
def _matmul_stats_kernel(x_ref, w_ref, y_ref, s1_ref, s2_ref):
    y = jnp.dot(x_ref[...], w_ref[...], preferred_element_type=jnp.float32)
    y_ref[...] = y
    s1_ref[0] = jnp.sum(y, axis=0, keepdims=True)
    s2_ref[0] = jnp.sum(y * y, axis=0, keepdims=True)


def matmul_stats(x, w, *, tm_max=512):
    """x (M, K) @ w (K, N) -> (y (M_pad, N) f32, col_sum (N,), col_sumsq (N,)).

    Rows are zero-padded to a multiple of the M tile; with no bias, padded rows
    contribute exactly zero to both statistics."""
    M, K = x.shape
    N = w.shape[1]
    tm = min(tm_max, _round_up(M, 8))
    grid_m = pl.cdiv(M, tm)
    m_pad = grid_m * tm
    if m_pad != M:
        x = jnp.pad(x, ((0, m_pad - M), (0, 0)))
    y, s1, s2 = pl.pallas_call(
        _matmul_stats_kernel,
        out_shape=(
            jax.ShapeDtypeStruct((m_pad, N), jnp.float32),
            jax.ShapeDtypeStruct((grid_m, 1, N), jnp.float32),
            jax.ShapeDtypeStruct((grid_m, 1, N), jnp.float32),
        ),
        grid=(grid_m,),
        in_specs=[
            pl.BlockSpec((tm, K), lambda i: (i, 0)),
            pl.BlockSpec((K, N), lambda i: (0, 0)),
        ],
        out_specs=(
            pl.BlockSpec((tm, N), lambda i: (i, 0)),
            pl.BlockSpec((1, 1, N), lambda i: (i, 0, 0)),
            pl.BlockSpec((1, 1, N), lambda i: (i, 0, 0)),
        ),
        compiler_params=pltpu.CompilerParams(
            dimension_semantics=("parallel",),
            vmem_limit_bytes=32 * 1024 * 1024,
        ),
    )(x.astype(jnp.bfloat16), w.astype(jnp.bfloat16))
    return y, jnp.sum(s1, axis=(0, 1)), jnp.sum(s2, axis=(0, 1))


# ---------------------------------------------------------------------------
# Kernel 3: BatchNorm-apply (precomputed scale/shift) + ReLU, lane-dense columns
# ---------------------------------------------------------------------------
def _scale_shift_relu_kernel(y_ref, sc_ref, sh_ref, o_ref):
    o_ref[...] = jnp.maximum(y_ref[...] * sc_ref[...] + sh_ref[...], 0.0)


def scale_shift_relu(y, scale, shift, *, tm_max=1024):
    M, N = y.shape
    tm = min(tm_max, _round_up(M, 8))
    grid_m = pl.cdiv(M, tm)
    return pl.pallas_call(
        _scale_shift_relu_kernel,
        out_shape=jax.ShapeDtypeStruct((M, N), jnp.float32),
        grid=(grid_m,),
        in_specs=[
            pl.BlockSpec((tm, N), lambda i: (i, 0)),
            pl.BlockSpec((1, N), lambda i: (0, 0)),
            pl.BlockSpec((1, N), lambda i: (0, 0)),
        ],
        out_specs=pl.BlockSpec((tm, N), lambda i: (i, 0)),
        compiler_params=pltpu.CompilerParams(dimension_semantics=("parallel",)),
    )(y, scale.reshape(1, N), shift.reshape(1, N))


def bn_scale_shift(col_sum, col_sumsq, count, gamma, beta, eps=1e-5):
    """Fold training-mode BatchNorm batch statistics into per-channel scale/shift (tiny XLA)."""
    mean = col_sum / count
    var = jnp.maximum(col_sumsq / count - mean * mean, 0.0)
    scale = gamma * lax.rsqrt(var + eps)
    shift = beta - mean * scale
    return scale, shift


# ---------------------------------------------------------------------------
# Kernel 2: fused  BN+ReLU  ->  SelfAttention block  ->  bilinear Upsample
# ---------------------------------------------------------------------------
def _self_attn_kernel(x_ref, bns_ref, bnb_ref, ln1w_ref, ln1b_ref,
                      wqkv_ref, bqkv_ref, wout_ref, bout_ref,
                      ln2w_ref, ln2b_ref, w1_ref, b1_ref, w2_ref, b2_ref,
                      interp_ref, o_ref, *, n_heads, eps):
    y = x_ref[0]                                               # (S, C) raw DownConv output
    # BatchNorm (precomputed scale/shift) + ReLU: this is the residual input `x`.
    x = jnp.maximum(y * bns_ref[...] + bnb_ref[...], 0.0)
    S, C = x.shape
    dh = C // n_heads
    qk_scale = 1.0 / math.sqrt(dh)

    def layer_norm(v, w, b):
        # nn.LayerNorm([S, C]): normalize jointly over the whole (S, C) slab.
        mu = jnp.mean(v)
        var = jnp.mean(jnp.square(v - mu))
        return (v - mu) * lax.rsqrt(var + eps) * w + b

    def mm(a, w_ref_, b_ref_):
        out = jnp.dot(a.astype(jnp.bfloat16), w_ref_[...],
                      preferred_element_type=jnp.float32)
        return out + b_ref_[...]

    # ---- multi-head self attention ----------------------------------------
    x_ln = layer_norm(x, ln1w_ref[...], ln1b_ref[...])
    qkv = mm(x_ln, wqkv_ref, bqkv_ref)                         # fused QKV projection (S, 3C)
    q, k, v = qkv[:, :C], qkv[:, C:2 * C], qkv[:, 2 * C:]

    attn = bout_ref[...]                                       # (1, C) out-proj bias
    for h in range(n_heads):                                   # static unroll over heads
        sl = slice(h * dh, (h + 1) * dh)
        qh = (q[:, sl] * qk_scale).astype(jnp.bfloat16)
        kh = k[:, sl].astype(jnp.bfloat16)
        vh = v[:, sl].astype(jnp.bfloat16)
        s = lax.dot_general(qh, kh, (((1,), (1,)), ((), ())),
                            preferred_element_type=jnp.float32)      # (S, S)
        p = jnp.exp(s - jnp.max(s, axis=-1, keepdims=True))
        p = p * pl.reciprocal(jnp.sum(p, axis=-1, keepdims=True), approx=True)
        oh = jnp.dot(p.astype(jnp.bfloat16), vh,
                     preferred_element_type=jnp.float32)             # (S, dh)
        # out-projection folded per head: concat(heads) @ W_out == sum_h head_h @ W_out[h]
        attn = attn + jnp.dot(oh.astype(jnp.bfloat16), wout_ref[sl, :],
                              preferred_element_type=jnp.float32)
    res1 = attn + x

    # ---- feed-forward block -------------------------------------------------
    h_ln = layer_norm(res1, ln2w_ref[...], ln2b_ref[...])
    h1 = mm(h_ln, w1_ref, b1_ref)
    # TODO(synk): PyTorch nn.GELU() is the exact erf form; tanh approximation used here
    #             (max abs error ~1e-3) to keep the Mosaic lowering dependency-free.
    g = 0.5 * h1 * (1.0 + jnp.tanh(_SQRT_2_OVER_PI * (h1 + 0.044715 * h1 * h1 * h1)))
    h2 = mm(g, w2_ref, b2_ref)
    res2 = h2 + res1                                           # (S, C)

    # ---- fused nn.Upsample(bilinear): token-space interpolation matrix ------
    o_ref[0] = jnp.dot(interp_ref[...], res2, preferred_element_type=jnp.float32)


def self_attention_upsample(y_raw, bn_scale, bn_shift, p):
    """y_raw: (N*S, C) raw DownConv output (pre-BN). Returns upsampled tokens (N, S2, C)."""
    C = p["h_channels"]
    interp = p["interp"]                                       # (S2, S) f32
    S2, S = interp.shape
    N = y_raw.shape[0] // S
    x = y_raw.reshape(N, S, C)
    bf16 = jnp.bfloat16

    def const(shape):
        return pl.BlockSpec(shape, lambda b: (0,) * len(shape))

    return pl.pallas_call(
        partial(_self_attn_kernel, n_heads=p["n_heads"], eps=1e-5),
        out_shape=jax.ShapeDtypeStruct((N, S2, C), jnp.float32),
        grid=(N,),
        in_specs=[
            pl.BlockSpec((1, S, C), lambda b: (b, 0, 0)),
            const((1, C)), const((1, C)),                      # BN scale / shift
            const((S, C)), const((S, C)),                      # ln1 weight / bias
            const((C, 3 * C)), const((1, 3 * C)),              # fused QKV
            const((C, C)), const((1, C)),                      # out-proj
            const((S, C)), const((S, C)),                      # ln2 weight / bias
            const((C, C)), const((1, C)),                      # ff linear 1
            const((C, C)), const((1, C)),                      # ff linear 2
            const((S2, S)),                                    # bilinear interp matrix
        ],
        out_specs=pl.BlockSpec((1, S2, C), lambda b: (b, 0, 0)),
        compiler_params=pltpu.CompilerParams(dimension_semantics=("parallel",)),
    )(x, bn_scale.reshape(1, C), bn_shift.reshape(1, C),
      p["ln1_w"], p["ln1_b"],
      p["w_qkv"].astype(bf16), p["b_qkv"],
      p["w_out"].astype(bf16), p["b_out"],
      p["ln2_w"], p["ln2_b"],
      p["w1"].astype(bf16), p["b1"],
      p["w2"].astype(bf16), p["b2"],
      interp)


# ---------------------------------------------------------------------------
# Glue: patch extraction, bilinear matrices, params, forward
# ---------------------------------------------------------------------------
def _im2col(x_nchw, r):
    """kernel==stride conv patches: NCHW -> (N*Ho*Wo, C*r*r), rows ordered (n, ho, wo)."""
    N, C, H, W = x_nchw.shape
    Ho, Wo = H // r, W // r
    patches = x_nchw.reshape(N, C, Ho, r, Wo, r).transpose(0, 2, 4, 1, 3, 5)
    return patches.reshape(N * Ho * Wo, C * r * r)


def _bilinear_matrix(in_size, out_size):
    """1-D bilinear interpolation matrix (PyTorch Upsample, align_corners=False)."""
    a = np.zeros((out_size, in_size), dtype=np.float32)
    scale = in_size / out_size
    for i in range(out_size):
        src = max(scale * (i + 0.5) - 0.5, 0.0)
        i0 = min(int(math.floor(src)), in_size - 1)
        i1 = min(i0 + 1, in_size - 1)
        lam = src - i0
        a[i, i0] += 1.0 - lam
        a[i, i1] += lam
    return a


def make_params(key, in_channels, out_channels, in_size, out_size,
                h_channels=32, divide_size_by=10, n_heads=4):
    assert in_size % divide_size_by == 0 and out_size % divide_size_by == 0
    assert h_channels % n_heads == 0
    r = divide_size_by
    s_in, s_out = in_size // r, out_size // r
    S = s_in * s_in

    def init(k, shape, scale=0.1):
        return scale * jax.random.normal(k, shape, dtype=jnp.float32)

    ks = jax.random.split(key, 10)
    p = {
        "r": r, "n_heads": n_heads, "h_channels": h_channels,
        "out_channels": out_channels, "out_size": out_size,
        # DownConv (Conv2d k=s=r, bias=False) + BatchNorm2d
        "down_w": init(ks[0], (h_channels, in_channels, r, r)),
        "down_gamma": jnp.ones((h_channels,), jnp.float32),
        "down_beta": jnp.zeros((h_channels,), jnp.float32),
        # SelfAttention: LayerNorm([S, C]) affines, fused in-proj, out-proj, feed-forward
        "ln1_w": jnp.ones((S, h_channels), jnp.float32),
        "ln1_b": jnp.zeros((S, h_channels), jnp.float32),
        "w_qkv": init(ks[1], (h_channels, 3 * h_channels)),
        "b_qkv": init(ks[2], (1, 3 * h_channels)),
        "w_out": init(ks[3], (h_channels, h_channels)),
        "b_out": init(ks[4], (1, h_channels)),
        "ln2_w": jnp.ones((S, h_channels), jnp.float32),
        "ln2_b": jnp.zeros((S, h_channels), jnp.float32),
        "w1": init(ks[5], (h_channels, h_channels)),
        "b1": init(ks[6], (1, h_channels)),
        "w2": init(ks[7], (h_channels, h_channels)),
        "b2": init(ks[8], (1, h_channels)),
        # UpConv (ConvTranspose2d k=s=r, bias=False) + BatchNorm2d
        "up_w": init(ks[9], (h_channels, out_channels, r, r)),
        "up_gamma": jnp.ones((out_channels,), jnp.float32),
        "up_beta": jnp.zeros((out_channels,), jnp.float32),
    }
    a = _bilinear_matrix(s_in, s_out)
    p["interp"] = jnp.asarray(np.kron(a, a), dtype=jnp.float32)   # (s_out^2, s_in^2)
    return p


def down_selfattn_interp_up(params, x_nchw):
    """Forward pass: DownConv -> SelfAttention -> bilinear Upsample -> UpConv."""
    r = params["r"]
    h_ch = params["h_channels"]
    out_ch = params["out_channels"]
    N, in_ch = x_nchw.shape[0], x_nchw.shape[1]
    s_in = x_nchw.shape[2] // r
    s_out = params["out_size"] // r
    S, S2 = s_in * s_in, s_out * s_out

    # ---- DownConv: conv(k=s=r, bias=False) as patch matmul + BN batch stats ----
    patches = _im2col(x_nchw, r)                                     # (N*S, in_ch*r*r)
    w_down = jnp.transpose(params["down_w"].reshape(h_ch, in_ch * r * r))
    y1, c_sum, c_ssq = matmul_stats(patches, w_down)
    m1 = N * S
    sc1, sh1 = bn_scale_shift(c_sum, c_ssq, m1,
                              params["down_gamma"], params["down_beta"])

    # ---- SelfAttention with fused BN+ReLU prologue and Upsample epilogue ----
    tok_up = self_attention_upsample(y1[:m1], sc1, sh1, params)      # (N, S2, h_ch)

    # ---- UpConv: ConvTranspose(k=s=r, bias=False) as matmul + BN + ReLU ----
    w_up = params["up_w"].reshape(h_ch, out_ch * r * r)
    y2, u_sum, u_ssq = matmul_stats(tok_up.reshape(N * S2, h_ch), w_up)
    m2 = N * S2
    ch_sum = u_sum.reshape(out_ch, r * r).sum(axis=1)                # fold r*r sub-columns
    ch_ssq = u_ssq.reshape(out_ch, r * r).sum(axis=1)
    sc2, sh2 = bn_scale_shift(ch_sum, ch_ssq, m2 * r * r,
                              params["up_gamma"], params["up_beta"])
    y2_act = scale_shift_relu(y2, jnp.repeat(sc2, r * r), jnp.repeat(sh2, r * r))
    out = y2_act[:m2].reshape(N, s_out, s_out, out_ch, r, r)
    out = out.transpose(0, 3, 1, 4, 2, 5).reshape(N, out_ch, s_out * r, s_out * r)
    return out


if __name__ == "__main__":
    # 16x16 -> DownConv(/4) -> 4x4 tokens (S=16, 32 ch, 4 heads) -> bilinear up to 6x6
    # -> UpConv(x4) -> 24x24.
    batch, in_ch, out_ch = 2, 4, 4
    in_size, out_size = 16, 24
    h_channels, divide_size_by, n_heads = 32, 4, 4

    k_params, k_x = jax.random.split(jax.random.PRNGKey(0))
    params = make_params(k_params, in_ch, out_ch, in_size, out_size,
                         h_channels=h_channels, divide_size_by=divide_size_by,
                         n_heads=n_heads)
    x = jax.random.normal(k_x, (batch, in_ch, in_size, in_size), dtype=jnp.float32)

    fwd = jax.jit(partial(down_selfattn_interp_up, params))
    out = fwd(x)
    jax.block_until_ready(out)

    assert out.shape == (batch, out_ch, out_size, out_size), out.shape
    assert bool(jnp.all(jnp.isfinite(out)))
    print("KERNEL_OK")
</pallas_src>

<mosaic_0001>
module attributes {stable_mosaic.version = 11 : i64} {
  func.func @_matmul_stats_kernel(%arg0: i32, %arg1: memref<32x64xbf16, #tpu.memory_space<vmem>>, %arg2: memref<64x32xbf16, #tpu.memory_space<vmem>>, %arg3: memref<32x32xf32, #tpu.memory_space<vmem>>, %arg4: memref<1x1x32xf32, #tpu.memory_space<vmem>>, %arg5: memref<1x1x32xf32, #tpu.memory_space<vmem>>) attributes {dimension_semantics = [#tpu.dimension_semantics<parallel>], iteration_bounds = array<i64: 1>, scalar_prefetch = 0 : i64, scratch_operands = 0 : i64, tpu.core_type = #tpu.core_type<tc>, window_params = [{transform_indices = @transform_0, window_bounds = array<i64: 32, 64>}, {pipeline_mode = #tpu.pipeline_mode<synchronous>, transform_indices = @transform_1, window_bounds = array<i64: 64, 32>}, {transform_indices = @transform_2, window_bounds = array<i64: 32, 32>}, {transform_indices = @transform_3, window_bounds = array<i64: 1, 1, 32>}, {transform_indices = @transform_4, window_bounds = array<i64: 1, 1, 32>}]} {
    %c0 = arith.constant 0 : index
    %c0_0 = arith.constant 0 : index
    %0 = vector.load %arg1[%c0, %c0_0] : memref<32x64xbf16, #tpu.memory_space<vmem>>, vector<32x64xbf16>
    %c0_1 = arith.constant 0 : index
    %c0_2 = arith.constant 0 : index
    %1 = vector.load %arg2[%c0_1, %c0_2] : memref<64x32xbf16, #tpu.memory_space<vmem>>, vector<64x32xbf16>
    %cst = arith.constant dense<0.000000e+00> : vector<32x32xf32>
    %2 = tpu.matmul %0, %1, %cst {dimension_numbers = #tpu.dot_dimension_numbers<[1], [0], [0], [1], [0, 0, 1, 1], [], []>} : vector<32x64xbf16>, vector<64x32xbf16>, vector<32x32xf32> -> vector<32x32xf32>
    %c0_3 = arith.constant 0 : index
    %c0_4 = arith.constant 0 : index
    %3 = vector.load %arg3[%c0_3, %c0_4] : memref<32x32xf32, #tpu.memory_space<vmem>>, vector<32x32xf32>
    tpu.vector_store %arg3[%c0_3, %c0_4], %2 {strides = array<i32>} : memref<32x32xf32, #tpu.memory_space<vmem>>, vector<32x32xf32>,
    %cst_5 = arith.constant dense<0.000000e+00> : vector<32xf32>
    %4 = vector.multi_reduction <add>, %2, %cst_5 [0] : vector<32x32xf32> to vector<32xf32>
    %5 = vector.shape_cast %4 : vector<32xf32> to vector<1x32xf32>
    %c0_6 = arith.constant 0 : index
    %c0_7 = arith.constant 0 : index
    %c0_8 = arith.constant 0 : index
    %6 = vector.load %arg4[%c0_6, %c0_7, %c0_8] : memref<1x1x32xf32, #tpu.memory_space<vmem>>, vector<1x1x32xf32>
    %7 = vector.shape_cast %6 : vector<1x1x32xf32> to vector<1x32xf32>
    %8 = vector.shape_cast %5 : vector<1x32xf32> to vector<1x1x32xf32>
    tpu.vector_store %arg4[%c0_6, %c0_7, %c0_8], %8 {strides = array<i32>} : memref<1x1x32xf32, #tpu.memory_space<vmem>>, vector<1x1x32xf32>,
    %9 = arith.mulf %2, %2 : vector<32x32xf32>
    %cst_9 = arith.constant dense<0.000000e+00> : vector<32xf32>
    %10 = vector.multi_reduction <add>, %9, %cst_9 [0] : vector<32x32xf32> to vector<32xf32>
    %11 = vector.shape_cast %10 : vector<32xf32> to vector<1x32xf32>
    %c0_10 = arith.constant 0 : index
    %c0_11 = arith.constant 0 : index
    %c0_12 = arith.constant 0 : index
    %12 = vector.load %arg5[%c0_10, %c0_11, %c0_12] : memref<1x1x32xf32, #tpu.memory_space<vmem>>, vector<1x1x32xf32>
    %13 = vector.shape_cast %12 : vector<1x1x32xf32> to vector<1x32xf32>
    %14 = vector.shape_cast %11 : vector<1x32xf32> to vector<1x1x32xf32>
    tpu.vector_store %arg5[%c0_10, %c0_11, %c0_12], %14 {strides = array<i32>} : memref<1x1x32xf32, #tpu.memory_space<vmem>>, vector<1x1x32xf32>,
    return
  }
  func.func @transform_0(%arg0: i32) -> (i32, i32) {
    %c0_i32 = arith.constant 0 : i32
    %c0_i32_0 = arith.constant 0 : i32
    return %arg0, %c0_i32 : i32, i32
  }
  func.func @transform_1(%arg0: i32) -> (i32, i32) {
    %c0_i32 = arith.constant 0 : i32
    %c0_i32_0 = arith.constant 0 : i32
    %c0_i32_1 = arith.constant 0 : i32
    return %c0_i32, %c0_i32_0 : i32, i32
  }
  func.func @transform_2(%arg0: i32) -> (i32, i32) {
    %c0_i32 = arith.constant 0 : i32
    %c0_i32_0 = arith.constant 0 : i32
    return %arg0, %c0_i32 : i32, i32
  }
  func.func @transform_3(%arg0: i32) -> (i32, i32, i32) {
    %c0_i32 = arith.constant 0 : i32
    %c0_i32_0 = arith.constant 0 : i32
    %c0_i32_1 = arith.constant 0 : i32
    return %arg0, %c0_i32, %c0_i32_0 : i32, i32, i32
  }
  func.func @transform_4(%arg0: i32) -> (i32, i32, i32) {
    %c0_i32 = arith.constant 0 : i32
    %c0_i32_0 = arith.constant 0 : i32
    %c0_i32_1 = arith.constant 0 : i32
    return %arg0, %c0_i32, %c0_i32_0 : i32, i32, i32
  }
}

module attributes {stable_mosaic.version = 11 : i64} {
  func.func @_self_attn_kernel(%arg0: i32, %arg1: memref<1x16x32xf32, #tpu.memory_space<vmem>>, %arg2: memref<1x32xf32, #tpu.memory_space<vmem>>, %arg3: memref<1x32xf32, #tpu.memory_space<vmem>>, %arg4: memref<16x32xf32, #tpu.memory_space<vmem>>, %arg5: memref<16x32xf32, #tpu.memory_space<vmem>>, %arg6: memref<32x96xbf16, #tpu.memory_space<vmem>>, %arg7: memref<1x96xf32, #tpu.memory_space<vmem>>, %arg8: memref<32x32xbf16, #tpu.memory_space<vmem>>, %arg9: memref<1x32xf32, #tpu.memory_space<vmem>>, %arg10: memref<16x32xf32, #tpu.memory_space<vmem>>, %arg11: memref<16x32xf32, #tpu.memory_space<vmem>>, %arg12: memref<32x32xbf16, #tpu.memory_space<vmem>>, %arg13: memref<1x32xf32, #tpu.memory_space<vmem>>, %arg14: memref<32x32xbf16, #tpu.memory_space<vmem>>, %arg15: memref<1x32xf32, #tpu.memory_space<vmem>>, %arg16: memref<36x16xf32, #tpu.memory_space<vmem>>, %arg17: memref<1x36x32xf32, #tpu.memory_space<vmem>>) attributes {dimension_semantics = [#tpu.dimension_semantics<parallel>], iteration_bounds = array<i64: 2>, scalar_prefetch = 0 : i64, scratch_operands = 0 : i64, tpu.core_type = #tpu.core_type<tc>, window_params = [{transform_indices = @transform_0, window_bounds = array<i64: 1, 16, 32>}, {pipeline_mode = #tpu.pipeline_mode<synchronous>, transform_indices = @transform_1, window_bounds = array<i64: 1, 32>}, {pipeline_mode = #tpu.pipeline_mode<synchronous>, transform_indices = @transform_2, window_bounds = array<i64: 1, 32>}, {pipeline_mode = #tpu.pipeline_mode<synchronous>, transform_indices = @transform_3, window_bounds = array<i64: 16, 32>}, {pipeline_mode = #tpu.pipeline_mode<synchronous>, transform_indices = @transform_4, window_bounds = array<i64: 16, 32>}, {pipeline_mode = #tpu.pipeline_mode<synchronous>, transform_indices = @transform_5, window_bounds = array<i64: 32, 96>}, {pipeline_mode = #tpu.pipeline_mode<synchronous>, transform_indices = @transform_6, window_bounds = array<i64: 1, 96>}, {pipeline_mode = #tpu.pipeline_mode<synchronous>, transform_indices = @transform_7, window_bounds = array<i64: 32, 32>}, {pipeline_mode = #tpu.pipeline_mode<synchronous>, transform_indices = @transform_8, window_bounds = array<i64: 1, 32>}, {pipeline_mode = #tpu.pipeline_mode<synchronous>, transform_indices = @transform_9, window_bounds = array<i64: 16, 32>}, {pipeline_mode = #tpu.pipeline_mode<synchronous>, transform_indices = @transform_10, window_bounds = array<i64: 16, 32>}, {pipeline_mode = #tpu.pipeline_mode<synchronous>, transform_indices = @transform_11, window_bounds = array<i64: 32, 32>}, {pipeline_mode = #tpu.pipeline_mode<synchronous>, transform_indices = @transform_12, window_bounds = array<i64: 1, 32>}, {pipeline_mode = #tpu.pipeline_mode<synchronous>, transform_indices = @transform_13, window_bounds = array<i64: 32, 32>}, {pipeline_mode = #tpu.pipeline_mode<synchronous>, transform_indices = @transform_14, window_bounds = array<i64: 1, 32>}, {pipeline_mode = #tpu.pipeline_mode<synchronous>, transform_indices = @transform_15, window_bounds = array<i64: 36, 16>}, {transform_indices = @transform_16, window_bounds = array<i64: 1, 36, 32>}]} {
    %c0 = arith.constant 0 : index
    %c0_0 = arith.constant 0 : index
    %c0_1 = arith.constant 0 : index
    %0 = vector.load %arg1[%c0, %c0_0, %c0_1] : memref<1x16x32xf32, #tpu.memory_space<vmem>>, vector<1x16x32xf32>
    %1 = vector.shape_cast %0 : vector<1x16x32xf32> to vector<16x32xf32>
    %c0_2 = arith.constant 0 : index
    %c0_3 = arith.constant 0 : index
    %2 = vector.load %arg2[%c0_2, %c0_3] : memref<1x32xf32, #tpu.memory_space<vmem>>, vector<1x32xf32>
    %3 = vector.broadcast %2 : vector<1x32xf32> to vector<16x32xf32>
    %4 = arith.mulf %1, %3 : vector<16x32xf32>
    %c0_4 = arith.constant 0 : index
    %c0_5 = arith.constant 0 : index
    %5 = vector.load %arg3[%c0_4, %c0_5] : memref<1x32xf32, #tpu.memory_space<vmem>>, vector<1x32xf32>
    %6 = vector.broadcast %5 : vector<1x32xf32> to vector<16x32xf32>
    %7 = arith.addf %4, %6 : vector<16x32xf32>
    %cst = arith.constant 0.000000e+00 : f32
    %8 = vector.broadcast %cst : f32 to vector<16x32xf32>
    %9 = arith.maximumf %7, %8 : vector<16x32xf32>
    %c0_6 = arith.constant 0 : index
    %c0_7 = arith.constant 0 : index
    %10 = vector.load %arg4[%c0_6, %c0_7] : memref<16x32xf32, #tpu.memory_space<vmem>>, vector<16x32xf32>
    %c0_8 = arith.constant 0 : index
    %c0_9 = arith.constant 0 : index
    %11 = vector.load %arg5[%c0_8, %c0_9] : memref<16x32xf32, #tpu.memory_space<vmem>>, vector<16x32xf32>
    %12 = vector.shape_cast %9 : vector<16x32xf32> to vector<1x16x32xf32>
    %cst_10 = arith.constant dense<0.000000e+00> : vector<1xf32>
    %13 = vector.multi_reduction <add>, %12, %cst_10 [1, 2] : vector<1x16x32xf32> to vector<1xf32>
    %14 = vector.shape_cast %13 : vector<1xf32> to vector<1x1x1xf32>
    %15 = vector.extract %14[0, 0, 0] : f32 from vector<1x1x1xf32>
    %cst_11 = arith.constant 5.120000e+02 : f32
    %16 = arith.divf %15, %cst_11 : f32
    %17 = vector.broadcast %16 : f32 to vector<16x32xf32>
    %18 = arith.subf %9, %17 : vector<16x32xf32>
    %19 = arith.mulf %18, %18 : vector<16x32xf32>
    %20 = vector.shape_cast %19 : vector<16x32xf32> to vector<1x16x32xf32>
    %cst_12 = arith.constant dense<0.000000e+00> : vector<1xf32>
    %21 = vector.multi_reduction <add>, %20, %cst_12 [1, 2] : vector<1x16x32xf32> to vector<1xf32>
    %22 = vector.shape_cast %21 : vector<1xf32> to vector<1x1x1xf32>
    %23 = vector.extract %22[0, 0, 0] : f32 from vector<1x1x1xf32>
    %cst_13 = arith.constant 5.120000e+02 : f32
    %24 = arith.divf %23, %cst_13 : f32
    %25 = vector.broadcast %16 : f32 to vector<16x32xf32>
    %26 = arith.subf %9, %25 : vector<16x32xf32>
    %cst_14 = arith.constant 9.99999974E-6 : f32
    %27 = arith.addf %24, %cst_14 : f32
    %28 = math.rsqrt %27 : f32
    %29 = vector.broadcast %28 : f32 to vector<16x32xf32>
    %30 = arith.mulf %26, %29 : vector<16x32xf32>
    %31 = arith.mulf %30, %10 : vector<16x32xf32>
    %32 = arith.addf %31, %11 : vector<16x32xf32>
    %33 = arith.truncf %32 : vector<16x32xf32> to vector<16x32xbf16>
    %c0_15 = arith.constant 0 : index
    %c0_16 = arith.constant 0 : index
    %34 = vector.load %arg6[%c0_15, %c0_16] : memref<32x96xbf16, #tpu.memory_space<vmem>>, vector<32x96xbf16>
    %cst_17 = arith.constant dense<0.000000e+00> : vector<16x96xf32>
    %35 = tpu.matmul %33, %34, %cst_17 {dimension_numbers = #tpu.dot_dimension_numbers<[1], [0], [0], [1], [0, 0, 1, 1], [], []>} : vector<16x32xbf16>, vector<32x96xbf16>, vector<16x96xf32> -> vector<16x96xf32>
    %c0_18 = arith.constant 0 : index
    %c0_19 = arith.constant 0 : index
    %36 = vector.load %arg7[%c0_18, %c0_19] : memref<1x96xf32, #tpu.memory_space<vmem>>, vector<1x96xf32>
    %37 = vector.broadcast %36 : vector<1x96xf32> to vector<16x96xf32>
    %38 = arith.addf %35, %37 : vector<16x96xf32>
    %39 = vector.extract_strided_slice %38 {offsets = [0, 0], sizes = [16, 32], strides = [1, 1]} : vector<16x96xf32> to vector<16x32xf32>
    %40 = vector.extract_strided_slice %38 {offsets = [0, 32], sizes = [16, 32], strides = [1, 1]} : vector<16x96xf32> to vector<16x32xf32>
    %41 = vector.extract_strided_slice %38 {offsets = [0, 64], sizes = [16, 32], strides = [1, 1]} : vector<16x96xf32> to vector<16x32xf32>
    %c0_20 = arith.constant 0 : index
    %c0_21 = arith.constant 0 : index
    %42 = vector.load %arg9[%c0_20, %c0_21] : memref<1x32xf32, #tpu.memory_space<vmem>>, vector<1x32xf32>
    %43 = vector.extract_strided_slice %39 {offsets = [0, 0], sizes = [16, 8], strides = [1, 1]} : vector<16x32xf32> to vector<16x8xf32>
    %cst_22 = arith.constant 0.353553385 : f32
    %44 = vector.broadcast %cst_22 : f32 to vector<16x8xf32>
    %45 = arith.mulf %43, %44 : vector<16x8xf32>
    %46 = arith.truncf %45 : vector<16x8xf32> to vector<16x8xbf16>
    %47 = vector.extract_strided_slice %40 {offsets = [0, 0], sizes = [16, 8], strides = [1, 1]} : vector<16x32xf32> to vector<16x8xf32>
    %48 = arith.truncf %47 : vector<16x8xf32> to vector<16x8xbf16>
    %49 = vector.extract_strided_slice %41 {offsets = [0, 0], sizes = [16, 8], strides = [1, 1]} : vector<16x32xf32> to vector<16x8xf32>
    %50 = arith.truncf %49 : vector<16x8xf32> to vector<16x8xbf16>
    %cst_23 = arith.constant dense<0.000000e+00> : vector<16x16xf32>
    %51 = tpu.matmul %46, %48, %cst_23 {dimension_numbers = #tpu.dot_dimension_numbers<[1], [1], [0], [0], [0, 0, 1, 0], [], []>} : vector<16x8xbf16>, vector<16x8xbf16>, vector<16x16xf32> -> vector<16x16xf32>
    %cst_24 = arith.constant dense<0xFF800000> : vector<16xf32>
    %52 = vector.multi_reduction <maximumf>, %51, %cst_24 [1] : vector<16x16xf32> to vector<16xf32>
    %53 = vector.shape_cast %52 : vector<16xf32> to vector<16x1xf32>
    %54 = vector.broadcast %53 : vector<16x1xf32> to vector<16x16xf32>
    %55 = arith.subf %51, %54 : vector<16x16xf32>
    %56 = math.exp %55 : vector<16x16xf32>
    %cst_25 = arith.constant dense<0.000000e+00> : vector<16xf32>
    %57 = vector.multi_reduction <add>, %56, %cst_25 [1] : vector<16x16xf32> to vector<16xf32>
    %58 = vector.shape_cast %57 : vector<16xf32> to vector<16x1xf32>
    %59 = tpu.reciprocal %58 {approx = true} : vector<16x1xf32> -> vector<16x1xf32>
    %60 = vector.broadcast %59 : vector<16x1xf32> to vector<16x16xf32>
    %61 = arith.mulf %56, %60 : vector<16x16xf32>
    %62 = arith.truncf %61 : vector<16x16xf32> to vector<16x16xbf16>
    %cst_26 = arith.constant dense<0.000000e+00> : vector<16x8xf32>
    %63 = tpu.matmul %62, %50, %cst_26 {dimension_numbers = #tpu.dot_dimension_numbers<[1], [0], [0], [1], [0, 0, 1, 1], [], []>} : vector<16x16xbf16>, vector<16x8xbf16>, vector<16x8xf32> -> vector<16x8xf32>
    %64 = arith.truncf %63 : vector<16x8xf32> to vector<16x8xbf16>
    %c0_27 = arith.constant 0 : index
    %c0_28 = arith.constant 0 : index
    %65 = vector.load %arg8[%c0_27, %c0_28] : memref<32x32xbf16, #tpu.memory_space<vmem>>, vector<8x32xbf16>
    %cst_29 = arith.constant dense<0.000000e+00> : vector<16x32xf32>
    %66 = tpu.matmul %64, %65, %cst_29 {dimension_numbers = #tpu.dot_dimension_numbers<[1], [0], [0], [1], [0, 0, 1, 1], [], []>} : vector<16x8xbf16>, vector<8x32xbf16>, vector<16x32xf32> -> vector<16x32xf32>
    %67 = vector.broadcast %42 : vector<1x32xf32> to vector<16x32xf32>
    %68 = arith.addf %67, %66 : vector<16x32xf32>
    %69 = vector.extract_strided_slice %39 {offsets = [0, 8], sizes = [16, 8], strides = [1, 1]} : vector<16x32xf32> to vector<16x8xf32>
    %cst_30 = arith.constant 0.353553385 : f32
    %70 = vector.broadcast %cst_30 : f32 to vector<16x8xf32>
    %71 = arith.mulf %69, %70 : vector<16x8xf32>
    %72 = arith.truncf %71 : vector<16x8xf32> to vector<16x8xbf16>
    %73 = vector.extract_strided_slice %40 {offsets = [0, 8], sizes = [16, 8], strides = [1, 1]} : vector<16x32xf32> to vector<16x8xf32>
    %74 = arith.truncf %73 : vector<16x8xf32> to vector<16x8xbf16>
    %75 = vector.extract_strided_slice %41 {offsets = [0, 8], sizes = [16, 8], strides = [1, 1]} : vector<16x32xf32> to vector<16x8xf32>
    %76 = arith.truncf %75 : vector<16x8xf32> to vector<16x8xbf16>
    %cst_31 = arith.constant dense<0.000000e+00> : vector<16x16xf32>
    %77 = tpu.matmul %72, %74, %cst_31 {dimension_numbers = #tpu.dot_dimension_numbers<[1], [1], [0], [0], [0, 0, 1, 0], [], []>} : vector<16x8xbf16>, vector<16x8xbf16>, vector<16x16xf32> -> vector<16x16xf32>
    %cst_32 = arith.constant dense<0xFF800000> : vector<16xf32>
    %78 = vector.multi_reduction <maximumf>, %77, %cst_32 [1] : vector<16x16xf32> to vector<16xf32>
    %79 = vector.shape_cast %78 : vector<16xf32> to vector<16x1xf32>
    %80 = vector.broadcast %79 : vector<16x1xf32> to vector<16x16xf32>
    %81 = arith.subf %77, %80 : vector<16x16xf32>
    %82 = math.exp %81 : vector<16x16xf32>
    %cst_33 = arith.constant dense<0.000000e+00> : vector<16xf32>
    %83 = vector.multi_reduction <add>, %82, %cst_33 [1] : vector<16x16xf32> to vector<16xf32>
    %84 = vector.shape_cast %83 : vector<16xf32> to vector<16x1xf32>
    %85 = tpu.reciprocal %84 {approx = true} : vector<16x1xf32> -> vector<16x1xf32>
    %86 = vector.broadcast %85 : vector<16x1xf32> to vector<16x16xf32>
    %87 = arith.mulf %82, %86 : vector<16x16xf32>
    %88 = arith.truncf %87 : vector<16x16xf32> to vector<16x16xbf16>
    %cst_34 = arith.constant dense<0.000000e+00> : vector<16x8xf32>
    %89 = tpu.matmul %88, %76, %cst_34 {dimension_numbers = #tpu.dot_dimension_numbers<[1], [0], [0], [1], [0, 0, 1, 1], [], []>} : vector<16x16xbf16>, vector<16x8xbf16>, vector<16x8xf32> -> vector<16x8xf32>
    %90 = arith.truncf %89 : vector<16x8xf32> to vector<16x8xbf16>
    %c8 = arith.constant 8 : index
    %c0_35 = arith.constant 0 : index
    %91 = vector.load %arg8[%c8, %c0_35] : memref<32x32xbf16, #tpu.memory_space<vmem>>, vector<8x32xbf16>
    %cst_36 = arith.constant dense<0.000000e+00> : vector<16x32xf32>
    %92 = tpu.matmul %90, %91, %cst_36 {dimension_numbers = #tpu.dot_dimension_numbers<[1], [0], [0], [1], [0, 0, 1, 1], [], []>} : vector<16x8xbf16>, vector<8x32xbf16>, vector<16x32xf32> -> vector<16x32xf32>
    %93 = arith.addf %68, %92 : vector<16x32xf32>
    %94 = vector.extract_strided_slice %39 {offsets = [0, 16], sizes = [16, 8], strides = [1, 1]} : vector<16x32xf32> to vector<16x8xf32>
    %cst_37 = arith.constant 0.353553385 : f32
    %95 = vector.broadcast %cst_37 : f32 to vector<16x8xf32>
    %96 = arith.mulf %94, %95 : vector<16x8xf32>
    %97 = arith.truncf %96 : vector<16x8xf32> to vector<16x8xbf16>
    %98 = vector.extract_strided_slice %40 {offsets = [0, 16], sizes = [16, 8], strides = [1, 1]} : vector<16x32xf32> to vector<16x8xf32>
    %99 = arith.truncf %98 : vector<16x8xf32> to vector<16x8xbf16>
    %100 = vector.extract_strided_slice %41 {offsets = [0, 16], sizes = [16, 8], strides = [1, 1]} : vector<16x32xf32> to vector<16x8xf32>
    %101 = arith.truncf %100 : vector<16x8xf32> to vector<16x8xbf16>
    %cst_38 = arith.constant dense<0.000000e+00> : vector<16x16xf32>
    %102 = tpu.matmul %97, %99, %cst_38 {dimension_numbers = #tpu.dot_dimension_numbers<[1], [1], [0], [0], [0, 0, 1, 0], [], []>} : vector<16x8xbf16>, vector<16x8xbf16>, vector<16x16xf32> -> vector<16x16xf32>
    %cst_39 = arith.constant dense<0xFF800000> : vector<16xf32>
    %103 = vector.multi_reduction <maximumf>, %102, %cst_39 [1] : vector<16x16xf32> to vector<16xf32>
    %104 = vector.shape_cast %103 : vector<16xf32> to vector<16x1xf32>
    %105 = vector.broadcast %104 : vector<16x1xf32> to vector<16x16xf32>
    %106 = arith.subf %102, %105 : vector<16x16xf32>
    %107 = math.exp %106 : vector<16x16xf32>
    %cst_40 = arith.constant dense<0.000000e+00> : vector<16xf32>
    %108 = vector.multi_reduction <add>, %107, %cst_40 [1] : vector<16x16xf32> to vector<16xf32>
    %109 = vector.shape_cast %108 : vector<16xf32> to vector<16x1xf32>
    %110 = tpu.reciprocal %109 {approx = true} : vector<16x1xf32> -> vector<16x1xf32>
    %111 = vector.broadcast %110 : vector<16x1xf32> to vector<16x16xf32>
    %112 = arith.mulf %107, %111 : vector<16x16xf32>
    %113 = arith.truncf %112 : vector<16x16xf32> to vector<16x16xbf16>
    %cst_41 = arith.constant dense<0.000000e+00> : vector<16x8xf32>
    %114 = tpu.matmul %113, %101, %cst_41 {dimension_numbers = #tpu.dot_dimension_numbers<[1], [0], [0], [1], [0, 0, 1, 1], [], []>} : vector<16x16xbf16>, vector<16x8xbf16>, vector<16x8xf32> -> vector<16x8xf32>
    %115 = arith.truncf %114 : vector<16x8xf32> to vector<16x8xbf16>
    %c16 = arith.constant 16 : index
    %c0_42 = arith.constant 0 : index
    %116 = vector.load %arg8[%c16, %c0_42] : memref<32x32xbf16, #tpu.memory_space<vmem>>, vector<8x32xbf16>
    %cst_43 = arith.constant dense<0.000000e+00> : vector<16x32xf32>
    %117 = tpu.matmul %115, %116, %cst_43 {dimension_numbers = #tpu.dot_dimension_numbers<[1], [0], [0], [1], [0, 0, 1, 1], [], []>} : vector<16x8xbf16>, vector<8x32xbf16>, vector<16x32xf32> -> vector<16x32xf32>
    %118 = arith.addf %93, %117 : vector<16x32xf32>
    %119 = vector.extract_strided_slice %39 {offsets = [0, 24], sizes = [16, 8], strides = [1, 1]} : vector<16x32xf32> to vector<16x8xf32>
    %cst_44 = arith.constant 0.353553385 : f32
    %120 = vector.broadcast %cst_44 : f32 to vector<16x8xf32>
    %121 = arith.mulf %119, %120 : vector<16x8xf32>
    %122 = arith.truncf %121 : vector<16x8xf32> to vector<16x8xbf16>
    %123 = vector.extract_strided_slice %40 {offsets = [0, 24], sizes = [16, 8], strides = [1, 1]} : vector<16x32xf32> to vector<16x8xf32>
    %124 = arith.truncf %123 : vector<16x8xf32> to vector<16x8xbf16>
    %125 = vector.extract_strided_slice %41 {offsets = [0, 24], sizes = [16, 8], strides = [1, 1]} : vector<16x32xf32> to vector<16x8xf32>
    %126 = arith.truncf %125 : vector<16x8xf32> to vector<16x8xbf16>
    %cst_45 = arith.constant dense<0.000000e+00> : vector<16x16xf32>
    %127 = tpu.matmul %122, %124, %cst_45 {dimension_numbers = #tpu.dot_dimension_numbers<[1], [1], [0], [0], [0, 0, 1, 0], [], []>} : vector<16x8xbf16>, vector<16x8xbf16>, vector<16x16xf32> -> vector<16x16xf32>
    %cst_46 = arith.constant dense<0xFF800000> : vector<16xf32>
    %128 = vector.multi_reduction <maximumf>, %127, %cst_46 [1] : vector<16x16xf32> to vector<16xf32>
    %129 = vector.shape_cast %128 : vector<16xf32> to vector<16x1xf32>
    %130 = vector.broadcast %129 : vector<16x1xf32> to vector<16x16xf32>
    %131 = arith.subf %127, %130 : vector<16x16xf32>
    %132 = math.exp %131 : vector<16x16xf32>
    %cst_47 = arith.constant dense<0.000000e+00> : vector<16xf32>
    %133 = vector.multi_reduction <add>, %132, %cst_47 [1] : vector<16x16xf32> to vector<16xf32>
    %134 = vector.shape_cast %133 : vector<16xf32> to vector<16x1xf32>
    %135 = tpu.reciprocal %134 {approx = true} : vector<16x1xf32> -> vector<16x1xf32>
    %136 = vector.broadcast %135 : vector<16x1xf32> to vector<16x16xf32>
    %137 = arith.mulf %132, %136 : vector<16x16xf32>
    %138 = arith.truncf %137 : vector<16x16xf32> to vector<16x16xbf16>
    %cst_48 = arith.constant dense<0.000000e+00> : vector<16x8xf32>
    %139 = tpu.matmul %138, %126, %cst_48 {dimension_numbers = #tpu.dot_dimension_numbers<[1], [0], [0], [1], [0, 0, 1, 1], [], []>} : vector<16x16xbf16>, vector<16x8xbf16>, vector<16x8xf32> -> vector<16x8xf32>
    %140 = arith.truncf %139 : vector<16x8xf32> to vector<16x8xbf16>
    %c24 = arith.constant 24 : index
    %c0_49 = arith.constant 0 : index
    %141 = vector.load %arg8[%c24, %c0_49] : memref<32x32xbf16, #tpu.memory_space<vmem>>, vector<8x32xbf16>
    %cst_50 = arith.constant dense<0.000000e+00> : vector<16x32xf32>
    %142 = tpu.matmul %140, %141, %cst_50 {dimension_numbers = #tpu.dot_dimension_numbers<[1], [0], [0], [1], [0, 0, 1, 1], [], []>} : vector<16x8xbf16>, vector<8x32xbf16>, vector<16x32xf32> -> vector<16x32xf32>
    %143 = arith.addf %118, %142 : vector<16x32xf32>
    %144 = arith.addf %143, %9 : vector<16x32xf32>
    %c0_51 = arith.constant 0 : index
    %c0_52 = arith.constant 0 : index
    %145 = vector.load %arg10[%c0_51, %c0_52] : memref<16x32xf32, #tpu.memory_space<vmem>>, vector<16x32xf32>
    %c0_53 = arith.constant 0 : index
    %c0_54 = arith.constant 0 : index
    %146 = vector.load %arg11[%c0_53, %c0_54] : memref<16x32xf32, #tpu.memory_space<vmem>>, vector<16x32xf32>
    %147 = vector.shape_cast %144 : vector<16x32xf32> to vector<1x16x32xf32>
    %cst_55 = arith.constant dense<0.000000e+00> : vector<1xf32>
    %148 = vector.multi_reduction <add>, %147, %cst_55 [1, 2] : vector<1x16x32xf32> to vector<1xf32>
    %149 = vector.shape_cast %148 : vector<1xf32> to vector<1x1x1xf32>
    %150 = vector.extract %149[0, 0, 0] : f32 from vector<1x1x1xf32>
    %cst_56 = arith.constant 5.120000e+02 : f32
    %151 = arith.divf %150, %cst_56 : f32
    %152 = vector.broadcast %151 : f32 to vector<16x32xf32>
    %153 = arith.subf %144, %152 : vector<16x32xf32>
    %154 = arith.mulf %153, %153 : vector<16x32xf32>
    %155 = vector.shape_cast %154 : vector<16x32xf32> to vector<1x16x32xf32>
    %cst_57 = arith.constant dense<0.000000e+00> : vector<1xf32>
    %156 = vector.multi_reduction <add>, %155, %cst_57 [1, 2] : vector<1x16x32xf32> to vector<1xf32>
    %157 = vector.shape_cast %156 : vector<1xf32> to vector<1x1x1xf32>
    %158 = vector.extract %157[0, 0, 0] : f32 from vector<1x1x1xf32>
    %cst_58 = arith.constant 5.120000e+02 : f32
    %159 = arith.divf %158, %cst_58 : f32
    %160 = vector.broadcast %151 : f32 to vector<16x32xf32>
    %161 = arith.subf %144, %160 : vector<16x32xf32>
    %cst_59 = arith.constant 9.99999974E-6 : f32
    %162 = arith.addf %159, %cst_59 : f32
    %163 = math.rsqrt %162 : f32
    %164 = vector.broadcast %163 : f32 to vector<16x32xf32>
    %165 = arith.mulf %161, %164 : vector<16x32xf32>
    %166 = arith.mulf %165, %145 : vector<16x32xf32>
    %167 = arith.addf %166, %146 : vector<16x32xf32>
    %168 = arith.truncf %167 : vector<16x32xf32> to vector<16x32xbf16>
    %c0_60 = arith.constant 0 : index
    %c0_61 = arith.constant 0 : index
    %169 = vector.load %arg12[%c0_60, %c0_61] : memref<32x32xbf16, #tpu.memory_space<vmem>>, vector<32x32xbf16>
    %cst_62 = arith.constant dense<0.000000e+00> : vector<16x32xf32>
    %170 = tpu.matmul %168, %169, %cst_62 {dimension_numbers = #tpu.dot_dimension_numbers<[1], [0], [0], [1], [0, 0, 1, 1], [], []>} : vector<16x32xbf16>, vector<32x32xbf16>, vector<16x32xf32> -> vector<16x32xf32>
    %c0_63 = arith.constant 0 : index
    %c0_64 = arith.constant 0 : index
    %171 = vector.load %arg13[%c0_63, %c0_64] : memref<1x32xf32, #tpu.memory_space<vmem>>, vector<1x32xf32>
    %172 = vector.broadcast %171 : vector<1x32xf32> to vector<16x32xf32>
    %173 = arith.addf %170, %172 : vector<16x32xf32>
    %cst_65 = arith.constant 5.000000e-01 : f32
    %174 = vector.broadcast %cst_65 : f32 to vector<16x32xf32>
    %175 = arith.mulf %174, %173 : vector<16x32xf32>
    %cst_66 = arith.constant 4.471500e-02 : f32
    %176 = vector.broadcast %cst_66 : f32 to vector<16x32xf32>
    %177 = arith.mulf %176, %173 : vector<16x32xf32>
    %178 = arith.mulf %177, %173 : vector<16x32xf32>
    %179 = arith.mulf %178, %173 : vector<16x32xf32>
    %180 = arith.addf %173, %179 : vector<16x32xf32>
    %cst_67 = arith.constant 0.797884583 : f32
    %181 = vector.broadcast %cst_67 : f32 to vector<16x32xf32>
    %182 = arith.mulf %181, %180 : vector<16x32xf32>
    %183 = math.tanh %182 : vector<16x32xf32>
    %cst_68 = arith.constant 1.000000e+00 : f32
    %184 = vector.broadcast %cst_68 : f32 to vector<16x32xf32>
    %185 = arith.addf %184, %183 : vector<16x32xf32>
    %186 = arith.mulf %175, %185 : vector<16x32xf32>
    %187 = arith.truncf %186 : vector<16x32xf32> to vector<16x32xbf16>
    %c0_69 = arith.constant 0 : index
    %c0_70 = arith.constant 0 : index
    %188 = vector.load %arg14[%c0_69, %c0_70] : memref<32x32xbf16, #tpu.memory_space<vmem>>, vector<32x32xbf16>
    %cst_71 = arith.constant dense<0.000000e+00> : vector<16x32xf32>
    %189 = tpu.matmul %187, %188, %cst_71 {dimension_numbers = #tpu.dot_dimension_numbers<[1], [0], [0], [1], [0, 0, 1, 1], [], []>} : vector<16x32xbf16>, vector<32x32xbf16>, vector<16x32xf32> -> vector<16x32xf32>
    %c0_72 = arith.constant 0 : index
    %c0_73 = arith.constant 0 : index
    %190 = vector.load %arg15[%c0_72, %c0_73] : memref<1x32xf32, #tpu.memory_space<vmem>>, vector<1x32xf32>
    %191 = vector.broadcast %190 : vector<1x32xf32> to vector<16x32xf32>
    %192 = arith.addf %189, %191 : vector<16x32xf32>
    %193 = arith.addf %192, %144 : vector<16x32xf32>
    %c0_74 = arith.constant 0 : index
    %c0_75 = arith.constant 0 : index
    %194 = vector.load %arg16[%c0_74, %c0_75] : memref<36x16xf32, #tpu.memory_space<vmem>>, vector<36x16xf32>
    %cst_76 = arith.constant dense<0.000000e+00> : vector<36x32xf32>
    %195 = tpu.matmul %194, %193, %cst_76 {dimension_numbers = #tpu.dot_dimension_numbers<[1], [0], [0], [1], [0, 0, 1, 1], [], []>} : vector<36x16xf32>, vector<16x32xf32>, vector<36x32xf32> -> vector<36x32xf32>
    %c0_77 = arith.constant 0 : index
    %c0_78 = arith.constant 0 : index
    %c0_79 = arith.constant 0 : index
    %196 = vector.load %arg17[%c0_77, %c0_78, %c0_79] : memref<1x36x32xf32, #tpu.memory_space<vmem>>, vector<1x36x32xf32>
    %197 = vector.shape_cast %196 : vector<1x36x32xf32> to vector<36x32xf32>
    %198 = vector.shape_cast %195 : vector<36x32xf32> to vector<1x36x32xf32>
    tpu.vector_store %arg17[%c0_77, %c0_78, %c0_79], %198 {strides = array<i32>} : memref<1x36x32xf32, #tpu.memory_space<vmem>>, vector<1x36x32xf32>,
    return
  }
  func.func @transform_0(%arg0: i32) -> (i32, i32, i32) {
    %c0_i32 = arith.constant 0 : i32
    %c0_i32_0 = arith.constant 0 : i32
    %c0_i32_1 = arith.constant 0 : i32
    return %arg0, %c0_i32, %c0_i32_0 : i32, i32, i32
  }
  func.func @transform_1(%arg0: i32) -> (i32, i32) {
    %c0_i32 = arith.constant 0 : i32
    %c0_i32_0 = arith.constant 0 : i32
    %c0_i32_1 = arith.constant 0 : i32
    return %c0_i32, %c0_i32_0 : i32, i32
  }
  func.func @transform_2(%arg0: i32) -> (i32, i32) {
    %c0_i32 = arith.constant 0 : i32
    %c0_i32_0 = arith.constant 0 : i32
    %c0_i32_1 = arith.constant 0 : i32
    return %c0_i32, %c0_i32_0 : i32, i32
  }
  func.func @transform_3(%arg0: i32) -> (i32, i32) {
    %c0_i32 = arith.constant 0 : i32
    %c0_i32_0 = arith.constant 0 : i32
    %c0_i32_1 = arith.constant 0 : i32
    return %c0_i32, %c0_i32_0 : i32, i32
  }
  func.func @transform_4(%arg0: i32) -> (i32, i32) {
    %c0_i32 = arith.constant 0 : i32
    %c0_i32_0 = arith.constant 0 : i32
    %c0_i32_1 = arith.constant 0 : i32
    return %c0_i32, %c0_i32_0 : i32, i32
  }
  func.func @transform_5(%arg0: i32) -> (i32, i32) {
    %c0_i32 = arith.constant 0 : i32
    %c0_i32_0 = arith.constant 0 : i32
    %c0_i32_1 = arith.constant 0 : i32
    return %c0_i32, %c0_i32_0 : i32, i32
  }
  func.func @transform_6(%arg0: i32) -> (i32, i32) {
    %c0_i32 = arith.constant 0 : i32
    %c0_i32_0 = arith.constant 0 : i32
    %c0_i32_1 = arith.constant 0 : i32
    return %c0_i32, %c0_i32_0 : i32, i32
  }
  func.func @transform_7(%arg0: i32) -> (i32, i32) {
    %c0_i32 = arith.constant 0 : i32
    %c0_i32_0 = arith.constant 0 : i32
    %c0_i32_1 = arith.constant 0 : i32
    return %c0_i32, %c0_i32_0 : i32, i32
  }
  func.func @transform_8(%arg0: i32) -> (i32, i32) {
    %c0_i32 = arith.constant 0 : i32
    %c0_i32_0 = arith.constant 0 : i32
    %c0_i32_1 = arith.constant 0 : i32
    return %c0_i32, %c0_i32_0 : i32, i32
  }
  func.func @transform_9(%arg0: i32) -> (i32, i32) {
    %c0_i32 = arith.constant 0 : i32
    %c0_i32_0 = arith.constant 0 : i32
    %c0_i32_1 = arith.constant 0 : i32
    return %c0_i32, %c0_i32_0 : i32, i32
  }
  func.func @transform_10(%arg0: i32) -> (i32, i32) {
    %c0_i32 = arith.constant 0 : i32
    %c0_i32_0 = arith.constant 0 : i32
    %c0_i32_1 = arith.constant 0 : i32
    return %c0_i32, %c0_i32_0 : i32, i32
  }
  func.func @transform_11(%arg0: i32) -> (i32, i32) {
    %c0_i32 = arith.constant 0 : i32
    %c0_i32_0 = arith.constant 0 : i32
    %c0_i32_1 = arith.constant 0 : i32
    return %c0_i32, %c0_i32_0 : i32, i32
  }
  func.func @transform_12(%arg0: i32) -> (i32, i32) {
    %c0_i32 = arith.constant 0 : i32
    %c0_i32_0 = arith.constant 0 : i32
    %c0_i32_1 = arith.constant 0 : i32
    return %c0_i32, %c0_i32_0 : i32, i32
  }
  func.func @transform_13(%arg0: i32) -> (i32, i32) {
    %c0_i32 = arith.constant 0 : i32
    %c0_i32_0 = arith.constant 0 : i32
    %c0_i32_1 = arith.constant 0 : i32
    return %c0_i32, %c0_i32_0 : i32, i32
  }
  func.func @transform_14(%arg0: i32) -> (i32, i32) {
    %c0_i32 = arith.constant 0 : i32
    %c0_i32_0 = arith.constant 0 : i32
    %c0_i32_1 = arith.constant 0 : i32
    return %c0_i32, %c0_i32_0 : i32, i32
  }
  func.func @transform_15(%arg0: i32) -> (i32, i32) {
    %c0_i32 = arith.constant 0 : i32
    %c0_i32_0 = arith.constant 0 : i32
    %c0_i32_1 = arith.constant 0 : i32
    return %c0_i32, %c0_i32_0 : i32, i32
  }
  func.func @transform_16(%arg0: i32) -> (i32, i32, i32) {
    %c0_i32 = arith.constant 0 : i32
    %c0_i32_0 = arith.constant 0 : i32
    %c0_i32_1 = arith.constant 0 : i32
    return %arg0, %c0_i32, %c0_i32_0 : i32, i32, i32
  }
}

module attributes {stable_mosaic.version = 11 : i64} {
  func.func @_matmul_stats_kernel(%arg0: i32, %arg1: memref<72x32xbf16, #tpu.memory_space<vmem>>, %arg2: memref<32x64xbf16, #tpu.memory_space<vmem>>, %arg3: memref<72x64xf32, #tpu.memory_space<vmem>>, %arg4: memref<1x1x64xf32, #tpu.memory_space<vmem>>, %arg5: memref<1x1x64xf32, #tpu.memory_space<vmem>>) attributes {dimension_semantics = [#tpu.dimension_semantics<parallel>], iteration_bounds = array<i64: 1>, scalar_prefetch = 0 : i64, scratch_operands = 0 : i64, tpu.core_type = #tpu.core_type<tc>, window_params = [{transform_indices = @transform_0, window_bounds = array<i64: 72, 32>}, {pipeline_mode = #tpu.pipeline_mode<synchronous>, transform_indices = @transform_1, window_bounds = array<i64: 32, 64>}, {transform_indices = @transform_2, window_bounds = array<i64: 72, 64>}, {transform_indices = @transform_3, window_bounds = array<i64: 1, 1, 64>}, {transform_indices = @transform_4, window_bounds = array<i64: 1, 1, 64>}]} {
    %c0 = arith.constant 0 : index
    %c0_0 = arith.constant 0 : index
    %0 = vector.load %arg1[%c0, %c0_0] : memref<72x32xbf16, #tpu.memory_space<vmem>>, vector<72x32xbf16>
    %c0_1 = arith.constant 0 : index
    %c0_2 = arith.constant 0 : index
    %1 = vector.load %arg2[%c0_1, %c0_2] : memref<32x64xbf16, #tpu.memory_space<vmem>>, vector<32x64xbf16>
    %cst = arith.constant dense<0.000000e+00> : vector<72x64xf32>
    %2 = tpu.matmul %0, %1, %cst {dimension_numbers = #tpu.dot_dimension_numbers<[1], [0], [0], [1], [0, 0, 1, 1], [], []>} : vector<72x32xbf16>, vector<32x64xbf16>, vector<72x64xf32> -> vector<72x64xf32>
    %c0_3 = arith.constant 0 : index
    %c0_4 = arith.constant 0 : index
    %3 = vector.load %arg3[%c0_3, %c0_4] : memref<72x64xf32, #tpu.memory_space<vmem>>, vector<72x64xf32>
    tpu.vector_store %arg3[%c0_3, %c0_4], %2 {strides = array<i32>} : memref<72x64xf32, #tpu.memory_space<vmem>>, vector<72x64xf32>,
    %cst_5 = arith.constant dense<0.000000e+00> : vector<64xf32>
    %4 = vector.multi_reduction <add>, %2, %cst_5 [0] : vector<72x64xf32> to vector<64xf32>
    %5 = vector.shape_cast %4 : vector<64xf32> to vector<1x64xf32>
    %c0_6 = arith.constant 0 : index
    %c0_7 = arith.constant 0 : index
    %c0_8 = arith.constant 0 : index
    %6 = vector.load %arg4[%c0_6, %c0_7, %c0_8] : memref<1x1x64xf32, #tpu.memory_space<vmem>>, vector<1x1x64xf32>
    %7 = vector.shape_cast %6 : vector<1x1x64xf32> to vector<1x64xf32>
    %8 = vector.shape_cast %5 : vector<1x64xf32> to vector<1x1x64xf32>
    tpu.vector_store %arg4[%c0_6, %c0_7, %c0_8], %8 {strides = array<i32>} : memref<1x1x64xf32, #tpu.memory_space<vmem>>, vector<1x1x64xf32>,
    %9 = arith.mulf %2, %2 : vector<72x64xf32>
    %cst_9 = arith.constant dense<0.000000e+00> : vector<64xf32>
    %10 = vector.multi_reduction <add>, %9, %cst_9 [0] : vector<72x64xf32> to vector<64xf32>
    %11 = vector.shape_cast %10 : vector<64xf32> to vector<1x64xf32>
    %c0_10 = arith.constant 0 : index
    %c0_11 = arith.constant 0 : index
    %c0_12 = arith.constant 0 : index
    %12 = vector.load %arg5[%c0_10, %c0_11, %c0_12] : memref<1x1x64xf32, #tpu.memory_space<vmem>>, vector<1x1x64xf32>
    %13 = vector.shape_cast %12 : vector<1x1x64xf32> to vector<1x64xf32>
    %14 = vector.shape_cast %11 : vector<1x64xf32> to vector<1x1x64xf32>
    tpu.vector_store %arg5[%c0_10, %c0_11, %c0_12], %14 {strides = array<i32>} : memref<1x1x64xf32, #tpu.memory_space<vmem>>, vector<1x1x64xf32>,
    return
  }
  func.func @transform_0(%arg0: i32) -> (i32, i32) {
    %c0_i32 = arith.constant 0 : i32
    %c0_i32_0 = arith.constant 0 : i32
    return %arg0, %c0_i32 : i32, i32
  }
  func.func @transform_1(%arg0: i32) -> (i32, i32) {
    %c0_i32 = arith.constant 0 : i32
    %c0_i32_0 = arith.constant 0 : i32
    %c0_i32_1 = arith.constant 0 : i32
    return %c0_i32, %c0_i32_0 : i32, i32
  }
  func.func @transform_2(%arg0: i32) -> (i32, i32) {
    %c0_i32 = arith.constant 0 : i32
    %c0_i32_0 = arith.constant 0 : i32
    return %arg0, %c0_i32 : i32, i32
  }
  func.func @transform_3(%arg0: i32) -> (i32, i32, i32) {
    %c0_i32 = arith.constant 0 : i32
    %c0_i32_0 = arith.constant 0 : i32
    %c0_i32_1 = arith.constant 0 : i32
    return %arg0, %c0_i32, %c0_i32_0 : i32, i32, i32
  }
  func.func @transform_4(%arg0: i32) -> (i32, i32, i32) {
    %c0_i32 = arith.constant 0 : i32
    %c0_i32_0 = arith.constant 0 : i32
    %c0_i32_1 = arith.constant 0 : i32
    return %arg0, %c0_i32, %c0_i32_0 : i32, i32, i32
  }
}

module attributes {stable_mosaic.version = 11 : i64} {
  func.func @_scale_shift_relu_kernel(%arg0: i32, %arg1: memref<72x64xf32, #tpu.memory_space<vmem>>, %arg2: memref<1x64xf32, #tpu.memory_space<vmem>>, %arg3: memref<1x64xf32, #tpu.memory_space<vmem>>, %arg4: memref<72x64xf32, #tpu.memory_space<vmem>>) attributes {dimension_semantics = [#tpu.dimension_semantics<parallel>], iteration_bounds = array<i64: 1>, scalar_prefetch = 0 : i64, scratch_operands = 0 : i64, tpu.core_type = #tpu.core_type<tc>, window_params = [{transform_indices = @transform_0, window_bounds = array<i64: 72, 64>}, {pipeline_mode = #tpu.pipeline_mode<synchronous>, transform_indices = @transform_1, window_bounds = array<i64: 1, 64>}, {pipeline_mode = #tpu.pipeline_mode<synchronous>, transform_indices = @transform_2, window_bounds = array<i64: 1, 64>}, {transform_indices = @transform_3, window_bounds = array<i64: 72, 64>}]} {
    %c0 = arith.constant 0 : index
    %c0_0 = arith.constant 0 : index
    %0 = vector.load %arg1[%c0, %c0_0] : memref<72x64xf32, #tpu.memory_space<vmem>>, vector<72x64xf32>
    %c0_1 = arith.constant 0 : index
    %c0_2 = arith.constant 0 : index
    %1 = vector.load %arg2[%c0_1, %c0_2] : memref<1x64xf32, #tpu.memory_space<vmem>>, vector<1x64xf32>
    %2 = vector.broadcast %1 : vector<1x64xf32> to vector<72x64xf32>
    %3 = arith.mulf %0, %2 : vector<72x64xf32>
    %c0_3 = arith.constant 0 : index
    %c0_4 = arith.constant 0 : index
    %4 = vector.load %arg3[%c0_3, %c0_4] : memref<1x64xf32, #tpu.memory_space<vmem>>, vector<1x64xf32>
    %5 = vector.broadcast %4 : vector<1x64xf32> to vector<72x64xf32>
    %6 = arith.addf %3, %5 : vector<72x64xf32>
    %cst = arith.constant 0.000000e+00 : f32
    %7 = vector.broadcast %cst : f32 to vector<72x64xf32>
    %8 = arith.maximumf %6, %7 : vector<72x64xf32>
    %c0_5 = arith.constant 0 : index
    %c0_6 = arith.constant 0 : index
    %9 = vector.load %arg4[%c0_5, %c0_6] : memref<72x64xf32, #tpu.memory_space<vmem>>, vector<72x64xf32>
    tpu.vector_store %arg4[%c0_5, %c0_6], %8 {strides = array<i32>} : memref<72x64xf32, #tpu.memory_space<vmem>>, vector<72x64xf32>,
    return
  }
  func.func @transform_0(%arg0: i32) -> (i32, i32) {
    %c0_i32 = arith.constant 0 : i32
    %c0_i32_0 = arith.constant 0 : i32
    return %arg0, %c0_i32 : i32, i32
  }
  func.func @transform_1(%arg0: i32) -> (i32, i32) {
    %c0_i32 = arith.constant 0 : i32
    %c0_i32_0 = arith.constant 0 : i32
    %c0_i32_1 = arith.constant 0 : i32
    return %c0_i32, %c0_i32_0 : i32, i32
  }
  func.func @transform_2(%arg0: i32) -> (i32, i32) {
    %c0_i32 = arith.constant 0 : i32
    %c0_i32_0 = arith.constant 0 : i32
    %c0_i32_1 = arith.constant 0 : i32
    return %c0_i32, %c0_i32_0 : i32, i32
  }
  func.func @transform_3(%arg0: i32) -> (i32, i32) {
    %c0_i32 = arith.constant 0 : i32
    %c0_i32_0 = arith.constant 0 : i32
    return %arg0, %c0_i32 : i32, i32
  }
}

</mosaic_0001>

<llo_original>
// kernel: down_selfattn_interp_up.4
$region0: #{down_selfattn_interp_up.4}
  #allocation0 [shape = 'u32[]', space=smem, size = 0x4, offset = 0x4, fixed_abs, tag = 'smem constant byte address 0x4 - core index']
  #allocation1 [shape = 'u32[144,128]{1,0:T(1,128)}', space=vmem, size = 0x12000, scoped, tag = 'internal scratch']
  %s0 = inlined_call_operand.vmem [shape: bf16[32,64], index: 0, kind: input, shape index: {}]
  %s1 = inlined_call_operand.vmem [shape: bf16[64,32], index: 1, kind: input, shape index: {}]
  %s2 = inlined_call_operand.vmem [shape: f32[32,32], index: 2, kind: output, shape index: {0}]
  %s3 = inlined_call_operand.vmem [shape: f32[1,1,32], index: 3, kind: output, shape index: {1}]
  %s4 = inlined_call_operand.vmem [shape: f32[1,1,32], index: 4, kind: output, shape index: {2}]
  %5 = xla_tuple %s2, %s3, %s4
  %s6 = sld [smem:[#allocation0]]
  $region34: #{down_selfattn_interp_up.4} parent=0
    _
  %s8 = ssub.s32 1, %s6
  %s9 = scalar_select 0, %s8, %s6
  // Predicated region
  $region2: #{down_selfattn_interp_up.4} parent=0 // pred_check
    _
  $region3: #{down_selfattn_interp_up.4} parent=0 // pred_check_branch
    %11 = sbr.rel (0) target = $region5
  $region4: #{down_selfattn_interp_up.4} parent=0 // pred_region
    _
  $region5: #{down_selfattn_interp_up.4} parent=0 // pred_fallthru
    _
  // Predicated region
  $region6: #{down_selfattn_interp_up.4} parent=0 // pred_check
    _
  $region7: #{down_selfattn_interp_up.4} parent=0 // pred_check_branch
    %13 = sbr.rel (0) target = $region9
  $region8: #{down_selfattn_interp_up.4} parent=0 // pred_region
    _
  $region9: #{down_selfattn_interp_up.4} parent=0 // pred_fallthru
    _
  %v15 = vld [vmem:[%s0] sm:$0xf]
  %v16 = vld [vmem:[%s0 + $0x4] sm:$0xf]
  %v17 = vld [vmem:[%s0 + $0x8] sm:$0xf]
  %v18 = vld [vmem:[%s0 + $0xc] sm:$0xf]
  %v19 = vld [vmem:[%s1] sm:$0xf]
  %v20 = vld [vmem:[%s1 + $0x4] sm:$0xf]
  %v21 = vld [vmem:[%s1 + $0x8] sm:$0xf]
  %v22 = vld [vmem:[%s1 + $0xc] sm:$0xf]
  %v23 = vld [vmem:[%s1 + $0x10] sm:$0xf]
  %v24 = vld [vmem:[%s1 + $0x14] sm:$0xf]
  %v25 = vld [vmem:[%s1 + $0x18] sm:$0xf]
  %v26 = vld [vmem:[%s1 + $0x1c] sm:$0xf]
  %v31 = vunpack.c.l.b16 %v15
  %v32 = vunpack.c.l.b16 %v16
  %v33 = vunpack.c.l.b16 %v17
  %v34 = vunpack.c.l.b16 %v18
  %v35 = vpack.c.b16 %v32, %v31
  %v36 = vpack.c.b16 %v34, %v33
  %v45 = vunpack.c.l.b16 %v19
  %v46 = vunpack.c.l.b16 %v20
  %v47 = vunpack.c.l.b16 %v21
  %v48 = vunpack.c.l.b16 %v22
  %v49 = vunpack.c.l.b16 %v23
  %v50 = vunpack.c.l.b16 %v24
  %v51 = vunpack.c.l.b16 %v25
  %v52 = vunpack.c.l.b16 %v26
  %v53 = vpack.c.b16 %v46, %v45
  %v54 = vpack.c.b16 %v48, %v47
  %v55 = vpack.c.b16 %v50, %v49
  %v56 = vpack.c.b16 %v52, %v51
  %vm61 = vcmask 523264
  %v63 = vsel %vm61, %v35, 0
  %v66 = vsel %vm61, %v36, 0
  %68 = vmatprep.subr.bf16.mxu0 0
  %69 = vmatpush1.bf16.msra.mxu0 %v53
  %70 = vmatprep.subr.bf16.mxu0 0
  %71 = vmatpush1.bf16.msra.mxu0 %v54
  %72 = vmatprep.subr.bf16.mxu0 0
  %73 = vmatpush1.bf16.msra.mxu0 %v55
  %74 = vmatprep.subr.bf16.mxu0 0
  %75 = vmatpush1.bf16.msra.mxu0 %v56
  %76 = vmatprep.subr.bf16.mxu0 0
  %77 = vmatpush1.bf16.msra.mxu0 0
  %78 = vmatprep.subr.bf16.mxu0 0
  %79 = vmatpush1.bf16.msra.mxu0 0
  %80 = vmatprep.subr.bf16.mxu0 0
  %81 = vmatpush1.bf16.msra.mxu0 0
  %82 = vmatprep.subr.bf16.mxu0 0
  %83 = vmatpush1.bf16.msra.mxu0 0
  %84 = vmatprep.subr.bf16.mxu0 0
  %85 = vmatpush1.bf16.msra.mxu0 0
  %86 = vmatprep.subr.bf16.mxu0 0
  %87 = vmatpush1.bf16.msra.mxu0 0
  %88 = vmatprep.subr.bf16.mxu0 0
  %89 = vmatpush1.bf16.msra.mxu0 0
  %90 = vmatprep.subr.bf16.mxu0 0
  %91 = vmatpush1.bf16.msra.mxu0 0
  %92 = vmatprep.subr.bf16.mxu0 0
  %93 = vmatpush1.bf16.msra.mxu0 0
  %94 = vmatprep.subr.bf16.mxu0 0
  %95 = vmatpush1.bf16.msra.mxu0 0
  %96 = vmatprep.subr.bf16.mxu0 0
  %97 = vmatpush1.bf16.msra.mxu0 0
  %98 = vmatprep.subr.bf16.mxu0 0
  %99 = vmatpush1.bf16.msra.mxu0 0
  %100 = vmatprep.mubr.bf16.mxu0 0
  %101 = vmatmul.mubr.bf16.gmra.mrb[0].mxu0 %v63
  %v102 = vpop.f32.mrb[0].mxu0
  %v103 = vadd.f32 0.0, %v102
  %v104 = vpop.f32.mrb[0].mxu0
  %v105 = vpop.f32.mrb[0].mxu0
  %v106 = vadd.f32 0.0, %v105
  %v107 = vpop.f32.mrb[0].mxu0
  %108 = vmatprep.mubr.bf16.mxu0 0
  %109 = vmatmul.mubr.bf16.gmra.mrb[0].mxu0 %v66
  %v110 = vpop.f32.mrb[0].mxu0
  %v111 = vadd.f32 0.0, %v110
  %v112 = vpop.f32.mrb[0].mxu0
  %v113 = vpop.f32.mrb[0].mxu0
  %v114 = vadd.f32 0.0, %v113
  %v115 = vpop.f32.mrb[0].mxu0
  %116 = vdwg.mxu0
  %vm117 = vcmask 261120
  %118 = vst.msk [vmem:[%s2] sm:$0xff] %vm117, %v103
  %119 = vst.msk [vmem:[%s2 + $0x8] sm:$0xff] %vm117, %v106
  %120 = vst.msk [vmem:[%s2 + $0x10] sm:$0xff] %vm117, %v111
  %121 = vst.msk [vmem:[%s2 + $0x18] sm:$0xff] %vm117, %v114
  %v122 = vsel %vm117, %v103, 0.0
  %v123 = vsel %vm117, %v106, 0.0
  %v124 = vadd.f32 %v122, %v123
  %v125 = vsel %vm117, %v111, 0.0
  %v126 = vadd.f32 %v124, %v125
  %v127 = vsel %vm117, %v114, 0.0
  %v128 = vadd.f32 %v126, %v127
  %v129 = vrot.slane %v128, 4
  %v130 = vadd.f32 %v128, %v129
  %v131 = vrot.slane %v130, 2
  %v132 = vadd.f32 %v130, %v131
  %v133 = vrot.slane %v132, 1
  %v134 = vadd.f32 %v132, %v133
  %vm135 = vcmask 253952
  %136 = vst.msk [vmem:[%s3] sm:$0x1] %vm135, %v134
  %v137 = vmul.f32 %v103, %v103
  %v138 = vmul.f32 %v106, %v106
  %v139 = vmul.f32 %v111, %v111
  %v140 = vmul.f32 %v114, %v114
  %v141 = vsel %vm117, %v137, 0.0
  %v142 = vsel %vm117, %v138, 0.0
  %v143 = vadd.f32 %v141, %v142
  %v144 = vsel %vm117, %v139, 0.0
  %v145 = vadd.f32 %v143, %v144
  %v146 = vsel %vm117, %v140, 0.0
  %v147 = vadd.f32 %v145, %v146
  %v148 = vrot.slane %v147, 4
  %v149 = vadd.f32 %v147, %v148
  %v150 = vrot.slane %v149, 2
  %v151 = vadd.f32 %v149, %v150
  %v152 = vrot.slane %v151, 1
  %v153 = vadd.f32 %v151, %v152
  %154 = vst.msk [vmem:[%s4] sm:$0x1] %vm135, %v153
  // Predicated region
  $region10: #{down_selfattn_interp_up.4} parent=0 // pred_check
    _
  $region11: #{down_selfattn_interp_up.4} parent=0 // pred_check_branch
    %156 = sbr.rel (0) target = $region13
  $region12: #{down_selfattn_interp_up.4} parent=0 // pred_region
    _
  $region13: #{down_selfattn_interp_up.4} parent=0 // pred_fallthru
    _
  // Predicated region
  $region14: #{down_selfattn_interp_up.4} parent=0 // pred_check
    _
  $region15: #{down_selfattn_interp_up.4} parent=0 // pred_check_branch
    %158 = sbr.rel (0) target = $region17
  $region16: #{down_selfattn_interp_up.4} parent=0 // pred_region
    _
  $region17: #{down_selfattn_interp_up.4} parent=0 // pred_fallthru
    _
  // Predicated region
  $region18: #{down_selfattn_interp_up.4} parent=0 // pred_check
    _
  $region19: #{down_selfattn_interp_up.4} parent=0 // pred_check_branch
    %160 = sbr.rel (0) target = $region21
  $region20: #{down_selfattn_interp_up.4} parent=0 // pred_region
    _
  $region21: #{down_selfattn_interp_up.4} parent=0 // pred_fallthru
    _
  // Predicated region
  $region22: #{down_selfattn_interp_up.4} parent=0 // pred_check
    _
  $region23: #{down_selfattn_interp_up.4} parent=0 // pred_check_branch
    %162 = sbr.rel (0) target = $region25
  $region24: #{down_selfattn_interp_up.4} parent=0 // pred_region
    _
  $region25: #{down_selfattn_interp_up.4} parent=0 // pred_fallthru
    _
  // Predicated region
  $region26: #{down_selfattn_interp_up.4} parent=0 // pred_check
    _
  $region27: #{down_selfattn_interp_up.4} parent=0 // pred_check_branch
    %164 = sbr.rel (0) target = $region29
  $region28: #{down_selfattn_interp_up.4} parent=0 // pred_region
    _
  $region29: #{down_selfattn_interp_up.4} parent=0 // pred_fallthru
    _
  // Predicated region
  $region30: #{down_selfattn_interp_up.4} parent=0 // pred_check
    _
  $region31: #{down_selfattn_interp_up.4} parent=0 // pred_check_branch
    %166 = sbr.rel (0) target = $region33
  $region32: #{down_selfattn_interp_up.4} parent=0 // pred_region
    _
  $region33: #{down_selfattn_interp_up.4} parent=0 // pred_fallthru
    _

// kernel: down_selfattn_interp_up.6
$region0: #{down_selfattn_interp_up.6}
  #allocation0 [shape = 'u32[]', space=smem, size = 0x4, offset = 0x4, fixed_abs, tag = 'smem constant byte address 0x4 - core index']
  #allocation1 [shape = 'u32[144,128]{1,0:T(1,128)}', space=vmem, size = 0x12000, scoped, tag = 'internal scratch']
  %s0 = inlined_call_operand.vmem [shape: bf16[72,32], index: 0, kind: input, shape index: {}]
  %s1 = inlined_call_operand.vmem [shape: bf16[32,64], index: 1, kind: input, shape index: {}]
  %s2 = inlined_call_operand.vmem [shape: f32[72,64], index: 2, kind: output, shape index: {0}]
  %s3 = inlined_call_operand.vmem [shape: f32[1,1,64], index: 3, kind: output, shape index: {1}]
  %s4 = inlined_call_operand.vmem [shape: f32[1,1,64], index: 4, kind: output, shape index: {2}]
  %5 = xla_tuple %s2, %s3, %s4
  %s6 = sld [smem:[#allocation0]]
  $region34: #{down_selfattn_interp_up.6} parent=0
    _
  %s8 = ssub.s32 1, %s6
  %s9 = scalar_select 0, %s8, %s6
  // Predicated region
  $region2: #{down_selfattn_interp_up.6} parent=0 // pred_check
    _
  $region3: #{down_selfattn_interp_up.6} parent=0 // pred_check_branch
    %11 = sbr.rel (0) target = $region5
  $region4: #{down_selfattn_interp_up.6} parent=0 // pred_region
    _
  $region5: #{down_selfattn_interp_up.6} parent=0 // pred_fallthru
    _
  // Predicated region
  $region6: #{down_selfattn_interp_up.6} parent=0 // pred_check
    _
  $region7: #{down_selfattn_interp_up.6} parent=0 // pred_check_branch
    %13 = sbr.rel (0) target = $region9
  $region8: #{down_selfattn_interp_up.6} parent=0 // pred_region
    _
  $region9: #{down_selfattn_interp_up.6} parent=0 // pred_fallthru
    _
  %v15 = vld [vmem:[%s0] sm:$0xf]
  %v16 = vld [vmem:[%s0 + $0x4] sm:$0xf]
  %v17 = vld [vmem:[%s0 + $0x8] sm:$0xf]
  %v18 = vld [vmem:[%s0 + $0xc] sm:$0xf]
  %v19 = vld [vmem:[%s0 + $0x10] sm:$0xf]
  %v20 = vld [vmem:[%s0 + $0x14] sm:$0xf]
  %v21 = vld [vmem:[%s0 + $0x18] sm:$0xf]
  %v22 = vld [vmem:[%s0 + $0x1c] sm:$0xf]
  %v23 = vld [vmem:[%s0 + $0x20] sm:$0xf]
  %v24 = vld [vmem:[%s1] sm:$0xf]
  %v25 = vld [vmem:[%s1 + $0x4] sm:$0xf]
  %v26 = vld [vmem:[%s1 + $0x8] sm:$0xf]
  %v27 = vld [vmem:[%s1 + $0xc] sm:$0xf]
  %v37 = vunpack.c.l.b16 %v15
  %v38 = vunpack.c.l.b16 %v16
  %v39 = vunpack.c.l.b16 %v17
  %v40 = vunpack.c.l.b16 %v18
  %v41 = vunpack.c.l.b16 %v19
  %v42 = vunpack.c.l.b16 %v20
  %v43 = vunpack.c.l.b16 %v21
  %v44 = vunpack.c.l.b16 %v22
  %v45 = vunpack.c.l.b16 %v23
  %v46 = vpack.c.b16 %v38, %v37
  %v47 = vpack.c.b16 %v40, %v39
  %v48 = vpack.c.b16 %v42, %v41
  %v49 = vpack.c.b16 %v44, %v43
  %v50 = vpack.c.b16 %v45, %v45
  %v55 = vunpack.c.l.b16 %v24
  %v56 = vunpack.c.l.b16 %v25
  %v57 = vunpack.c.l.b16 %v26
  %v58 = vunpack.c.l.b16 %v27
  %v59 = vpack.c.b16 %v56, %v55
  %v60 = vpack.c.b16 %v58, %v57
  %vm63 = vcmask 261120
  %v65 = vsel %vm63, %v46, 0
  %v68 = vsel %vm63, %v47, 0
  %v71 = vsel %vm63, %v48, 0
  %v74 = vsel %vm63, %v49, 0
  %v77 = vsel %vm63, %v50, 0
  %79 = vmatprep.subr.bf16.mxu0 0
  %80 = vmatpush1.bf16.msra.mxu0 %v59
  %81 = vmatprep.subr.bf16.mxu0 0
  %82 = vmatpush1.bf16.msra.mxu0 %v60
  %83 = vmatprep.subr.bf16.mxu0 0
  %84 = vmatpush1.bf16.msra.mxu0 0
  %85 = vmatprep.subr.bf16.mxu0 0
  %86 = vmatpush1.bf16.msra.mxu0 0
  %87 = vmatprep.subr.bf16.mxu0 0
  %88 = vmatpush1.bf16.msra.mxu0 0
  %89 = vmatprep.subr.bf16.mxu0 0
  %90 = vmatpush1.bf16.msra.mxu0 0
  %91 = vmatprep.subr.bf16.mxu0 0
  %92 = vmatpush1.bf16.msra.mxu0 0
  %93 = vmatprep.subr.bf16.mxu0 0
  %94 = vmatpush1.bf16.msra.mxu0 0
  %95 = vmatprep.subr.bf16.mxu0 0
  %96 = vmatpush1.bf16.msra.mxu0 0
  %97 = vmatprep.subr.bf16.mxu0 0
  %98 = vmatpush1.bf16.msra.mxu0 0
  %99 = vmatprep.subr.bf16.mxu0 0
  %100 = vmatpush1.bf16.msra.mxu0 0
  %101 = vmatprep.subr.bf16.mxu0 0
  %102 = vmatpush1.bf16.msra.mxu0 0
  %103 = vmatprep.subr.bf16.mxu0 0
  %104 = vmatpush1.bf16.msra.mxu0 0
  %105 = vmatprep.subr.bf16.mxu0 0
  %106 = vmatpush1.bf16.msra.mxu0 0
  %107 = vmatprep.subr.bf16.mxu0 0
  %108 = vmatpush1.bf16.msra.mxu0 0
  %109 = vmatprep.subr.bf16.mxu0 0
  %110 = vmatpush1.bf16.msra.mxu0 0
  %111 = vmatprep.mubr.bf16.mxu0 0
  %112 = vmatmul.mubr.bf16.gmra.mrb[0].mxu0 %v65
  %v113 = vpop.f32.mrb[0].mxu0
  %v114 = vadd.f32 0.0, %v113
  %v115 = vpop.f32.mrb[0].mxu0
  %v116 = vpop.f32.mrb[0].mxu0
  %v117 = vadd.f32 0.0, %v116
  %v118 = vpop.f32.mrb[0].mxu0
  %119 = vmatprep.mubr.bf16.mxu0 0
  %120 = vmatmul.mubr.bf16.gmra.mrb[0].mxu0 %v68
  %v121 = vpop.f32.mrb[0].mxu0
  %v122 = vadd.f32 0.0, %v121
  %v123 = vpop.f32.mrb[0].mxu0
  %v124 = vpop.f32.mrb[0].mxu0
  %v125 = vadd.f32 0.0, %v124
  %v126 = vpop.f32.mrb[0].mxu0
  %127 = vmatprep.mubr.bf16.mxu0 0
  %128 = vmatmul.mubr.bf16.gmra.mrb[0].mxu0 %v71
  %v129 = vpop.f32.mrb[0].mxu0
  %v130 = vadd.f32 0.0, %v129
  %v131 = vpop.f32.mrb[0].mxu0
  %v132 = vpop.f32.mrb[0].mxu0
  %v133 = vadd.f32 0.0, %v132
  %v134 = vpop.f32.mrb[0].mxu0
  %135 = vmatprep.mubr.bf16.mxu0 0
  %136 = vmatmul.mubr.bf16.gmra.mrb[0].mxu0 %v74
  %v137 = vpop.f32.mrb[0].mxu0
  %v138 = vadd.f32 0.0, %v137
  %v139 = vpop.f32.mrb[0].mxu0
  %v140 = vpop.f32.mrb[0].mxu0
  %v141 = vadd.f32 0.0, %v140
  %v142 = vpop.f32.mrb[0].mxu0
  %143 = vmatprep.mubr.bf16.mxu0 0
  %144 = vmatmul.mubr.bf16.gmra.mrb[0].mxu0 %v77
  %v145 = vpop.f32.mrb[0].mxu0
  %v146 = vadd.f32 0.0, %v145
  %v147 = vpop.f32.mrb[0].mxu0
  %v148 = vpop.f32.mrb[0].mxu0
  %v149 = vpop.f32.mrb[0].mxu0
  %150 = vdwg.mxu0
  %vm151 = vcmask 523264
  %152 = vst.msk [vmem:[%s2] sm:$0xff] %vm151, %v114
  %153 = vst.msk [vmem:[%s2 + $0x8] sm:$0xff] %vm151, %v117
  %154 = vst.msk [vmem:[%s2 + $0x10] sm:$0xff] %vm151, %v122
  %155 = vst.msk [vmem:[%s2 + $0x18] sm:$0xff] %vm151, %v125
  %156 = vst.msk [vmem:[%s2 + $0x20] sm:$0xff] %vm151, %v130
  %157 = vst.msk [vmem:[%s2 + $0x28] sm:$0xff] %vm151, %v133
  %158 = vst.msk [vmem:[%s2 + $0x30] sm:$0xff] %vm151, %v138
  %159 = vst.msk [vmem:[%s2 + $0x38] sm:$0xff] %vm151, %v141
  %160 = vst.msk [vmem:[%s2 + $0x40] sm:$0xff] %vm151, %v146
  %v161 = vsel %vm151, %v114, 0.0
  %v162 = vsel %vm151, %v117, 0.0
  %v163 = vadd.f32 %v161, %v162
  %v164 = vsel %vm151, %v122, 0.0
  %v165 = vadd.f32 %v163, %v164
  %v166 = vsel %vm151, %v125, 0.0
  %v167 = vadd.f32 %v165, %v166
  %v168 = vsel %vm151, %v130, 0.0
  %v169 = vadd.f32 %v167, %v168
  %v170 = vsel %vm151, %v133, 0.0
  %v171 = vadd.f32 %v169, %v170
  %v172 = vsel %vm151, %v138, 0.0
  %v173 = vadd.f32 %v171, %v172
  %v174 = vsel %vm151, %v141, 0.0
  %v175 = vadd.f32 %v173, %v174
  %v176 = vsel %vm151, %v146, 0.0
  %v177 = vadd.f32 %v175, %v176
  %v178 = vrot.slane %v177, 4
  %v179 = vadd.f32 %v177, %v178
  %v180 = vrot.slane %v179, 2
  %v181 = vadd.f32 %v179, %v180
  %v182 = vrot.slane %v181, 1
  %v183 = vadd.f32 %v181, %v182
  %vm184 = vcmask 516096
  %185 = vst.msk [vmem:[%s3] sm:$0x1] %vm184, %v183
  %v186 = vmul.f32 %v114, %v114
  %v187 = vmul.f32 %v117, %v117
  %v188 = vmul.f32 %v122, %v122
  %v189 = vmul.f32 %v125, %v125
  %v190 = vmul.f32 %v130, %v130
  %v191 = vmul.f32 %v133, %v133
  %v192 = vmul.f32 %v138, %v138
  %v193 = vmul.f32 %v141, %v141
  %v194 = vmul.f32 %v146, %v146
  %v195 = vsel %vm151, %v186, 0.0
  %v196 = vsel %vm151, %v187, 0.0
  %v197 = vadd.f32 %v195, %v196
  %v198 = vsel %vm151, %v188, 0.0
  %v199 = vadd.f32 %v197, %v198
  %v200 = vsel %vm151, %v189, 0.0
  %v201 = vadd.f32 %v199, %v200
  %v202 = vsel %vm151, %v190, 0.0
  %v203 = vadd.f32 %v201, %v202
  %v204 = vsel %vm151, %v191, 0.0
  %v205 = vadd.f32 %v203, %v204
  %v206 = vsel %vm151, %v192, 0.0
  %v207 = vadd.f32 %v205, %v206
  %v208 = vsel %vm151, %v193, 0.0
  %v209 = vadd.f32 %v207, %v208
  %v210 = vsel %vm151, %v194, 0.0
  %v211 = vadd.f32 %v209, %v210
  %v212 = vrot.slane %v211, 4
  %v213 = vadd.f32 %v211, %v212
  %v214 = vrot.slane %v213, 2
  %v215 = vadd.f32 %v213, %v214
  %v216 = vrot.slane %v215, 1
  %v217 = vadd.f32 %v215, %v216
  %218 = vst.msk [vmem:[%s4] sm:$0x1] %vm184, %v217
  // Predicated region
  $region10: #{down_selfattn_interp_up.6} parent=0 // pred_check
    _
  $region11: #{down_selfattn_interp_up.6} parent=0 // pred_check_branch
    %220 = sbr.rel (0) target = $region13
  $region12: #{down_selfattn_interp_up.6} parent=0 // pred_region
    _
  $region13: #{down_selfattn_interp_up.6} parent=0 // pred_fallthru
    _
  // Predicated region
  $region14: #{down_selfattn_interp_up.6} parent=0 // pred_check
    _
  $region15: #{down_selfattn_interp_up.6} parent=0 // pred_check_branch
    %222 = sbr.rel (0) target = $region17
  $region16: #{down_selfattn_interp_up.6} parent=0 // pred_region
    _
  $region17: #{down_selfattn_interp_up.6} parent=0 // pred_fallthru
    _
  // Predicated region
  $region18: #{down_selfattn_interp_up.6} parent=0 // pred_check
    _
  $region19: #{down_selfattn_interp_up.6} parent=0 // pred_check_branch
    %224 = sbr.rel (0) target = $region21
  $region20: #{down_selfattn_interp_up.6} parent=0 // pred_region
    _
  $region21: #{down_selfattn_interp_up.6} parent=0 // pred_fallthru
    _
  // Predicated region
  $region22: #{down_selfattn_interp_up.6} parent=0 // pred_check
    _
  $region23: #{down_selfattn_interp_up.6} parent=0 // pred_check_branch
    %226 = sbr.rel (0) target = $region25
  $region24: #{down_selfattn_interp_up.6} parent=0 // pred_region
    _
  $region25: #{down_selfattn_interp_up.6} parent=0 // pred_fallthru
    _
  // Predicated region
  $region26: #{down_selfattn_interp_up.6} parent=0 // pred_check
    _
  $region27: #{down_selfattn_interp_up.6} parent=0 // pred_check_branch
    %228 = sbr.rel (0) target = $region29
  $region28: #{down_selfattn_interp_up.6} parent=0 // pred_region
    _
  $region29: #{down_selfattn_interp_up.6} parent=0 // pred_fallthru
    _
  // Predicated region
  $region30: #{down_selfattn_interp_up.6} parent=0 // pred_check
    _
  $region31: #{down_selfattn_interp_up.6} parent=0 // pred_check_branch
    %230 = sbr.rel (0) target = $region33
  $region32: #{down_selfattn_interp_up.6} parent=0 // pred_region
    _
  $region33: #{down_selfattn_interp_up.6} parent=0 // pred_fallthru
    _

// kernel: down_selfattn_interp_up.5
$region0: #{down_selfattn_interp_up.5}
  #allocation0 [shape = 'u32[]', space=smem, size = 0x4, offset = 0x4, fixed_abs, tag = 'smem constant byte address 0x4 - core index']
  #allocation1 [shape = 'u32[144,128]{1,0:T(1,128)}', space=vmem, size = 0x12000, scoped, tag = 'internal scratch']
  %s0 = inlined_call_operand.vmem [shape: f32[2,16,32], index: 0, kind: input, shape index: {}]
  %s1 = inlined_call_operand.vmem [shape: f32[1,32], index: 1, kind: input, shape index: {}]
  %s2 = inlined_call_operand.vmem [shape: f32[1,32], index: 2, kind: input, shape index: {}]
  %s3 = inlined_call_operand.vmem [shape: f32[16,32], index: 3, kind: input, shape index: {}, may-alias: {3,9}]
  %s4 = inlined_call_operand.vmem [shape: f32[16,32], index: 4, kind: input, shape index: {}, may-alias: {4,10}]
  %s5 = inlined_call_operand.vmem [shape: bf16[32,96], index: 5, kind: input, shape index: {}]
  %s6 = inlined_call_operand.vmem [shape: f32[1,96], index: 6, kind: input, shape index: {}]
  %s7 = inlined_call_operand.vmem [shape: bf16[32,32], index: 7, kind: input, shape index: {}]
  %s8 = inlined_call_operand.vmem [shape: f32[1,32], index: 8, kind: input, shape index: {}]
  %s9 = inlined_call_operand.vmem [shape: f32[16,32], index: 9, kind: input, shape index: {}, may-alias: {3,9}]
  %s10 = inlined_call_operand.vmem [shape: f32[16,32], index: 10, kind: input, shape index: {}, may-alias: {4,10}]
  %s11 = inlined_call_operand.vmem [shape: bf16[32,32], index: 11, kind: input, shape index: {}]
  %s12 = inlined_call_operand.vmem [shape: f32[1,32], index: 12, kind: input, shape index: {}]
  %s13 = inlined_call_operand.vmem [shape: bf16[32,32], index: 13, kind: input, shape index: {}]
  %s14 = inlined_call_operand.vmem [shape: f32[1,32], index: 14, kind: input, shape index: {}]
  %s15 = inlined_call_operand.vmem [shape: f32[36,16], index: 15, kind: input, shape index: {}]
  %s16 = inlined_call_operand.vmem [shape: f32[2,36,32], index: 16, kind: output, shape index: {}]
  %s17 = sld [smem:[#allocation0]]
  $region97: #{down_selfattn_interp_up.5} parent=0
    _
  %s19 = ssub.s32 1, %s17
  %s20 = scalar_select 0, %s19, %s17
  loop: start=0, step=1, limit=4
  $region2: #{down_selfattn_interp_up.5} parent=0 // loop_pre_header
    _
  $region3: #{down_selfattn_interp_up.5} parent=0 // loop_header
    %s22 = sphi 0, %s26
    %p23 = scmp.ge.s32.totalorder %s22, 4
    %s32 = sphi 0, %s34
    %s35 = sphi 0, %s32
    %s36 = sphi 0, %s35
    %s52 = sphi 0, %s36
    %s56 = sphi 0, %s56
    %s58 = sphi 0, %s56
    %s59 = sphi 0, %s58
    %s73 = sphi 0, %s59
    %s77 = sphi 0, %s77
    %s79 = sphi 0, %s77
    %s80 = sphi 0, %s79
    %s94 = sphi 0, %s80
    %s98 = sphi 0, %s98
    %s100 = sphi 0, %s98
    %s101 = sphi 0, %s100
    %s115 = sphi 0, %s101
    %s119 = sphi 0, %s119
    %s121 = sphi 0, %s119
    %s122 = sphi 0, %s121
    %s136 = sphi 0, %s122
    %s140 = sphi 0, %s140
    %s142 = sphi 0, %s140
    %s143 = sphi 0, %s142
    %s157 = sphi 0, %s143
    %s161 = sphi 0, %s161
    %s163 = sphi 0, %s161
    %s164 = sphi 0, %s163
    %s178 = sphi 0, %s164
    %s182 = sphi 0, %s182
    %s184 = sphi 0, %s182
    %s185 = sphi 0, %s184
    %s199 = sphi 0, %s185
    %s203 = sphi 0, %s203
    %s205 = sphi 0, %s203
    %s206 = sphi 0, %s205
    %s220 = sphi 0, %s206
    %s224 = sphi 0, %s224
    %s226 = sphi 0, %s224
    %s227 = sphi 0, %s226
    %s241 = sphi 0, %s227
    %s245 = sphi 0, %s245
    %s247 = sphi 0, %s245
    %s248 = sphi 0, %s247
    %s262 = sphi 0, %s248
    %s266 = sphi 0, %s266
    %s268 = sphi 0, %s266
    %s269 = sphi 0, %s268
    %s283 = sphi 0, %s269
    %s287 = sphi 0, %s287
    %s289 = sphi 0, %s287
    %s290 = sphi 0, %s289
    %s304 = sphi 0, %s290
    %s308 = sphi 0, %s308
    %s310 = sphi 0, %s308
    %s311 = sphi 0, %s310
    %s325 = sphi 0, %s311
    %s329 = sphi 0, %s329
    %s331 = sphi 0, %s329
    %s332 = sphi 0, %s331
    %s346 = sphi 0, %s332
    %s350 = sphi 0, %s350
    %s352 = sphi 0, %s350
    %s353 = sphi 0, %s352
    %s367 = sphi 0, %s353
    %s373 = sphi 0, %s375
    %s376 = sphi 0, %s373
    %s377 = sphi 0, %s376
    %s393 = sphi 0, %s377
  $region4: #{down_selfattn_interp_up.5} parent=0 // loop_header_branch
    %25 = sbr.rel (%p23) target = $region8
  $region5: #{down_selfattn_interp_up.5} parent=0 // loop_body
    %s27 = ssub.s32 %s22, 1
    %s28 = ssub.s32 %s22, 2
    %s29 = sadd.s32 %s22, 1
    %s30 = ssub.s32 %s22, %s29
    %p31 = scmp.eq.s32.totalorder %s30, 0
    %s33 = sadd.s32 %s32, 1
    %s34 = scalar_select %p31, %s32, %s33
    %p37 = pneg %p31
    %p38 = scmp.eq.s32.totalorder %s22, 1
    %p39 = por %p37, %p38
    %p40 = scmp.ne.s32.totalorder %s32, %s35
    %p41 = scmp.eq.s32.totalorder %s22, 0
    %p42 = por %p40, %p41
    %p43 = scmp.ne.s32.totalorder %s32, %s35
    %p44 = scmp.eq.s32.totalorder %s27, 1
    %p45 = por %p43, %p44
    %p46 = scmp.ne.s32.totalorder %s35, %s36
    %p47 = scmp.eq.s32.totalorder %s27, 0
    %p48 = por %p46, %p47
    %p49 = scmp.ne.s32.totalorder %s35, %s36
    %p50 = scmp.eq.s32.totalorder %s28, 1
    %p51 = por %p49, %p50
    %p53 = scmp.ne.s32.totalorder %s36, %s52
    %p54 = scmp.eq.s32.totalorder %s28, 0
    %p55 = por %p53, %p54
    %s57 = sadd.s32 %s56, 1
    %p60 = scmp.eq.s32.totalorder %s22, 1
    %p61 = scmp.ne.s32.totalorder %s56, %s58
    %p62 = scmp.eq.s32.totalorder %s22, 0
    %p63 = por %p61, %p62
    %p64 = scmp.ne.s32.totalorder %s56, %s58
    %p65 = scmp.eq.s32.totalorder %s27, 1
    %p66 = por %p64, %p65
    %p67 = scmp.ne.s32.totalorder %s58, %s59
    %p68 = scmp.eq.s32.totalorder %s27, 0
    %p69 = por %p67, %p68
    %p70 = scmp.ne.s32.totalorder %s58, %s59
    %p71 = scmp.eq.s32.totalorder %s28, 1
    %p72 = por %p70, %p71
    %p74 = scmp.ne.s32.totalorder %s59, %s73
    %p75 = scmp.eq.s32.totalorder %s28, 0
    %p76 = por %p74, %p75
    %s78 = sadd.s32 %s77, 1
    %p81 = scmp.eq.s32.totalorder %s22, 1
    %p82 = scmp.ne.s32.totalorder %s77, %s79
    %p83 = scmp.eq.s32.totalorder %s22, 0
    %p84 = por %p82, %p83
    %p85 = scmp.ne.s32.totalorder %s77, %s79
    %p86 = scmp.eq.s32.totalorder %s27, 1
    %p87 = por %p85, %p86
    %p88 = scmp.ne.s32.totalorder %s79, %s80
    %p89 = scmp.eq.s32.totalorder %s27, 0
    %p90 = por %p88, %p89
    %p91 = scmp.ne.s32.totalorder %s79, %s80
    %p92 = scmp.eq.s32.totalorder %s28, 1
    %p93 = por %p91, %p92
    %p95 = scmp.ne.s32.totalorder %s80, %s94
    %p96 = scmp.eq.s32.totalorder %s28, 0
    %p97 = por %p95, %p96
    %s99 = sadd.s32 %s98, 1
    %p102 = scmp.eq.s32.totalorder %s22, 1
    %p103 = scmp.ne.s32.totalorder %s98, %s100
    %p104 = scmp.eq.s32.totalorder %s22, 0
    %p105 = por %p103, %p104
    %p106 = scmp.ne.s32.totalorder %s98, %s100
    %p107 = scmp.eq.s32.totalorder %s27, 1
    %p108 = por %p106, %p107
    %p109 = scmp.ne.s32.totalorder %s100, %s101
    %p110 = scmp.eq.s32.totalorder %s27, 0
    %p111 = por %p109, %p110
    %p112 = scmp.ne.s32.totalorder %s100, %s101
    %p113 = scmp.eq.s32.totalorder %s28, 1
    %p114 = por %p112, %p113
    %p116 = scmp.ne.s32.totalorder %s101, %s115
    %p117 = scmp.eq.s32.totalorder %s28, 0
    %p118 = por %p116, %p117
    %s120 = sadd.s32 %s119, 1
    %p123 = scmp.eq.s32.totalorder %s22, 1
    %p124 = scmp.ne.s32.totalorder %s119, %s121
    %p125 = scmp.eq.s32.totalorder %s22, 0
    %p126 = por %p124, %p125
    %p127 = scmp.ne.s32.totalorder %s119, %s121
    %p128 = scmp.eq.s32.totalorder %s27, 1
    %p129 = por %p127, %p128
    %p130 = scmp.ne.s32.totalorder %s121, %s122
    %p131 = scmp.eq.s32.totalorder %s27, 0
    %p132 = por %p130, %p131
    %p133 = scmp.ne.s32.totalorder %s121, %s122
    %p134 = scmp.eq.s32.totalorder %s28, 1
    %p135 = por %p133, %p134
    %p137 = scmp.ne.s32.totalorder %s122, %s136
    %p138 = scmp.eq.s32.totalorder %s28, 0
    %p139 = por %p137, %p138
    %s141 = sadd.s32 %s140, 1
    %p144 = scmp.eq.s32.totalorder %s22, 1
    %p145 = scmp.ne.s32.totalorder %s140, %s142
    %p146 = scmp.eq.s32.totalorder %s22, 0
    %p147 = por %p145, %p146
    %p148 = scmp.ne.s32.totalorder %s140, %s142
    %p149 = scmp.eq.s32.totalorder %s27, 1
    %p150 = por %p148, %p149
    %p151 = scmp.ne.s32.totalorder %s142, %s143
    %p152 = scmp.eq.s32.totalorder %s27, 0
    %p153 = por %p151, %p152
    %p154 = scmp.ne.s32.totalorder %s142, %s143
    %p155 = scmp.eq.s32.totalorder %s28, 1
    %p156 = por %p154, %p155
    %p158 = scmp.ne.s32.totalorder %s143, %s157
    %p159 = scmp.eq.s32.totalorder %s28, 0
    %p160 = por %p158, %p159
    %s162 = sadd.s32 %s161, 1
    %p165 = scmp.eq.s32.totalorder %s22, 1
    %p166 = scmp.ne.s32.totalorder %s161, %s163
    %p167 = scmp.eq.s32.totalorder %s22, 0
    %p168 = por %p166, %p167
    %p169 = scmp.ne.s32.totalorder %s161, %s163
    %p170 = scmp.eq.s32.totalorder %s27, 1
    %p171 = por %p169, %p170
    %p172 = scmp.ne.s32.totalorder %s163, %s164
    %p173 = scmp.eq.s32.totalorder %s27, 0
    %p174 = por %p172, %p173
    %p175 = scmp.ne.s32.totalorder %s163, %s164
    %p176 = scmp.eq.s32.totalorder %s28, 1
    %p177 = por %p175, %p176
    %p179 = scmp.ne.s32.totalorder %s164, %s178
    %p180 = scmp.eq.s32.totalorder %s28, 0
    %p181 = por %p179, %p180
    %s183 = sadd.s32 %s182, 1
    %p186 = scmp.eq.s32.totalorder %s22, 1
    %p187 = scmp.ne.s32.totalorder %s182, %s184
    %p188 = scmp.eq.s32.totalorder %s22, 0
    %p189 = por %p187, %p188
    %p190 = scmp.ne.s32.totalorder %s182, %s184
    %p191 = scmp.eq.s32.totalorder %s27, 1
    %p192 = por %p190, %p191
    %p193 = scmp.ne.s32.totalorder %s184, %s185
    %p194 = scmp.eq.s32.totalorder %s27, 0
    %p195 = por %p193, %p194
    %p196 = scmp.ne.s32.totalorder %s184, %s185
    %p197 = scmp.eq.s32.totalorder %s28, 1
    %p198 = por %p196, %p197
    %p200 = scmp.ne.s32.totalorder %s185, %s199
    %p201 = scmp.eq.s32.totalorder %s28, 0
    %p202 = por %p200, %p201
    %s204 = sadd.s32 %s203, 1
    %p207 = scmp.eq.s32.totalorder %s22, 1
    %p208 = scmp.ne.s32.totalorder %s203, %s205
    %p209 = scmp.eq.s32.totalorder %s22, 0
    %p210 = por %p208, %p209
    %p211 = scmp.ne.s32.totalorder %s203, %s205
    %p212 = scmp.eq.s32.totalorder %s27, 1
    %p213 = por %p211, %p212
    %p214 = scmp.ne.s32.totalorder %s205, %s206
    %p215 = scmp.eq.s32.totalorder %s27, 0
    %p216 = por %p214, %p215
    %p217 = scmp.ne.s32.totalorder %s205, %s206
    %p218 = scmp.eq.s32.totalorder %s28, 1
    %p219 = por %p217, %p218
    %p221 = scmp.ne.s32.totalorder %s206, %s220
    %p222 = scmp.eq.s32.totalorder %s28, 0
    %p223 = por %p221, %p222
    %s225 = sadd.s32 %s224, 1
    %p228 = scmp.eq.s32.totalorder %s22, 1
    %p229 = scmp.ne.s32.totalorder %s224, %s226
    %p230 = scmp.eq.s32.totalorder %s22, 0
    %p231 = por %p229, %p230
    %p232 = scmp.ne.s32.totalorder %s224, %s226
    %p233 = scmp.eq.s32.totalorder %s27, 1
    %p234 = por %p232, %p233
    %p235 = scmp.ne.s32.totalorder %s226, %s227
    %p236 = scmp.eq.s32.totalorder %s27, 0
    %p237 = por %p235, %p236
    %p238 = scmp.ne.s32.totalorder %s226, %s227
    %p239 = scmp.eq.s32.totalorder %s28, 1
    %p240 = por %p238, %p239
    %p242 = scmp.ne.s32.totalorder %s227, %s241
    %p243 = scmp.eq.s32.totalorder %s28, 0
    %p244 = por %p242, %p243
    %s246 = sadd.s32 %s245, 1
    %p249 = scmp.eq.s32.totalorder %s22, 1
    %p250 = scmp.ne.s32.totalorder %s245, %s247
    %p251 = scmp.eq.s32.totalorder %s22, 0
    %p252 = por %p250, %p251
    %p253 = scmp.ne.s32.totalorder %s245, %s247
    %p254 = scmp.eq.s32.totalorder %s27, 1
    %p255 = por %p253, %p254
    %p256 = scmp.ne.s32.totalorder %s247, %s248
    %p257 = scmp.eq.s32.totalorder %s27, 0
    %p258 = por %p256, %p257
    %p259 = scmp.ne.s32.totalorder %s247, %s248
    %p260 = scmp.eq.s32.totalorder %s28, 1
    %p261 = por %p259, %p260
    %p263 = scmp.ne.s32.totalorder %s248, %s262
    %p264 = scmp.eq.s32.totalorder %s28, 0
    %p265 = por %p263, %p264
    %s267 = sadd.s32 %s266, 1
    %p270 = scmp.eq.s32.totalorder %s22, 1
    %p271 = scmp.ne.s32.totalorder %s266, %s268
    %p272 = scmp.eq.s32.totalorder %s22, 0
    %p273 = por %p271, %p272
    %p274 = scmp.ne.s32.totalorder %s266, %s268
    %p275 = scmp.eq.s32.totalorder %s27, 1
    %p276 = por %p274, %p275
    %p277 = scmp.ne.s32.totalorder %s268, %s269
    %p278 = scmp.eq.s32.totalorder %s27, 0
    %p279 = por %p277, %p278
    %p280 = scmp.ne.s32.totalorder %s268, %s269
    %p281 = scmp.eq.s32.totalorder %s28, 1
    %p282 = por %p280, %p281
    %p284 = scmp.ne.s32.totalorder %s269, %s283
    %p285 = scmp.eq.s32.totalorder %s28, 0
    %p286 = por %p284, %p285
    %s288 = sadd.s32 %s287, 1
    %p291 = scmp.eq.s32.totalorder %s22, 1
    %p292 = scmp.ne.s32.totalorder %s287, %s289
    %p293 = scmp.eq.s32.totalorder %s22, 0
    %p294 = por %p292, %p293
    %p295 = scmp.ne.s32.totalorder %s287, %s289
    %p296 = scmp.eq.s32.totalorder %s27, 1
    %p297 = por %p295, %p296
    %p298 = scmp.ne.s32.totalorder %s289, %s290
    %p299 = scmp.eq.s32.totalorder %s27, 0
    %p300 = por %p298, %p299
    %p301 = scmp.ne.s32.totalorder %s289, %s290
    %p302 = scmp.eq.s32.totalorder %s28, 1
    %p303 = por %p301, %p302
    %p305 = scmp.ne.s32.totalorder %s290, %s304
    %p306 = scmp.eq.s32.totalorder %s28, 0
    %p307 = por %p305, %p306
    %s309 = sadd.s32 %s308, 1
    %p312 = scmp.eq.s32.totalorder %s22, 1
    %p313 = scmp.ne.s32.totalorder %s308, %s310
    %p314 = scmp.eq.s32.totalorder %s22, 0
    %p315 = por %p313, %p314
    %p316 = scmp.ne.s32.totalorder %s308, %s310
    %p317 = scmp.eq.s32.totalorder %s27, 1
    %p318 = por %p316, %p317
    %p319 = scmp.ne.s32.totalorder %s310, %s311
    %p320 = scmp.eq.s32.totalorder %s27, 0
    %p321 = por %p319, %p320
    %p322 = scmp.ne.s32.totalorder %s310, %s311
    %p323 = scmp.eq.s32.totalorder %s28, 1
    %p324 = por %p322, %p323
    %p326 = scmp.ne.s32.totalorder %s311, %s325
    %p327 = scmp.eq.s32.totalorder %s28, 0
    %p328 = por %p326, %p327
    %s330 = sadd.s32 %s329, 1
    %p333 = scmp.eq.s32.totalorder %s22, 1
    %p334 = scmp.ne.s32.totalorder %s329, %s331
    %p335 = scmp.eq.s32.totalorder %s22, 0
    %p336 = por %p334, %p335
    %p337 = scmp.ne.s32.totalorder %s329, %s331
    %p338 = scmp.eq.s32.totalorder %s27, 1
    %p339 = por %p337, %p338
    %p340 = scmp.ne.s32.totalorder %s331, %s332
    %p341 = scmp.eq.s32.totalorder %s27, 0
    %p342 = por %p340, %p341
    %p343 = scmp.ne.s32.totalorder %s331, %s332
    %p344 = scmp.eq.s32.totalorder %s28, 1
    %p345 = por %p343, %p344
    %p347 = scmp.ne.s32.totalorder %s332, %s346
    %p348 = scmp.eq.s32.totalorder %s28, 0
    %p349 = por %p347, %p348
    %s351 = sadd.s32 %s350, 1
    %p354 = scmp.eq.s32.totalorder %s22, 1
    %p355 = scmp.ne.s32.totalorder %s350, %s352
    %p356 = scmp.eq.s32.totalorder %s22, 0
    %p357 = por %p355, %p356
    %p358 = scmp.ne.s32.totalorder %s350, %s352
    %p359 = scmp.eq.s32.totalorder %s27, 1
    %p360 = por %p358, %p359
    %p361 = scmp.ne.s32.totalorder %s352, %s353
    %p362 = scmp.eq.s32.totalorder %s27, 0
    %p363 = por %p361, %p362
    %p364 = scmp.ne.s32.totalorder %s352, %s353
    %p365 = scmp.eq.s32.totalorder %s28, 1
    %p366 = por %p364, %p365
    %p368 = scmp.ne.s32.totalorder %s353, %s367
    %p369 = scmp.eq.s32.totalorder %s28, 0
    %p370 = por %p368, %p369
    %s371 = ssub.s32 %s22, %s29
    %p372 = scmp.eq.s32.totalorder %s371, 0
    %s374 = sadd.s32 %s373, 1
    %s375 = scalar_select %p372, %s373, %s374
    %p378 = pneg %p372
    %p379 = scmp.eq.s32.totalorder %s22, 1
    %p380 = por %p378, %p379
    %p381 = scmp.ne.s32.totalorder %s373, %s376
    %p382 = scmp.eq.s32.totalorder %s22, 0
    %p383 = por %p381, %p382
    %p384 = scmp.ne.s32.totalorder %s373, %s376
    %p385 = scmp.eq.s32.totalorder %s27, 1
    %p386 = por %p384, %p385
    %p387 = scmp.ne.s32.totalorder %s376, %s377
    %p388 = scmp.eq.s32.totalorder %s27, 0
    %p389 = por %p387, %p388
    %p390 = scmp.ne.s32.totalorder %s376, %s377
    %p391 = scmp.eq.s32.totalorder %s28, 1
    %p392 = por %p390, %p391
    %p394 = scmp.ne.s32.totalorder %s377, %s393
    %p395 = scmp.eq.s32.totalorder %s28, 0
    %p396 = por %p394, %p395
    %p397 = scmp.le.s32.totalorder 1, %s22
    %p398 = scmp.lt.s32.totalorder %s22, 3
    %p399 = pnand %p397, %p398
    %p400 = pneg %p399
    // Predicated region
    $region9: #{down_selfattn_interp_up.5} parent=5 // pred_check
      _
    $region10: #{down_selfattn_interp_up.5} parent=5 // pred_check_branch
      %402 = sbr.rel (%p399) target = $region12
    $region11: #{down_selfattn_interp_up.5} parent=5 // pred_region
      %s403 = ssub.s32 %s22, 1
      // Predicated region
      $region13: #{down_selfattn_interp_up.5} parent=11 // pred_check
        %p404 = pneg %p69
      $region14: #{down_selfattn_interp_up.5} parent=11 // pred_check_branch
        %406 = sbr.rel (%p404) target = $region16
      $region15: #{down_selfattn_interp_up.5} parent=11 // pred_region
        _
      $region16: #{down_selfattn_interp_up.5} parent=11 // pred_fallthru
        _
      // Predicated region
      $region17: #{down_selfattn_interp_up.5} parent=11 // pred_check
        %p407 = pneg %p90
      $region18: #{down_selfattn_interp_up.5} parent=11 // pred_check_branch
        %409 = sbr.rel (%p407) target = $region20
      $region19: #{down_selfattn_interp_up.5} parent=11 // pred_region
        _
      $region20: #{down_selfattn_interp_up.5} parent=11 // pred_fallthru
        _
      // Predicated region
      $region21: #{down_selfattn_interp_up.5} parent=11 // pred_check
        %p410 = pneg %p111
      $region22: #{down_selfattn_interp_up.5} parent=11 // pred_check_branch
        %412 = sbr.rel (%p410) target = $region24
      $region23: #{down_selfattn_interp_up.5} parent=11 // pred_region
        _
      $region24: #{down_selfattn_interp_up.5} parent=11 // pred_fallthru
        _
      // Predicated region
      $region25: #{down_selfattn_interp_up.5} parent=11 // pred_check
        %p413 = pneg %p132
      $region26: #{down_selfattn_interp_up.5} parent=11 // pred_check_branch
        %415 = sbr.rel (%p413) target = $region28
      $region27: #{down_selfattn_interp_up.5} parent=11 // pred_region
        _
      $region28: #{down_selfattn_interp_up.5} parent=11 // pred_fallthru
        _
      // Predicated region
      $region29: #{down_selfattn_interp_up.5} parent=11 // pred_check
        %p416 = pneg %p153
      $region30: #{down_selfattn_interp_up.5} parent=11 // pred_check_branch
        %418 = sbr.rel (%p416) target = $region32
      $region31: #{down_selfattn_interp_up.5} parent=11 // pred_region
        _
      $region32: #{down_selfattn_interp_up.5} parent=11 // pred_fallthru
        _
      // Predicated region
      $region33: #{down_selfattn_interp_up.5} parent=11 // pred_check
        %p419 = pneg %p174
      $region34: #{down_selfattn_interp_up.5} parent=11 // pred_check_branch
        %421 = sbr.rel (%p419) target = $region36
      $region35: #{down_selfattn_interp_up.5} parent=11 // pred_region
        _
      $region36: #{down_selfattn_interp_up.5} parent=11 // pred_fallthru
        _
      // Predicated region
      $region37: #{down_selfattn_interp_up.5} parent=11 // pred_check
        %p422 = pneg %p195
      $region38: #{down_selfattn_interp_up.5} parent=11 // pred_check_branch
        %424 = sbr.rel (%p422) target = $region40
      $region39: #{down_selfattn_interp_up.5} parent=11 // pred_region
        _
      $region40: #{down_selfattn_interp_up.5} parent=11 // pred_fallthru
        _
      // Predicated region
      $region41: #{down_selfattn_interp_up.5} parent=11 // pred_check
        %p425 = pneg %p216
      $region42: #{down_selfattn_interp_up.5} parent=11 // pred_check_branch
        %427 = sbr.rel (%p425) target = $region44
      $region43: #{down_selfattn_interp_up.5} parent=11 // pred_region
        _
      $region44: #{down_selfattn_interp_up.5} parent=11 // pred_fallthru
        _
      // Predicated region
      $region45: #{down_selfattn_interp_up.5} parent=11 // pred_check
        %p428 = pneg %p237
      $region46: #{down_selfattn_interp_up.5} parent=11 // pred_check_branch
        %430 = sbr.rel (%p428) target = $region48
      $region47: #{down_selfattn_interp_up.5} parent=11 // pred_region
        _
      $region48: #{down_selfattn_interp_up.5} parent=11 // pred_fallthru
        _
      // Predicated region
      $region49: #{down_selfattn_interp_up.5} parent=11 // pred_check
        %p431 = pneg %p258
      $region50: #{down_selfattn_interp_up.5} parent=11 // pred_check_branch
        %433 = sbr.rel (%p431) target = $region52
      $region51: #{down_selfattn_interp_up.5} parent=11 // pred_region
        _
      $region52: #{down_selfattn_interp_up.5} parent=11 // pred_fallthru
        _
      // Predicated region
      $region53: #{down_selfattn_interp_up.5} parent=11 // pred_check
        %p434 = pneg %p279
      $region54: #{down_selfattn_interp_up.5} parent=11 // pred_check_branch
        %436 = sbr.rel (%p434) target = $region56
      $region55: #{down_selfattn_interp_up.5} parent=11 // pred_region
        _
      $region56: #{down_selfattn_interp_up.5} parent=11 // pred_fallthru
        _
      // Predicated region
      $region57: #{down_selfattn_interp_up.5} parent=11 // pred_check
        %p437 = pneg %p300
      $region58: #{down_selfattn_interp_up.5} parent=11 // pred_check_branch
        %439 = sbr.rel (%p437) target = $region60
      $region59: #{down_selfattn_interp_up.5} parent=11 // pred_region
        _
      $region60: #{down_selfattn_interp_up.5} parent=11 // pred_fallthru
        _
      // Predicated region
      $region61: #{down_selfattn_interp_up.5} parent=11 // pred_check
        %p440 = pneg %p321
      $region62: #{down_selfattn_interp_up.5} parent=11 // pred_check_branch
        %442 = sbr.rel (%p440) target = $region64
      $region63: #{down_selfattn_interp_up.5} parent=11 // pred_region
        _
      $region64: #{down_selfattn_interp_up.5} parent=11 // pred_fallthru
        _
      // Predicated region
      $region65: #{down_selfattn_interp_up.5} parent=11 // pred_check
        %p443 = pneg %p342
      $region66: #{down_selfattn_interp_up.5} parent=11 // pred_check_branch
        %445 = sbr.rel (%p443) target = $region68
      $region67: #{down_selfattn_interp_up.5} parent=11 // pred_region
        _
      $region68: #{down_selfattn_interp_up.5} parent=11 // pred_fallthru
        _
      // Predicated region
      $region69: #{down_selfattn_interp_up.5} parent=11 // pred_check
        %p446 = pneg %p363
      $region70: #{down_selfattn_interp_up.5} parent=11 // pred_check_branch
        %448 = sbr.rel (%p446) target = $region72
      $region71: #{down_selfattn_interp_up.5} parent=11 // pred_region
        _
      $region72: #{down_selfattn_interp_up.5} parent=11 // pred_fallthru
        _
    $region12: #{down_selfattn_interp_up.5} parent=5 // pred_fallthru
      _
    %p449 = scmp.lt.s32.totalorder %s22, 2
    // Predicated region
    $region73: #{down_selfattn_interp_up.5} parent=5 // pred_check
      %p450 = pneg %p449
    $region74: #{down_selfattn_interp_up.5} parent=5 // pred_check_branch
      %452 = sbr.rel (%p450) target = $region76
    $region75: #{down_selfattn_interp_up.5} parent=5 // pred_region
      // Predicated region
      $region77: #{down_selfattn_interp_up.5} parent=75 // pred_check
        %p453 = pneg %p42
      $region78: #{down_selfattn_interp_up.5} parent=75 // pred_check_branch
        %455 = sbr.rel (%p453) target = $region80
      $region79: #{down_selfattn_interp_up.5} parent=75 // pred_region
        %p456 = scmp.lt.s32.totalorder %s22, 1
        %s457 = scalar_select %p456, %s22, 1
        %s458 = smul.addr %s457, 2
        %s459 = smul.addr %s458, 8
        %s460 = scalar_lea.vmem %s0, %s459
      $region80: #{down_selfattn_interp_up.5} parent=75 // pred_fallthru
        _
    $region76: #{down_selfattn_interp_up.5} parent=5 // pred_fallthru
      _
    %p461 = scmp.le.s32.totalorder 1, %s22
    %p462 = scmp.lt.s32.totalorder %s22, 3
    %p463 = pnand %p461, %p462
    %p464 = pneg %p463
    // Predicated region
    $region81: #{down_selfattn_interp_up.5} parent=5 // pred_check
      _
    $region82: #{down_selfattn_interp_up.5} parent=5 // pred_check_branch
      %466 = sbr.rel (%p463) target = $region84
    $region83: #{down_selfattn_interp_up.5} parent=5 // pred_region
      %s467 = ssub.s32 %s22, 1
      %p468 = scmp.lt.s32.totalorder %s27, 1
      %s469 = scalar_select %p468, %s27, 1
      %s470 = smul.addr %s469, 2
      %s471 = smul.addr %s470, 8
      %s472 = scalar_lea.vmem %s0, %s471
      %p473 = pneg %p48
      %p474 = pneg %p45
      %p475 = pneg %p69
      %p476 = pneg %p66
      %p477 = pneg %p90
      %p478 = pneg %p87
      %p479 = pneg %p111
      %p480 = pneg %p108
      %p481 = pneg %p132
      %p482 = pneg %p129
      %p483 = pneg %p153
      %p484 = pneg %p150
      %p485 = pneg %p174
      %p486 = pneg %p171
      %p487 = pneg %p195
      %p488 = pneg %p192
      %p489 = pneg %p216
      %p490 = pneg %p213
      %p491 = pneg %p237
      %p492 = pneg %p234
      %p493 = pneg %p258
      %p494 = pneg %p255
      %p495 = pneg %p279
      %p496 = pneg %p276
      %p497 = pneg %p300
      %p498 = pneg %p297
      %p499 = pneg %p321
      %p500 = pneg %p318
      %p501 = pneg %p342
      %p502 = pneg %p339
      %p503 = pneg %p363
      %p504 = pneg %p360
      %p505 = pneg %p389
      %p506 = pneg %p386
      %p507 = scmp.lt.s32.totalorder %s27, 1
      %s508 = scalar_select %p507, %s27, 1
      %s509 = smul.addr %s508, 5
      %s510 = smul.addr %s509, 8
      %s511 = scalar_lea.vmem %s16, %s510
      %p512 = scmp.lt.s32.totalorder %s27, 1
      %s513 = scalar_select %p512, %s27, 1
      %s514 = smul.addr %s513, 2
      %s515 = smul.addr %s514, 8
      %s516 = scalar_lea.vmem %s0, %s515
      %p517 = scmp.lt.s32.totalorder %s27, 1
      %s518 = scalar_select %p517, %s27, 1
      %s519 = smul.addr %s518, 5
      %s520 = smul.addr %s519, 8
      %s521 = scalar_lea.vmem %s16, %s520
      %v523 = vld [vmem:[%s516] sm:$0xff]
      %v524 = vld [vmem:[%s516 + $0x8] sm:$0xff]
      %v525 = vld [vmem:[%s1] sm:$0x1]
      %v527 = vlaneseq
      %v528 = vshrl.u32 %v527, 7
      %v529 = vsub.s32 0, %v528
      %v530 = vrot.slane %v525, %v529
      %v532 = vmul.f32 %v523, %v530
      %v533 = vmul.f32 %v524, %v530
      %v534 = vld [vmem:[%s2] sm:$0x1]
      %v536 = vlaneseq
      %v537 = vshrl.u32 %v536, 7
      %v538 = vsub.s32 0, %v537
      %v539 = vrot.slane %v534, %v538
      %v541 = vadd.f32 %v532, %v539
      %v542 = vadd.f32 %v533, %v539
      %v543 = vmax.f32 %v541, 0.0
      %v544 = vmax.f32 %v542, 0.0
      %v545 = vld [vmem:[%s3] sm:$0xff]
      %v546 = vld [vmem:[%s3 + $0x8] sm:$0xff]
      %v547 = vld [vmem:[%s4] sm:$0xff]
      %v548 = vld [vmem:[%s4 + $0x8] sm:$0xff]
      %vm549 = vcmask 261120
      %v550 = vsel %vm549, %v543, 0.0
      %v551 = vsel %vm549, %v544, 0.0
      %v552 = vadd.f32 %v550, %v551
      %553 = vadd.xlane.f32.xlu0 %v552
      %v554 = vpop.xlane.xlu0 %553
      %v555 = vrot.slane %v554, 4
      %v556 = vadd.f32 %v554, %v555
      %v557 = vrot.slane %v556, 2
      %v558 = vadd.f32 %v556, %v557
      %v559 = vrot.slane %v558, 1
      %v560 = vadd.f32 %v558, %v559
      %s561 = vtos %v560
      %v562 = vrcp.pop 512.0
      %s563 = vtos %v562
      %s564 = smul.f32 %s561, %s563
      %v565 = vstv %s564
      %v566 = vsub.f32 %v543, %v565
      %v567 = vsub.f32 %v544, %v565
      %v568 = vmul.f32 %v566, %v566
      %v569 = vmul.f32 %v567, %v567
      %v570 = vsel %vm549, %v568, 0.0
      %v571 = vsel %vm549, %v569, 0.0
      %v572 = vadd.f32 %v570, %v571
      %573 = vadd.xlane.f32.xlu0 %v572
      %v574 = vpop.xlane.xlu0 %573
      %v575 = vrot.slane %v574, 4
      %v576 = vadd.f32 %v574, %v575
      %v577 = vrot.slane %v576, 2
      %v578 = vadd.f32 %v576, %v577
      %v579 = vrot.slane %v578, 1
      %v580 = vadd.f32 %v578, %v579
      %s581 = vtos %v580
      %v582 = vrcp.pop 512.0
      %s583 = vtos %v582
      %s584 = smul.f32 %s581, %s583
      %s585 = sadd.f32 %s584, 1e-05
      %v586 = vstv %s585
      %v587 = vrsqrt.pop %v586
      %s588 = vtos %v587
      %v589 = vstv %s588
      %v590 = vmul.f32 %v566, %v589
      %v591 = vmul.f32 %v567, %v589
      %v592 = vmul.f32 %v590, %v545
      %v593 = vmul.f32 %v591, %v546
      %v594 = vadd.f32 %v592, %v547
      %v595 = vadd.f32 %v593, %v548
      %v596 = vpack.c.bf16 %v595, %v594
      %v597 = vld [vmem:[%s5] sm:$0xf]
      %v598 = vld [vmem:[%s5 + $0x4] sm:$0xf]
      %v599 = vld [vmem:[%s5 + $0x8] sm:$0xf]
      %v600 = vld [vmem:[%s5 + $0xc] sm:$0xf]
      %v601 = vld [vmem:[%s6] sm:$0x1]
      %v603 = vlaneseq
      %v604 = vshrl.u32 %v603, 7
      %v605 = vsub.s32 0, %v604
      %v606 = vrot.slane %v601, %v605
      %v612 = vunpack.c.l.b16 %v597
      %v613 = vunpack.c.l.b16 %v598
      %v614 = vunpack.c.l.b16 %v599
      %v615 = vunpack.c.l.b16 %v600
      %v616 = vpack.c.b16 %v613, %v612
      %v617 = vpack.c.b16 %v615, %v614
      %v621 = vsel %vm549, %v596, 0
      %623 = vmatprep.subr.bf16.mxu0 0
      %624 = vmatpush1.bf16.msra.mxu0 %v616
      %625 = vmatprep.subr.bf16.mxu0 0
      %626 = vmatpush1.bf16.msra.mxu0 %v617
      %627 = vmatprep.subr.bf16.mxu0 0
      %628 = vmatpush1.bf16.msra.mxu0 0
      %629 = vmatprep.subr.bf16.mxu0 0
      %630 = vmatpush1.bf16.msra.mxu0 0
      %631 = vmatprep.subr.bf16.mxu0 0
      %632 = vmatpush1.bf16.msra.mxu0 0
      %633 = vmatprep.subr.bf16.mxu0 0
      %634 = vmatpush1.bf16.msra.mxu0 0
      %635 = vmatprep.subr.bf16.mxu0 0
      %636 = vmatpush1.bf16.msra.mxu0 0
      %637 = vmatprep.subr.bf16.mxu0 0
      %638 = vmatpush1.bf16.msra.mxu0 0
      %639 = vmatprep.subr.bf16.mxu0 0
      %640 = vmatpush1.bf16.msra.mxu0 0
      %641 = vmatprep.subr.bf16.mxu0 0
      %642 = vmatpush1.bf16.msra.mxu0 0
      %643 = vmatprep.subr.bf16.mxu0 0
      %644 = vmatpush1.bf16.msra.mxu0 0
      %645 = vmatprep.subr.bf16.mxu0 0
      %646 = vmatpush1.bf16.msra.mxu0 0
      %647 = vmatprep.subr.bf16.mxu0 0
      %648 = vmatpush1.bf16.msra.mxu0 0
      %649 = vmatprep.subr.bf16.mxu0 0
      %650 = vmatpush1.bf16.msra.mxu0 0
      %651 = vmatprep.subr.bf16.mxu0 0
      %652 = vmatpush1.bf16.msra.mxu0 0
      %653 = vmatprep.subr.bf16.mxu0 0
      %654 = vmatpush1.bf16.msra.mxu0 0
      %655 = vmatprep.mubr.bf16.mxu0 0
      %656 = vmatmul.mubr.bf16.gmra.mrb[0].mxu0 %v621
      %v657 = vpop.f32.mrb[0].mxu0
      %v658 = vadd.f32 %v606, %v657
      %v659 = vpop.f32.mrb[0].mxu0
      %v660 = vpop.f32.mrb[0].mxu0
      %v661 = vadd.f32 %v606, %v660
      %v662 = vpop.f32.mrb[0].mxu0
      %663 = vdwg.mxu0
      %v664 = vld [vmem:[%s8] sm:$0x1]
      %v665 = vmul.f32 %v658, 0.35355338
      %v666 = vmul.f32 %v661, 0.35355338
      %v667 = vpack.c.bf16 %v666, %v665
      %v668 = vpack.c.bf16 %v661, %v658
      %670 = vrot.lane.b32.xlu0 %v668, 96
      %v671 = vpop.permute.xlu0 %670
      %vm672 = vcmask 64512
      %v674 = vsel %vm672, %v667, 0
      %v677 = vsel %vm672, %v671, 0
      %679 = vmatprep.subr.bf16.mxu0 0
      %680 = vmatpush1.bf16.xpose.msra.mxu0 %v677
      %681 = vmatprep.subr.bf16.mxu0 0
      %682 = vmatpush1.bf16.xpose.msra.mxu0 0
      %683 = vmatprep.subr.bf16.mxu0 0
      %684 = vmatpush1.bf16.xpose.msra.mxu0 0
      %685 = vmatprep.subr.bf16.mxu0 0
      %686 = vmatpush1.bf16.xpose.msra.mxu0 0
      %687 = vmatprep.subr.bf16.mxu0 0
      %688 = vmatpush1.bf16.xpose.msra.mxu0 0
      %689 = vmatprep.subr.bf16.mxu0 0
      %690 = vmatpush1.bf16.xpose.msra.mxu0 0
      %691 = vmatprep.subr.bf16.mxu0 0
      %692 = vmatpush1.bf16.xpose.msra.mxu0 0
      %693 = vmatprep.subr.bf16.mxu0 0
      %694 = vmatpush1.bf16.xpose.msra.mxu0 0
      %695 = vmatprep.subr.bf16.mxu0 0
      %696 = vmatpush1.bf16.xpose.msra.mxu0 0
      %697 = vmatprep.subr.bf16.mxu0 0
      %698 = vmatpush1.bf16.xpose.msra.mxu0 0
      %699 = vmatprep.subr.bf16.mxu0 0
      %700 = vmatpush1.bf16.xpose.msra.mxu0 0
      %701 = vmatprep.subr.bf16.mxu0 0
      %702 = vmatpush1.bf16.xpose.msra.mxu0 0
      %703 = vmatprep.subr.bf16.mxu0 0
      %704 = vmatpush1.bf16.xpose.msra.mxu0 0
      %705 = vmatprep.subr.bf16.mxu0 0
      %706 = vmatpush1.bf16.xpose.msra.mxu0 0
      %707 = vmatprep.subr.bf16.mxu0 0
      %708 = vmatpush1.bf16.xpose.msra.mxu0 0
      %709 = vmatprep.subr.bf16.mxu0 0
      %710 = vmatpush1.bf16.xpose.msra.mxu0 0
      %711 = vmatprep.mubr.bf16.mxu0 0
      %712 = vmatmul.mubr.bf16.gmra.mrb[0].mxu0 %v674
      %v713 = vpop.f32.mrb[0].mxu0
      %v714 = vadd.f32 0.0, %v713
      %v715 = vpop.f32.mrb[0].mxu0
      %v716 = vpop.f32.mrb[0].mxu0
      %v717 = vadd.f32 0.0, %v716
      %v718 = vpop.f32.mrb[0].mxu0
      %719 = vdwg.mxu0
      %vm720 = vcmask 130048
      %v721 = vsel %vm720, %v714, -inf
      %722 = vmax.xlane.f32.xlu0 %v721
      %v723 = vpop.xlane.xlu0 %722
      %v724 = vsel %vm720, %v717, -inf
      %725 = vmax.xlane.f32.xlu0 %v724
      %v726 = vpop.xlane.xlu0 %725
      %v727 = vsub.f32 %v714, %v723
      %v728 = vsub.f32 %v717, %v726
      %v729 = vmul.f32 %v727, 1.442695
      %v730 = vpow.pop %v729
      %v731 = vmul.f32 %v728, 1.442695
      %v732 = vpow.pop %v731
      %v733 = vsel %vm720, %v730, 0.0
      %734 = vadd.xlane.f32.xlu0 %v733
      %v735 = vpop.xlane.xlu0 %734
      %v736 = vsel %vm720, %v732, 0.0
      %737 = vadd.xlane.f32.xlu0 %v736
      %v738 = vpop.xlane.xlu0 %737
      %v739 = vrcp.pop %v735
      %v740 = vrcp.pop %v738
      %v741 = vmul.f32 %v730, %v739
      %v742 = vmul.f32 %v732, %v740
      %v743 = vpack.c.bf16 %v742, %v741
      %744 = vrot.lane.b32.xlu0 %v668, 64
      %v745 = vpop.permute.xlu0 %744
      %v748 = vsel %vm720, %v743, 0
      %750 = vmatprep.subr.bf16.mxu0 0
      %751 = vmatpush1.bf16.msra.mxu0 %v745
      %752 = vmatprep.subr.bf16.mxu0 0
      %753 = vmatpush1.bf16.msra.mxu0 0
      %754 = vmatprep.subr.bf16.mxu0 0
      %755 = vmatpush1.bf16.msra.mxu0 0
      %756 = vmatprep.subr.bf16.mxu0 0
      %757 = vmatpush1.bf16.msra.mxu0 0
      %758 = vmatprep.subr.bf16.mxu0 0
      %759 = vmatpush1.bf16.msra.mxu0 0
      %760 = vmatprep.subr.bf16.mxu0 0
      %761 = vmatpush1.bf16.msra.mxu0 0
      %762 = vmatprep.subr.bf16.mxu0 0
      %763 = vmatpush1.bf16.msra.mxu0 0
      %764 = vmatprep.subr.bf16.mxu0 0
      %765 = vmatpush1.bf16.msra.mxu0 0
      %766 = vmatprep.subr.bf16.mxu0 0
      %767 = vmatpush1.bf16.msra.mxu0 0
      %768 = vmatprep.subr.bf16.mxu0 0
      %769 = vmatpush1.bf16.msra.mxu0 0
      %770 = vmatprep.subr.bf16.mxu0 0
      %771 = vmatpush1.bf16.msra.mxu0 0
      %772 = vmatprep.subr.bf16.mxu0 0
      %773 = vmatpush1.bf16.msra.mxu0 0
      %774 = vmatprep.subr.bf16.mxu0 0
      %775 = vmatpush1.bf16.msra.mxu0 0
      %776 = vmatprep.subr.bf16.mxu0 0
      %777 = vmatpush1.bf16.msra.mxu0 0
      %778 = vmatprep.subr.bf16.mxu0 0
      %779 = vmatpush1.bf16.msra.mxu0 0
      %780 = vmatprep.subr.bf16.mxu0 0
      %781 = vmatpush1.bf16.msra.mxu0 0
      %782 = vmatprep.mubr.bf16.mxu0 0
      %783 = vmatmul.mubr.bf16.gmra.mrb[0].mxu0 %v748
      %v784 = vpop.f32.mrb[0].mxu0
      %v785 = vadd.f32 0.0, %v784
      %v786 = vpop.f32.mrb[0].mxu0
      %v787 = vpop.f32.mrb[0].mxu0
      %v788 = vadd.f32 0.0, %v787
      %v789 = vpop.f32.mrb[0].mxu0
      %790 = vdwg.mxu0
      %v791 = vpack.c.bf16 %v788, %v785
      %v792 = vld [vmem:[%s7] sm:$0xf]
      %v794 = vsel %vm672, %v791, 0
      %vm796 = vcmask 1043456
      %v798 = vsel %vm796, %v792, 0
      %800 = vmatprep.subr.bf16.mxu0 0
      %801 = vmatpush1.bf16.msra.mxu0 %v798
      %802 = vmatprep.subr.bf16.mxu0 0
      %803 = vmatpush1.bf16.msra.mxu0 0
      %804 = vmatprep.subr.bf16.mxu0 0
      %805 = vmatpush1.bf16.msra.mxu0 0
      %806 = vmatprep.subr.bf16.mxu0 0
      %807 = vmatpush1.bf16.msra.mxu0 0
      %808 = vmatprep.subr.bf16.mxu0 0
      %809 = vmatpush1.bf16.msra.mxu0 0
      %810 = vmatprep.subr.bf16.mxu0 0
      %811 = vmatpush1.bf16.msra.mxu0 0
      %812 = vmatprep.subr.bf16.mxu0 0
      %813 = vmatpush1.bf16.msra.mxu0 0
      %814 = vmatprep.subr.bf16.mxu0 0
      %815 = vmatpush1.bf16.msra.mxu0 0
      %816 = vmatprep.subr.bf16.mxu0 0
      %817 = vmatpush1.bf16.msra.mxu0 0
      %818 = vmatprep.subr.bf16.mxu0 0
      %819 = vmatpush1.bf16.msra.mxu0 0
      %820 = vmatprep.subr.bf16.mxu0 0
      %821 = vmatpush1.bf16.msra.mxu0 0
      %822 = vmatprep.subr.bf16.mxu0 0
      %823 = vmatpush1.bf16.msra.mxu0 0
      %824 = vmatprep.subr.bf16.mxu0 0
      %825 = vmatpush1.bf16.msra.mxu0 0
      %826 = vmatprep.subr.bf16.mxu0 0
      %827 = vmatpush1.bf16.msra.mxu0 0
      %828 = vmatprep.subr.bf16.mxu0 0
      %829 = vmatpush1.bf16.msra.mxu0 0
      %830 = vmatprep.subr.bf16.mxu0 0
      %831 = vmatpush1.bf16.msra.mxu0 0
      %832 = vmatprep.mubr.bf16.mxu0 0
      %833 = vmatmul.mubr.bf16.gmra.mrb[0].mxu0 %v794
      %v834 = vpop.f32.mrb[0].mxu0
      %v835 = vadd.f32 0.0, %v834
      %v836 = vpop.f32.mrb[0].mxu0
      %v837 = vpop.f32.mrb[0].mxu0
      %v838 = vadd.f32 0.0, %v837
      %v839 = vpop.f32.mrb[0].mxu0
      %840 = vdwg.mxu0
      %v842 = vlaneseq
      %v843 = vshrl.u32 %v842, 7
      %v844 = vsub.s32 0, %v843
      %v845 = vrot.slane %v664, %v844
      %v847 = vadd.f32 %v845, %v835
      %v848 = vadd.f32 %v845, %v838
      %850 = vrot.lane.b32.xlu0 %v667, 120
      %v851 = vpop.permute.xlu0 %850
      %852 = vrot.lane.b32.xlu0 %v668, 88
      %v853 = vpop.permute.xlu0 %852
      %v855 = vsel %vm672, %v851, 0
      %v858 = vsel %vm672, %v853, 0
      %860 = vmatprep.subr.bf16.mxu0 0
      %861 = vmatpush1.bf16.xpose.msra.mxu0 %v858
      %862 = vmatprep.subr.bf16.mxu0 0
      %863 = vmatpush1.bf16.xpose.msra.mxu0 0
      %864 = vmatprep.subr.bf16.mxu0 0
      %865 = vmatpush1.bf16.xpose.msra.mxu0 0
      %866 = vmatprep.subr.bf16.mxu0 0
      %867 = vmatpush1.bf16.xpose.msra.mxu0 0
      %868 = vmatprep.subr.bf16.mxu0 0
      %869 = vmatpush1.bf16.xpose.msra.mxu0 0
      %870 = vmatprep.subr.bf16.mxu0 0
      %871 = vmatpush1.bf16.xpose.msra.mxu0 0
      %872 = vmatprep.subr.bf16.mxu0 0
      %873 = vmatpush1.bf16.xpose.msra.mxu0 0
      %874 = vmatprep.subr.bf16.mxu0 0
      %875 = vmatpush1.bf16.xpose.msra.mxu0 0
      %876 = vmatprep.subr.bf16.mxu0 0
      %877 = vmatpush1.bf16.xpose.msra.mxu0 0
      %878 = vmatprep.subr.bf16.mxu0 0
      %879 = vmatpush1.bf16.xpose.msra.mxu0 0
      %880 = vmatprep.subr.bf16.mxu0 0
      %881 = vmatpush1.bf16.xpose.msra.mxu0 0
      %882 = vmatprep.subr.bf16.mxu0 0
      %883 = vmatpush1.bf16.xpose.msra.mxu0 0
      %884 = vmatprep.subr.bf16.mxu0 0
      %885 = vmatpush1.bf16.xpose.msra.mxu0 0
      %886 = vmatprep.subr.bf16.mxu0 0
      %887 = vmatpush1.bf16.xpose.msra.mxu0 0
      %888 = vmatprep.subr.bf16.mxu0 0
      %889 = vmatpush1.bf16.xpose.msra.mxu0 0
      %890 = vmatprep.subr.bf16.mxu0 0
      %891 = vmatpush1.bf16.xpose.msra.mxu0 0
      %892 = vmatprep.mubr.bf16.mxu0 0
      %893 = vmatmul.mubr.bf16.gmra.mrb[0].mxu0 %v855
      %v894 = vpop.f32.mrb[0].mxu0
      %v895 = vadd.f32 0.0, %v894
      %v896 = vpop.f32.mrb[0].mxu0
      %v897 = vpop.f32.mrb[0].mxu0
      %v898 = vadd.f32 0.0, %v897
      %v899 = vpop.f32.mrb[0].mxu0
      %900 = vdwg.mxu0
      %v901 = vsel %vm720, %v895, -inf
      %902 = vmax.xlane.f32.xlu0 %v901
      %v903 = vpop.xlane.xlu0 %902
      %v904 = vsel %vm720, %v898, -inf
      %905 = vmax.xlane.f32.xlu0 %v904
      %v906 = vpop.xlane.xlu0 %905
      %v907 = vsub.f32 %v895, %v903
      %v908 = vsub.f32 %v898, %v906
      %v909 = vmul.f32 %v907, 1.442695
      %v910 = vpow.pop %v909
      %v911 = vmul.f32 %v908, 1.442695
      %v912 = vpow.pop %v911
      %v913 = vsel %vm720, %v910, 0.0
      %914 = vadd.xlane.f32.xlu0 %v913
      %v915 = vpop.xlane.xlu0 %914
      %v916 = vsel %vm720, %v912, 0.0
      %917 = vadd.xlane.f32.xlu0 %v916
      %v918 = vpop.xlane.xlu0 %917
      %v919 = vrcp.pop %v915
      %v920 = vrcp.pop %v918
      %v921 = vmul.f32 %v910, %v919
      %v922 = vmul.f32 %v912, %v920
      %v923 = vpack.c.bf16 %v922, %v921
      %924 = vrot.lane.b32.xlu0 %v668, 56
      %v925 = vpop.permute.xlu0 %924
      %v928 = vsel %vm720, %v923, 0
      %930 = vmatprep.subr.bf16.mxu0 0
      %931 = vmatpush1.bf16.msra.mxu0 %v925
      %932 = vmatprep.subr.bf16.mxu0 0
      %933 = vmatpush1.bf16.msra.mxu0 0
      %934 = vmatprep.subr.bf16.mxu0 0
      %935 = vmatpush1.bf16.msra.mxu0 0
      %936 = vmatprep.subr.bf16.mxu0 0
      %937 = vmatpush1.bf16.msra.mxu0 0
      %938 = vmatprep.subr.bf16.mxu0 0
      %939 = vmatpush1.bf16.msra.mxu0 0
      %940 = vmatprep.subr.bf16.mxu0 0
      %941 = vmatpush1.bf16.msra.mxu0 0
      %942 = vmatprep.subr.bf16.mxu0 0
      %943 = vmatpush1.bf16.msra.mxu0 0
      %944 = vmatprep.subr.bf16.mxu0 0
      %945 = vmatpush1.bf16.msra.mxu0 0
      %946 = vmatprep.subr.bf16.mxu0 0
      %947 = vmatpush1.bf16.msra.mxu0 0
      %948 = vmatprep.subr.bf16.mxu0 0
      %949 = vmatpush1.bf16.msra.mxu0 0
      %950 = vmatprep.subr.bf16.mxu0 0
      %951 = vmatpush1.bf16.msra.mxu0 0
      %952 = vmatprep.subr.bf16.mxu0 0
      %953 = vmatpush1.bf16.msra.mxu0 0
      %954 = vmatprep.subr.bf16.mxu0 0
      %955 = vmatpush1.bf16.msra.mxu0 0
      %956 = vmatprep.subr.bf16.mxu0 0
      %957 = vmatpush1.bf16.msra.mxu0 0
      %958 = vmatprep.subr.bf16.mxu0 0
      %959 = vmatpush1.bf16.msra.mxu0 0
      %960 = vmatprep.subr.bf16.mxu0 0
      %961 = vmatpush1.bf16.msra.mxu0 0
      %962 = vmatprep.mubr.bf16.mxu0 0
      %963 = vmatmul.mubr.bf16.gmra.mrb[0].mxu0 %v928
      %v964 = vpop.f32.mrb[0].mxu0
      %v965 = vadd.f32 0.0, %v964
      %v966 = vpop.f32.mrb[0].mxu0
      %v967 = vpop.f32.mrb[0].mxu0
      %v968 = vadd.f32 0.0, %v967
      %v969 = vpop.f32.mrb[0].mxu0
      %970 = vdwg.mxu0
      %v971 = vpack.c.bf16 %v968, %v965
      %v972 = vld [vmem:[%s7 + $0x4] sm:$0xf]
      %v974 = vsel %vm672, %v971, 0
      %v977 = vsel %vm796, %v972, 0
      %979 = vmatprep.subr.bf16.mxu0 0
      %980 = vmatpush1.bf16.msra.mxu0 %v977
      %981 = vmatprep.subr.bf16.mxu0 0
      %982 = vmatpush1.bf16.msra.mxu0 0
      %983 = vmatprep.subr.bf16.mxu0 0
      %984 = vmatpush1.bf16.msra.mxu0 0
      %985 = vmatprep.subr.bf16.mxu0 0
      %986 = vmatpush1.bf16.msra.mxu0 0
      %987 = vmatprep.subr.bf16.mxu0 0
      %988 = vmatpush1.bf16.msra.mxu0 0
      %989 = vmatprep.subr.bf16.mxu0 0
      %990 = vmatpush1.bf16.msra.mxu0 0
      %991 = vmatprep.subr.bf16.mxu0 0
      %992 = vmatpush1.bf16.msra.mxu0 0
      %993 = vmatprep.subr.bf16.mxu0 0
      %994 = vmatpush1.bf16.msra.mxu0 0
      %995 = vmatprep.subr.bf16.mxu0 0
      %996 = vmatpush1.bf16.msra.mxu0 0
      %997 = vmatprep.subr.bf16.mxu0 0
      %998 = vmatpush1.bf16.msra.mxu0 0
      %999 = vmatprep.subr.bf16.mxu0 0
      %1000 = vmatpush1.bf16.msra.mxu0 0
      %1001 = vmatprep.subr.bf16.mxu0 0
      %1002 = vmatpush1.bf16.msra.mxu0 0
      %1003 = vmatprep.subr.bf16.mxu0 0
      %1004 = vmatpush1.bf16.msra.mxu0 0
      %1005 = vmatprep.subr.bf16.mxu0 0
      %1006 = vmatpush1.bf16.msra.mxu0 0
      %1007 = vmatprep.subr.bf16.mxu0 0
      %1008 = vmatpush1.bf16.msra.mxu0 0
      %1009 = vmatprep.subr.bf16.mxu0 0
      %1010 = vmatpush1.bf16.msra.mxu0 0
      %1011 = vmatprep.mubr.bf16.mxu0 0
      %1012 = vmatmul.mubr.bf16.gmra.mrb[0].mxu0 %v974
      %v1013 = vpop.f32.mrb[0].mxu0
      %v1014 = vadd.f32 0.0, %v1013
      %v1015 = vpop.f32.mrb[0].mxu0
      %v1016 = vpop.f32.mrb[0].mxu0
      %v1017 = vadd.f32 0.0, %v1016
      %v1018 = vpop.f32.mrb[0].mxu0
      %1019 = vdwg.mxu0
      %v1020 = vadd.f32 %v847, %v1014
      %v1021 = vadd.f32 %v848, %v1017
      %1022 = vrot.lane.b32.xlu0 %v667, 112
      %v1023 = vpop.permute.xlu0 %1022
      %1024 = vrot.lane.b32.xlu0 %v668, 80
      %v1025 = vpop.permute.xlu0 %1024
      %v1027 = vsel %vm672, %v1023, 0
      %v1030 = vsel %vm672, %v1025, 0
      %1032 = vmatprep.subr.bf16.mxu0 0
      %1033 = vmatpush1.bf16.xpose.msra.mxu0 %v1030
      %1034 = vmatprep.subr.bf16.mxu0 0
      %1035 = vmatpush1.bf16.xpose.msra.mxu0 0
      %1036 = vmatprep.subr.bf16.mxu0 0
      %1037 = vmatpush1.bf16.xpose.msra.mxu0 0
      %1038 = vmatprep.subr.bf16.mxu0 0
      %1039 = vmatpush1.bf16.xpose.msra.mxu0 0
      %1040 = vmatprep.subr.bf16.mxu0 0
      %1041 = vmatpush1.bf16.xpose.msra.mxu0 0
      %1042 = vmatprep.subr.bf16.mxu0 0
      %1043 = vmatpush1.bf16.xpose.msra.mxu0 0
      %1044 = vmatprep.subr.bf16.mxu0 0
      %1045 = vmatpush1.bf16.xpose.msra.mxu0 0
      %1046 = vmatprep.subr.bf16.mxu0 0
      %1047 = vmatpush1.bf16.xpose.msra.mxu0 0
      %1048 = vmatprep.subr.bf16.mxu0 0
      %1049 = vmatpush1.bf16.xpose.msra.mxu0 0
      %1050 = vmatprep.subr.bf16.mxu0 0
      %1051 = vmatpush1.bf16.xpose.msra.mxu0 0
      %1052 = vmatprep.subr.bf16.mxu0 0
      %1053 = vmatpush1.bf16.xpose.msra.mxu0 0
      %1054 = vmatprep.subr.bf16.mxu0 0
      %1055 = vmatpush1.bf16.xpose.msra.mxu0 0
      %1056 = vmatprep.subr.bf16.mxu0 0
      %1057 = vmatpush1.bf16.xpose.msra.mxu0 0
      %1058 = vmatprep.subr.bf16.mxu0 0
      %1059 = vmatpush1.bf16.xpose.msra.mxu0 0
      %1060 = vmatprep.subr.bf16.mxu0 0
      %1061 = vmatpush1.bf16.xpose.msra.mxu0 0
      %1062 = vmatprep.subr.bf16.mxu0 0
      %1063 = vmatpush1.bf16.xpose.msra.mxu0 0
      %1064 = vmatprep.mubr.bf16.mxu0 0
      %1065 = vmatmul.mubr.bf16.gmra.mrb[0].mxu0 %v1027
      %v1066 = vpop.f32.mrb[0].mxu0
      %v1067 = vadd.f32 0.0, %v1066
      %v1068 = vpop.f32.mrb[0].mxu0
      %v1069 = vpop.f32.mrb[0].mxu0
      %v1070 = vadd.f32 0.0, %v1069
      %v1071 = vpop.f32.mrb[0].mxu0
      %1072 = vdwg.mxu0
      %v1073 = vsel %vm720, %v1067, -inf
      %1074 = vmax.xlane.f32.xlu0 %v1073
      %v1075 = vpop.xlane.xlu0 %1074
      %v1076 = vsel %vm720, %v1070, -inf
      %1077 = vmax.xlane.f32.xlu0 %v1076
      %v1078 = vpop.xlane.xlu0 %1077
      %v1079 = vsub.f32 %v1067, %v1075
      %v1080 = vsub.f32 %v1070, %v1078
      %v1081 = vmul.f32 %v1079, 1.442695
      %v1082 = vpow.pop %v1081
      %v1083 = vmul.f32 %v1080, 1.442695
      %v1084 = vpow.pop %v1083
      %v1085 = vsel %vm720, %v1082, 0.0
      %1086 = vadd.xlane.f32.xlu0 %v1085
      %v1087 = vpop.xlane.xlu0 %1086
      %v1088 = vsel %vm720, %v1084, 0.0
      %1089 = vadd.xlane.f32.xlu0 %v1088
      %v1090 = vpop.xlane.xlu0 %1089
      %v1091 = vrcp.pop %v1087
      %v1092 = vrcp.pop %v1090
      %v1093 = vmul.f32 %v1082, %v1091
      %v1094 = vmul.f32 %v1084, %v1092
      %v1095 = vpack.c.bf16 %v1094, %v1093
      %1096 = vrot.lane.b32.xlu0 %v668, 48
      %v1097 = vpop.permute.xlu0 %1096
      %v1100 = vsel %vm720, %v1095, 0
      %1102 = vmatprep.subr.bf16.mxu0 0
      %1103 = vmatpush1.bf16.msra.mxu0 %v1097
      %1104 = vmatprep.subr.bf16.mxu0 0
      %1105 = vmatpush1.bf16.msra.mxu0 0
      %1106 = vmatprep.subr.bf16.mxu0 0
      %1107 = vmatpush1.bf16.msra.mxu0 0
      %1108 = vmatprep.subr.bf16.mxu0 0
      %1109 = vmatpush1.bf16.msra.mxu0 0
      %1110 = vmatprep.subr.bf16.mxu0 0
      %1111 = vmatpush1.bf16.msra.mxu0 0
      %1112 = vmatprep.subr.bf16.mxu0 0
      %1113 = vmatpush1.bf16.msra.mxu0 0
      %1114 = vmatprep.subr.bf16.mxu0 0
      %1115 = vmatpush1.bf16.msra.mxu0 0
      %1116 = vmatprep.subr.bf16.mxu0 0
      %1117 = vmatpush1.bf16.msra.mxu0 0
      %1118 = vmatprep.subr.bf16.mxu0 0
      %1119 = vmatpush1.bf16.msra.mxu0 0
      %1120 = vmatprep.subr.bf16.mxu0 0
      %1121 = vmatpush1.bf16.msra.mxu0 0
      %1122 = vmatprep.subr.bf16.mxu0 0
      %1123 = vmatpush1.bf16.msra.mxu0 0
      %1124 = vmatprep.subr.bf16.mxu0 0
      %1125 = vmatpush1.bf16.msra.mxu0 0
      %1126 = vmatprep.subr.bf16.mxu0 0
      %1127 = vmatpush1.bf16.msra.mxu0 0
      %1128 = vmatprep.subr.bf16.mxu0 0
      %1129 = vmatpush1.bf16.msra.mxu0 0
      %1130 = vmatprep.subr.bf16.mxu0 0
      %1131 = vmatpush1.bf16.msra.mxu0 0
      %1132 = vmatprep.subr.bf16.mxu0 0
      %1133 = vmatpush1.bf16.msra.mxu0 0
      %1134 = vmatprep.mubr.bf16.mxu0 0
      %1135 = vmatmul.mubr.bf16.gmra.mrb[0].mxu0 %v1100
      %v1136 = vpop.f32.mrb[0].mxu0
      %v1137 = vadd.f32 0.0, %v1136
      %v1138 = vpop.f32.mrb[0].mxu0
      %v1139 = vpop.f32.mrb[0].mxu0
      %v1140 = vadd.f32 0.0, %v1139
      %v1141 = vpop.f32.mrb[0].mxu0
      %1142 = vdwg.mxu0
      %v1143 = vpack.c.bf16 %v1140, %v1137
      %v1144 = vld [vmem:[%s7 + $0x8] sm:$0xf]
      %v1146 = vsel %vm672, %v1143, 0
      %v1149 = vsel %vm796, %v1144, 0
      %1151 = vmatprep.subr.bf16.mxu0 0
      %1152 = vmatpush1.bf16.msra.mxu0 %v1149
      %1153 = vmatprep.subr.bf16.mxu0 0
      %1154 = vmatpush1.bf16.msra.mxu0 0
      %1155 = vmatprep.subr.bf16.mxu0 0
      %1156 = vmatpush1.bf16.msra.mxu0 0
      %1157 = vmatprep.subr.bf16.mxu0 0
      %1158 = vmatpush1.bf16.msra.mxu0 0
      %1159 = vmatprep.subr.bf16.mxu0 0
      %1160 = vmatpush1.bf16.msra.mxu0 0
      %1161 = vmatprep.subr.bf16.mxu0 0
      %1162 = vmatpush1.bf16.msra.mxu0 0
      %1163 = vmatprep.subr.bf16.mxu0 0
      %1164 = vmatpush1.bf16.msra.mxu0 0
      %1165 = vmatprep.subr.bf16.mxu0 0
      %1166 = vmatpush1.bf16.msra.mxu0 0
      %1167 = vmatprep.subr.bf16.mxu0 0
      %1168 = vmatpush1.bf16.msra.mxu0 0
      %1169 = vmatprep.subr.bf16.mxu0 0
      %1170 = vmatpush1.bf16.msra.mxu0 0
      %1171 = vmatprep.subr.bf16.mxu0 0
      %1172 = vmatpush1.bf16.msra.mxu0 0
      %1173 = vmatprep.subr.bf16.mxu0 0
      %1174 = vmatpush1.bf16.msra.mxu0 0
      %1175 = vmatprep.subr.bf16.mxu0 0
      %1176 = vmatpush1.bf16.msra.mxu0 0
      %1177 = vmatprep.subr.bf16.mxu0 0
      %1178 = vmatpush1.bf16.msra.mxu0 0
      %1179 = vmatprep.subr.bf16.mxu0 0
      %1180 = vmatpush1.bf16.msra.mxu0 0
      %1181 = vmatprep.subr.bf16.mxu0 0
      %1182 = vmatpush1.bf16.msra.mxu0 0
      %1183 = vmatprep.mubr.bf16.mxu0 0
      %1184 = vmatmul.mubr.bf16.gmra.mrb[0].mxu0 %v1146
      %v1185 = vpop.f32.mrb[0].mxu0
      %v1186 = vadd.f32 0.0, %v1185
      %v1187 = vpop.f32.mrb[0].mxu0
      %v1188 = vpop.f32.mrb[0].mxu0
      %v1189 = vadd.f32 0.0, %v1188
      %v1190 = vpop.f32.mrb[0].mxu0
      %1191 = vdwg.mxu0
      %v1192 = vadd.f32 %v1020, %v1186
      %v1193 = vadd.f32 %v1021, %v1189
      %1194 = vrot.lane.b32.xlu0 %v667, 104
      %v1195 = vpop.permute.xlu0 %1194
      %1196 = vrot.lane.b32.xlu0 %v668, 72
      %v1197 = vpop.permute.xlu0 %1196
      %v1199 = vsel %vm672, %v1195, 0
      %v1202 = vsel %vm672, %v1197, 0
      %1204 = vmatprep.subr.bf16.mxu0 0
      %1205 = vmatpush1.bf16.xpose.msra.mxu0 %v1202
      %1206 = vmatprep.subr.bf16.mxu0 0
      %1207 = vmatpush1.bf16.xpose.msra.mxu0 0
      %1208 = vmatprep.subr.bf16.mxu0 0
      %1209 = vmatpush1.bf16.xpose.msra.mxu0 0
      %1210 = vmatprep.subr.bf16.mxu0 0
      %1211 = vmatpush1.bf16.xpose.msra.mxu0 0
      %1212 = vmatprep.subr.bf16.mxu0 0
      %1213 = vmatpush1.bf16.xpose.msra.mxu0 0
      %1214 = vmatprep.subr.bf16.mxu0 0
      %1215 = vmatpush1.bf16.xpose.msra.mxu0 0
      %1216 = vmatprep.subr.bf16.mxu0 0
      %1217 = vmatpush1.bf16.xpose.msra.mxu0 0
      %1218 = vmatprep.subr.bf16.mxu0 0
      %1219 = vmatpush1.bf16.xpose.msra.mxu0 0
      %1220 = vmatprep.subr.bf16.mxu0 0
      %1221 = vmatpush1.bf16.xpose.msra.mxu0 0
      %1222 = vmatprep.subr.bf16.mxu0 0
      %1223 = vmatpush1.bf16.xpose.msra.mxu0 0
      %1224 = vmatprep.subr.bf16.mxu0 0
      %1225 = vmatpush1.bf16.xpose.msra.mxu0 0
      %1226 = vmatprep.subr.bf16.mxu0 0
      %1227 = vmatpush1.bf16.xpose.msra.mxu0 0
      %1228 = vmatprep.subr.bf16.mxu0 0
      %1229 = vmatpush1.bf16.xpose.msra.mxu0 0
      %1230 = vmatprep.subr.bf16.mxu0 0
      %1231 = vmatpush1.bf16.xpose.msra.mxu0 0
      %1232 = vmatprep.subr.bf16.mxu0 0
      %1233 = vmatpush1.bf16.xpose.msra.mxu0 0
      %1234 = vmatprep.subr.bf16.mxu0 0
      %1235 = vmatpush1.bf16.xpose.msra.mxu0 0
      %1236 = vmatprep.mubr.bf16.mxu0 0
      %1237 = vmatmul.mubr.bf16.gmra.mrb[0].mxu0 %v1199
      %v1238 = vpop.f32.mrb[0].mxu0
      %v1239 = vadd.f32 0.0, %v1238
      %v1240 = vpop.f32.mrb[0].mxu0
      %v1241 = vpop.f32.mrb[0].mxu0
      %v1242 = vadd.f32 0.0, %v1241
      %v1243 = vpop.f32.mrb[0].mxu0
      %1244 = vdwg.mxu0
      %v1245 = vsel %vm720, %v1239, -inf
      %1246 = vmax.xlane.f32.xlu0 %v1245
      %v1247 = vpop.xlane.xlu0 %1246
      %v1248 = vsel %vm720, %v1242, -inf
      %1249 = vmax.xlane.f32.xlu0 %v1248
      %v1250 = vpop.xlane.xlu0 %1249
      %v1251 = vsub.f32 %v1239, %v1247
      %v1252 = vsub.f32 %v1242, %v1250
      %v1253 = vmul.f32 %v1251, 1.442695
      %v1254 = vpow.pop %v1253
      %v1255 = vmul.f32 %v1252, 1.442695
      %v1256 = vpow.pop %v1255
      %v1257 = vsel %vm720, %v1254, 0.0
      %1258 = vadd.xlane.f32.xlu0 %v1257
      %v1259 = vpop.xlane.xlu0 %1258
      %v1260 = vsel %vm720, %v1256, 0.0
      %1261 = vadd.xlane.f32.xlu0 %v1260
      %v1262 = vpop.xlane.xlu0 %1261
      %v1263 = vrcp.pop %v1259
      %v1264 = vrcp.pop %v1262
      %v1265 = vmul.f32 %v1254, %v1263
      %v1266 = vmul.f32 %v1256, %v1264
      %v1267 = vpack.c.bf16 %v1266, %v1265
      %1268 = vrot.lane.b32.xlu0 %v668, 40
      %v1269 = vpop.permute.xlu0 %1268
      %v1272 = vsel %vm720, %v1267, 0
      %1274 = vmatprep.subr.bf16.mxu0 0
      %1275 = vmatpush1.bf16.msra.mxu0 %v1269
      %1276 = vmatprep.subr.bf16.mxu0 0
      %1277 = vmatpush1.bf16.msra.mxu0 0
      %1278 = vmatprep.subr.bf16.mxu0 0
      %1279 = vmatpush1.bf16.msra.mxu0 0
      %1280 = vmatprep.subr.bf16.mxu0 0
      %1281 = vmatpush1.bf16.msra.mxu0 0
      %1282 = vmatprep.subr.bf16.mxu0 0
      %1283 = vmatpush1.bf16.msra.mxu0 0
      %1284 = vmatprep.subr.bf16.mxu0 0
      %1285 = vmatpush1.bf16.msra.mxu0 0
      %1286 = vmatprep.subr.bf16.mxu0 0
      %1287 = vmatpush1.bf16.msra.mxu0 0
      %1288 = vmatprep.subr.bf16.mxu0 0
      %1289 = vmatpush1.bf16.msra.mxu0 0
      %1290 = vmatprep.subr.bf16.mxu0 0
      %1291 = vmatpush1.bf16.msra.mxu0 0
      %1292 = vmatprep.subr.bf16.mxu0 0
      %1293 = vmatpush1.bf16.msra.mxu0 0
      %1294 = vmatprep.subr.bf16.mxu0 0
      %1295 = vmatpush1.bf16.msra.mxu0 0
      %1296 = vmatprep.subr.bf16.mxu0 0
      %1297 = vmatpush1.bf16.msra.mxu0 0
      %1298 = vmatprep.subr.bf16.mxu0 0
      %1299 = vmatpush1.bf16.msra.mxu0 0
      %1300 = vmatprep.subr.bf16.mxu0 0
      %1301 = vmatpush1.bf16.msra.mxu0 0
      %1302 = vmatprep.subr.bf16.mxu0 0
      %1303 = vmatpush1.bf16.msra.mxu0 0
      %1304 = vmatprep.subr.bf16.mxu0 0
      %1305 = vmatpush1.bf16.msra.mxu0 0
      %1306 = vmatprep.mubr.bf16.mxu0 0
      %1307 = vmatmul.mubr.bf16.gmra.mrb[0].mxu0 %v1272
      %v1308 = vpop.f32.mrb[0].mxu0
      %v1309 = vadd.f32 0.0, %v1308
      %v1310 = vpop.f32.mrb[0].mxu0
      %v1311 = vpop.f32.mrb[0].mxu0
      %v1312 = vadd.f32 0.0, %v1311
      %v1313 = vpop.f32.mrb[0].mxu0
      %1314 = vdwg.mxu0
      %v1315 = vpack.c.bf16 %v1312, %v1309
      %v1316 = vld [vmem:[%s7 + $0xc] sm:$0xf]
      %v1318 = vsel %vm672, %v1315, 0
      %v1321 = vsel %vm796, %v1316, 0
      %1323 = vmatprep.subr.bf16.mxu0 0
      %1324 = vmatpush1.bf16.msra.mxu0 %v1321
      %1325 = vmatprep.subr.bf16.mxu0 0
      %1326 = vmatpush1.bf16.msra.mxu0 0
      %1327 = vmatprep.subr.bf16.mxu0 0
      %1328 = vmatpush1.bf16.msra.mxu0 0
      %1329 = vmatprep.subr.bf16.mxu0 0
      %1330 = vmatpush1.bf16.msra.mxu0 0
      %1331 = vmatprep.subr.bf16.mxu0 0
      %1332 = vmatpush1.bf16.msra.mxu0 0
      %1333 = vmatprep.subr.bf16.mxu0 0
      %1334 = vmatpush1.bf16.msra.mxu0 0
      %1335 = vmatprep.subr.bf16.mxu0 0
      %1336 = vmatpush1.bf16.msra.mxu0 0
      %1337 = vmatprep.subr.bf16.mxu0 0
      %1338 = vmatpush1.bf16.msra.mxu0 0
      %1339 = vmatprep.subr.bf16.mxu0 0
      %1340 = vmatpush1.bf16.msra.mxu0 0
      %1341 = vmatprep.subr.bf16.mxu0 0
      %1342 = vmatpush1.bf16.msra.mxu0 0
      %1343 = vmatprep.subr.bf16.mxu0 0
      %1344 = vmatpush1.bf16.msra.mxu0 0
      %1345 = vmatprep.subr.bf16.mxu0 0
      %1346 = vmatpush1.bf16.msra.mxu0 0
      %1347 = vmatprep.subr.bf16.mxu0 0
      %1348 = vmatpush1.bf16.msra.mxu0 0
      %1349 = vmatprep.subr.bf16.mxu0 0
      %1350 = vmatpush1.bf16.msra.mxu0 0
      %1351 = vmatprep.subr.bf16.mxu0 0
      %1352 = vmatpush1.bf16.msra.mxu0 0
      %1353 = vmatprep.subr.bf16.mxu0 0
      %1354 = vmatpush1.bf16.msra.mxu0 0
      %1355 = vmatprep.mubr.bf16.mxu0 0
      %1356 = vmatmul.mubr.bf16.gmra.mrb[0].mxu0 %v1318
      %v1357 = vpop.f32.mrb[0].mxu0
      %v1358 = vadd.f32 0.0, %v1357
      %v1359 = vpop.f32.mrb[0].mxu0
      %v1360 = vpop.f32.mrb[0].mxu0
      %v1361 = vadd.f32 0.0, %v1360
      %v1362 = vpop.f32.mrb[0].mxu0
      %1363 = vdwg.mxu0
      %v1364 = vadd.f32 %v1192, %v1358
      %v1365 = vadd.f32 %v1193, %v1361
      %v1366 = vadd.f32 %v1364, %v543
      %v1367 = vadd.f32 %v1365, %v544
      %v1368 = vld [vmem:[%s9] sm:$0xff]
      %v1369 = vld [vmem:[%s9 + $0x8] sm:$0xff]
      %v1370 = vld [vmem:[%s10] sm:$0xff]
      %v1371 = vld [vmem:[%s10 + $0x8] sm:$0xff]
      %v1372 = vsel %vm549, %v1366, 0.0
      %v1373 = vsel %vm549, %v1367, 0.0
      %v1374 = vadd.f32 %v1372, %v1373
      %1375 = vadd.xlane.f32.xlu0 %v1374
      %v1376 = vpop.xlane.xlu0 %1375
      %v1377 = vrot.slane %v1376, 4
      %v1378 = vadd.f32 %v1376, %v1377
      %v1379 = vrot.slane %v1378, 2
      %v1380 = vadd.f32 %v1378, %v1379
      %v1381 = vrot.slane %v1380, 1
      %v1382 = vadd.f32 %v1380, %v1381
      %s1383 = vtos %v1382
      %v1384 = vrcp.pop 512.0
      %s1385 = vtos %v1384
      %s1386 = smul.f32 %s1383, %s1385
      %v1387 = vstv %s1386
      %v1388 = vsub.f32 %v1366, %v1387
      %v1389 = vsub.f32 %v1367, %v1387
      %v1390 = vmul.f32 %v1388, %v1388
      %v1391 = vmul.f32 %v1389, %v1389
      %v1392 = vsel %vm549, %v1390, 0.0
      %v1393 = vsel %vm549, %v1391, 0.0
      %v1394 = vadd.f32 %v1392, %v1393
      %1395 = vadd.xlane.f32.xlu0 %v1394
      %v1396 = vpop.xlane.xlu0 %1395
      %v1397 = vrot.slane %v1396, 4
      %v1398 = vadd.f32 %v1396, %v1397
      %v1399 = vrot.slane %v1398, 2
      %v1400 = vadd.f32 %v1398, %v1399
      %v1401 = vrot.slane %v1400, 1
      %v1402 = vadd.f32 %v1400, %v1401
      %s1403 = vtos %v1402
      %v1404 = vrcp.pop 512.0
      %s1405 = vtos %v1404
      %s1406 = smul.f32 %s1403, %s1405
      %s1407 = sadd.f32 %s1406, 1e-05
      %v1408 = vstv %s1407
      %v1409 = vrsqrt.pop %v1408
      %s1410 = vtos %v1409
      %v1411 = vstv %s1410
      %v1412 = vmul.f32 %v1388, %v1411
      %v1413 = vmul.f32 %v1389, %v1411
      %v1414 = vmul.f32 %v1412, %v1368
      %v1415 = vmul.f32 %v1413, %v1369
      %v1416 = vadd.f32 %v1414, %v1370
      %v1417 = vadd.f32 %v1415, %v1371
      %v1418 = vpack.c.bf16 %v1417, %v1416
      %v1419 = vld [vmem:[%s11] sm:$0xf]
      %v1420 = vld [vmem:[%s11 + $0x4] sm:$0xf]
      %v1421 = vld [vmem:[%s11 + $0x8] sm:$0xf]
      %v1422 = vld [vmem:[%s11 + $0xc] sm:$0xf]
      %v1423 = vld [vmem:[%s12] sm:$0x1]
      %v1425 = vlaneseq
      %v1426 = vshrl.u32 %v1425, 7
      %v1427 = vsub.s32 0, %v1426
      %v1428 = vrot.slane %v1423, %v1427
      %v1434 = vunpack.c.l.b16 %v1419
      %v1435 = vunpack.c.l.b16 %v1420
      %v1436 = vunpack.c.l.b16 %v1421
      %v1437 = vunpack.c.l.b16 %v1422
      %v1438 = vpack.c.b16 %v1435, %v1434
      %v1439 = vpack.c.b16 %v1437, %v1436
      %v1443 = vsel %vm549, %v1418, 0
      %1445 = vmatprep.subr.bf16.mxu0 0
      %1446 = vmatpush1.bf16.msra.mxu0 %v1438
      %1447 = vmatprep.subr.bf16.mxu0 0
      %1448 = vmatpush1.bf16.msra.mxu0 %v1439
      %1449 = vmatprep.subr.bf16.mxu0 0
      %1450 = vmatpush1.bf16.msra.mxu0 0
      %1451 = vmatprep.subr.bf16.mxu0 0
      %1452 = vmatpush1.bf16.msra.mxu0 0
      %1453 = vmatprep.subr.bf16.mxu0 0
      %1454 = vmatpush1.bf16.msra.mxu0 0
      %1455 = vmatprep.subr.bf16.mxu0 0
      %1456 = vmatpush1.bf16.msra.mxu0 0
      %1457 = vmatprep.subr.bf16.mxu0 0
      %1458 = vmatpush1.bf16.msra.mxu0 0
      %1459 = vmatprep.subr.bf16.mxu0 0
      %1460 = vmatpush1.bf16.msra.mxu0 0
      %1461 = vmatprep.subr.bf16.mxu0 0
      %1462 = vmatpush1.bf16.msra.mxu0 0
      %1463 = vmatprep.subr.bf16.mxu0 0
      %1464 = vmatpush1.bf16.msra.mxu0 0
      %1465 = vmatprep.subr.bf16.mxu0 0
      %1466 = vmatpush1.bf16.msra.mxu0 0
      %1467 = vmatprep.subr.bf16.mxu0 0
      %1468 = vmatpush1.bf16.msra.mxu0 0
      %1469 = vmatprep.subr.bf16.mxu0 0
      %1470 = vmatpush1.bf16.msra.mxu0 0
      %1471 = vmatprep.subr.bf16.mxu0 0
      %1472 = vmatpush1.bf16.msra.mxu0 0
      %1473 = vmatprep.subr.bf16.mxu0 0
      %1474 = vmatpush1.bf16.msra.mxu0 0
      %1475 = vmatprep.subr.bf16.mxu0 0
      %1476 = vmatpush1.bf16.msra.mxu0 0
      %1477 = vmatprep.mubr.bf16.mxu0 0
      %1478 = vmatmul.mubr.bf16.gmra.mrb[0].mxu0 %v1443
      %v1479 = vpop.f32.mrb[0].mxu0
      %v1480 = vadd.f32 %v1428, %v1479
      %v1481 = vpop.f32.mrb[0].mxu0
      %v1482 = vpop.f32.mrb[0].mxu0
      %v1483 = vadd.f32 %v1428, %v1482
      %v1484 = vpop.f32.mrb[0].mxu0
      %1485 = vdwg.mxu0
      %v1486 = vmul.f32 %v1480, 0.5
      %v1487 = vmul.f32 %v1483, 0.5
      %v1488 = vmul.f32 %v1480, 0.044715
      %v1489 = vmul.f32 %v1483, 0.044715
      %v1490 = vmul.f32 %v1488, %v1480
      %v1491 = vmul.f32 %v1489, %v1483
      %v1492 = vmul.f32 %v1490, %v1480
      %v1493 = vmul.f32 %v1491, %v1483
      %v1494 = vadd.f32 %v1480, %v1492
      %v1495 = vadd.f32 %v1483, %v1493
      %v1496 = vmul.f32 %v1494, 0.7978846
      %v1497 = vmul.f32 %v1495, 0.7978846
      %v1498 = vtanh.pop %v1496
      %v1499 = vtanh.pop %v1497
      %v1500 = vadd.f32 %v1498, 1.0
      %v1501 = vadd.f32 %v1499, 1.0
      %v1502 = vmul.f32 %v1486, %v1500
      %v1503 = vmul.f32 %v1487, %v1501
      %v1504 = vpack.c.bf16 %v1503, %v1502
      %v1505 = vld [vmem:[%s13] sm:$0xf]
      %v1506 = vld [vmem:[%s13 + $0x4] sm:$0xf]
      %v1507 = vld [vmem:[%s13 + $0x8] sm:$0xf]
      %v1508 = vld [vmem:[%s13 + $0xc] sm:$0xf]
      %v1509 = vld [vmem:[%s14] sm:$0x1]
      %v1511 = vlaneseq
      %v1512 = vshrl.u32 %v1511, 7
      %v1513 = vsub.s32 0, %v1512
      %v1514 = vrot.slane %v1509, %v1513
      %v1520 = vunpack.c.l.b16 %v1505
      %v1521 = vunpack.c.l.b16 %v1506
      %v1522 = vunpack.c.l.b16 %v1507
      %v1523 = vunpack.c.l.b16 %v1508
      %v1524 = vpack.c.b16 %v1521, %v1520
      %v1525 = vpack.c.b16 %v1523, %v1522
      %v1529 = vsel %vm549, %v1504, 0
      %1531 = vmatprep.subr.bf16.mxu0 0
      %1532 = vmatpush1.bf16.msra.mxu0 %v1524
      %1533 = vmatprep.subr.bf16.mxu0 0
      %1534 = vmatpush1.bf16.msra.mxu0 %v1525
      %1535 = vmatprep.subr.bf16.mxu0 0
      %1536 = vmatpush1.bf16.msra.mxu0 0
      %1537 = vmatprep.subr.bf16.mxu0 0
      %1538 = vmatpush1.bf16.msra.mxu0 0
      %1539 = vmatprep.subr.bf16.mxu0 0
      %1540 = vmatpush1.bf16.msra.mxu0 0
      %1541 = vmatprep.subr.bf16.mxu0 0
      %1542 = vmatpush1.bf16.msra.mxu0 0
      %1543 = vmatprep.subr.bf16.mxu0 0
      %1544 = vmatpush1.bf16.msra.mxu0 0
      %1545 = vmatprep.subr.bf16.mxu0 0
      %1546 = vmatpush1.bf16.msra.mxu0 0
      %1547 = vmatprep.subr.bf16.mxu0 0
      %1548 = vmatpush1.bf16.msra.mxu0 0
      %1549 = vmatprep.subr.bf16.mxu0 0
      %1550 = vmatpush1.bf16.msra.mxu0 0
      %1551 = vmatprep.subr.bf16.mxu0 0
      %1552 = vmatpush1.bf16.msra.mxu0 0
      %1553 = vmatprep.subr.bf16.mxu0 0
      %1554 = vmatpush1.bf16.msra.mxu0 0
      %1555 = vmatprep.subr.bf16.mxu0 0
      %1556 = vmatpush1.bf16.msra.mxu0 0
      %1557 = vmatprep.subr.bf16.mxu0 0
      %1558 = vmatpush1.bf16.msra.mxu0 0
      %1559 = vmatprep.subr.bf16.mxu0 0
      %1560 = vmatpush1.bf16.msra.mxu0 0
      %1561 = vmatprep.subr.bf16.mxu0 0
      %1562 = vmatpush1.bf16.msra.mxu0 0
      %1563 = vmatprep.mubr.bf16.mxu0 0
      %1564 = vmatmul.mubr.bf16.gmra.mrb[0].mxu0 %v1529
      %v1565 = vpop.f32.mrb[0].mxu0
      %v1566 = vadd.f32 %v1514, %v1565
      %v1567 = vpop.f32.mrb[0].mxu0
      %v1568 = vpop.f32.mrb[0].mxu0
      %v1569 = vadd.f32 %v1514, %v1568
      %v1570 = vpop.f32.mrb[0].mxu0
      %1571 = vdwg.mxu0
      %v1572 = vadd.f32 %v1566, %v1366
      %v1573 = vadd.f32 %v1569, %v1367
      %v1574 = vld [vmem:[%s15] sm:$0xff]
      %v1575 = vld [vmem:[%s15 + $0x8] sm:$0xff]
      %v1576 = vld [vmem:[%s15 + $0x10] sm:$0xff]
      %v1577 = vld [vmem:[%s15 + $0x18] sm:$0xff]
      %v1578 = vld [vmem:[%s15 + $0x20] sm:$0xf]
      %v1580 = vsel %vm720, %v1574, 0
      %v1583 = vsel %vm720, %v1575, 0
      %v1586 = vsel %vm720, %v1576, 0
      %v1589 = vsel %vm720, %v1577, 0
      %v1592 = vsel %vm720, %v1578, 0
      %1594 = vmatprep.subr.mxu0 0.0
      %1595 = vmatpush1.msra.mxu0 %v1572
      %1596 = vmatprep.subr.mxu0 0.0
      %1597 = vmatpush1.msra.mxu0 %v1573
      %1598 = vmatprep.subr.mxu0 0.0
      %1599 = vmatpush1.msra.mxu0 0.0
      %1600 = vmatprep.subr.mxu0 0.0
      %1601 = vmatpush1.msra.mxu0 0.0
      %1602 = vmatprep.subr.mxu0 0.0
      %1603 = vmatpush1.msra.mxu0 0.0
      %1604 = vmatprep.subr.mxu0 0.0
      %1605 = vmatpush1.msra.mxu0 0.0
      %1606 = vmatprep.subr.mxu0 0.0
      %1607 = vmatpush1.msra.mxu0 0.0
      %1608 = vmatprep.subr.mxu0 0.0
      %1609 = vmatpush1.msra.mxu0 0.0
      %1610 = vmatprep.subr.mxu0 0.0
      %1611 = vmatpush1.msra.mxu0 0.0
      %1612 = vmatprep.subr.mxu0 0.0
      %1613 = vmatpush1.msra.mxu0 0.0
      %1614 = vmatprep.subr.mxu0 0.0
      %1615 = vmatpush1.msra.mxu0 0.0
      %1616 = vmatprep.subr.mxu0 0.0
      %1617 = vmatpush1.msra.mxu0 0.0
      %1618 = vmatprep.subr.mxu0 0.0
      %1619 = vmatpush1.msra.mxu0 0.0
      %1620 = vmatprep.subr.mxu0 0.0
      %1621 = vmatpush1.msra.mxu0 0.0
      %1622 = vmatprep.subr.mxu0 0.0
      %1623 = vmatpush1.msra.mxu0 0.0
      %1624 = vmatprep.subr.mxu0 0.0
      %1625 = vmatpush1.msra.mxu0 0.0
      %1626 = vmatprep.subr.mxu0 0.0
      %1627 = vmatpush1.msra.mxu0 0.0
      %1628 = vmatprep.subr.mxu0 0.0
      %1629 = vmatpush1.msra.mxu0 0.0
      %1630 = vmatprep.subr.mxu0 0.0
      %1631 = vmatpush1.msra.mxu0 0.0
      %1632 = vmatprep.subr.mxu0 0.0
      %1633 = vmatpush1.msra.mxu0 0.0
      %1634 = vmatprep.subr.mxu0 0.0
      %1635 = vmatpush1.msra.mxu0 0.0
      %1636 = vmatprep.subr.mxu0 0.0
      %1637 = vmatpush1.msra.mxu0 0.0
      %1638 = vmatprep.subr.mxu0 0.0
      %1639 = vmatpush1.msra.mxu0 0.0
      %1640 = vmatprep.subr.mxu0 0.0
      %1641 = vmatpush1.msra.mxu0 0.0
      %1642 = vmatprep.subr.mxu0 0.0
      %1643 = vmatpush1.msra.mxu0 0.0
      %1644 = vmatprep.subr.mxu0 0.0
      %1645 = vmatpush1.msra.mxu0 0.0
      %1646 = vmatprep.subr.mxu0 0.0
      %1647 = vmatpush1.msra.mxu0 0.0
      %1648 = vmatprep.subr.mxu0 0.0
      %1649 = vmatpush1.msra.mxu0 0.0
      %1650 = vmatprep.subr.mxu0 0.0
      %1651 = vmatpush1.msra.mxu0 0.0
      %1652 = vmatprep.subr.mxu0 0.0
      %1653 = vmatpush1.msra.mxu0 0.0
      %1654 = vmatprep.subr.mxu0 0.0
      %1655 = vmatpush1.msra.mxu0 0.0
      %1656 = vmatprep.subr.mxu0 0.0
      %1657 = vmatpush1.msra.mxu0 0.0
      %1658 = vmatprep.mubr.f32.mxu0 0.0
      %1659 = vmatmul.mubr.f32.gmra.mrb[0].mxu0 %v1580
      %v1660 = vpop.f32.mrb[0].mxu0
      %v1661 = vadd.f32 0.0, %v1660
      %v1662 = vpop.f32.mrb[0].mxu0
      %1663 = vmatprep.mubr.f32.mxu0 0.0
      %1664 = vmatmul.mubr.f32.gmra.mrb[0].mxu0 %v1583
      %v1665 = vpop.f32.mrb[0].mxu0
      %v1666 = vadd.f32 0.0, %v1665
      %v1667 = vpop.f32.mrb[0].mxu0
      %1668 = vmatprep.mubr.f32.mxu0 0.0
      %1669 = vmatmul.mubr.f32.gmra.mrb[0].mxu0 %v1586
      %v1670 = vpop.f32.mrb[0].mxu0
      %v1671 = vadd.f32 0.0, %v1670
      %v1672 = vpop.f32.mrb[0].mxu0
      %1673 = vmatprep.mubr.f32.mxu0 0.0
      %1674 = vmatmul.mubr.f32.gmra.mrb[0].mxu0 %v1589
      %v1675 = vpop.f32.mrb[0].mxu0
      %v1676 = vadd.f32 0.0, %v1675
      %v1677 = vpop.f32.mrb[0].mxu0
      %1678 = vmatprep.mubr.f32.mxu0 0.0
      %1679 = vmatmul.mubr.f32.gmra.mrb[0].mxu0 %v1592
      %v1680 = vpop.f32.mrb[0].mxu0
      %v1681 = vadd.f32 0.0, %v1680
      %v1682 = vpop.f32.mrb[0].mxu0
      %1683 = vdwg.mxu0
      %1684 = vst.msk [vmem:[%s521] sm:$0xff] %vm549, %v1661
      %1685 = vst.msk [vmem:[%s521 + $0x8] sm:$0xff] %vm549, %v1666
      %1686 = vst.msk [vmem:[%s521 + $0x10] sm:$0xff] %vm549, %v1671
      %1687 = vst.msk [vmem:[%s521 + $0x18] sm:$0xff] %vm549, %v1676
      %vm1688 = vcmask 257024
      %1689 = vst.msk [vmem:[%s521 + $0x20] sm:$0xf] %vm1688, %v1681
      %p1690 = scmp.lt.s32.totalorder %s27, 1
      %s1691 = scalar_select %p1690, %s27, 1
      %s1692 = smul.addr %s1691, 5
      %s1693 = smul.addr %s1692, 8
      %s1694 = scalar_lea.vmem %s16, %s1693
      // Predicated region
      $region85: #{down_selfattn_interp_up.5} parent=83 // pred_check
        %p1695 = pneg %p386
      $region86: #{down_selfattn_interp_up.5} parent=83 // pred_check_branch
        %1697 = sbr.rel (%p1695) target = $region88
      $region87: #{down_selfattn_interp_up.5} parent=83 // pred_region
        _
      $region88: #{down_selfattn_interp_up.5} parent=83 // pred_fallthru
        _
    $region84: #{down_selfattn_interp_up.5} parent=5 // pred_fallthru
      _
    %p1698 = scmp.le.s32.totalorder 2, %s22
    // Predicated region
    $region89: #{down_selfattn_interp_up.5} parent=5 // pred_check
      %p1699 = pneg %p1698
    $region90: #{down_selfattn_interp_up.5} parent=5 // pred_check_branch
      %1701 = sbr.rel (%p1699) target = $region92
    $region91: #{down_selfattn_interp_up.5} parent=5 // pred_region
      %s1702 = ssub.s32 %s22, 2
      // Predicated region
      $region93: #{down_selfattn_interp_up.5} parent=91 // pred_check
        %p1703 = pneg %p392
      $region94: #{down_selfattn_interp_up.5} parent=91 // pred_check_branch
        %1705 = sbr.rel (%p1703) target = $region96
      $region95: #{down_selfattn_interp_up.5} parent=91 // pred_region
        %p1706 = scmp.lt.s32.totalorder %s28, 1
        %s1707 = scalar_select %p1706, %s28, 1
        %s1708 = smul.addr %s1707, 5
        %s1709 = smul.addr %s1708, 8
        %s1710 = scalar_lea.vmem %s16, %s1709
      $region96: #{down_selfattn_interp_up.5} parent=91 // pred_fallthru
        _
    $region92: #{down_selfattn_interp_up.5} parent=5 // pred_fallthru
      _
  $region6: #{down_selfattn_interp_up.5} parent=0 // loop_footer
    %s26 = sadd.s32 1, %s22
  $region7: #{down_selfattn_interp_up.5} parent=0 // loop_footer_branch
    %21 = sbr.rel target = $region3
  $region8: #{down_selfattn_interp_up.5} parent=0 // loop_exit
    _

// kernel: down_selfattn_interp_up.7
$region0: #{down_selfattn_interp_up.7}
  #allocation0 [shape = 'u32[]', space=smem, size = 0x4, offset = 0x4, fixed_abs, tag = 'smem constant byte address 0x4 - core index']
  #allocation1 [shape = 'u32[144,128]{1,0:T(1,128)}', space=vmem, size = 0x12000, scoped, tag = 'internal scratch']
  %s0 = inlined_call_operand.vmem [shape: f32[72,64], index: 0, kind: input, shape index: {}]
  %s1 = inlined_call_operand.vmem [shape: f32[1,64], index: 1, kind: input, shape index: {}]
  %s2 = inlined_call_operand.vmem [shape: f32[1,64], index: 2, kind: input, shape index: {}]
  %s3 = inlined_call_operand.vmem [shape: f32[72,64], index: 3, kind: output, shape index: {}]
  %s4 = sld [smem:[#allocation0]]
  $region22: #{down_selfattn_interp_up.7} parent=0
    _
  %s6 = ssub.s32 1, %s4
  %s7 = scalar_select 0, %s6, %s4
  // Predicated region
  $region2: #{down_selfattn_interp_up.7} parent=0 // pred_check
    _
  $region3: #{down_selfattn_interp_up.7} parent=0 // pred_check_branch
    %9 = sbr.rel (0) target = $region5
  $region4: #{down_selfattn_interp_up.7} parent=0 // pred_region
    _
  $region5: #{down_selfattn_interp_up.7} parent=0 // pred_fallthru
    _
  // Predicated region
  $region6: #{down_selfattn_interp_up.7} parent=0 // pred_check
    _
  $region7: #{down_selfattn_interp_up.7} parent=0 // pred_check_branch
    %11 = sbr.rel (0) target = $region9
  $region8: #{down_selfattn_interp_up.7} parent=0 // pred_region
    _
  $region9: #{down_selfattn_interp_up.7} parent=0 // pred_fallthru
    _
  // Predicated region
  $region10: #{down_selfattn_interp_up.7} parent=0 // pred_check
    _
  $region11: #{down_selfattn_interp_up.7} parent=0 // pred_check_branch
    %13 = sbr.rel (0) target = $region13
  $region12: #{down_selfattn_interp_up.7} parent=0 // pred_region
    _
  $region13: #{down_selfattn_interp_up.7} parent=0 // pred_fallthru
    _
  %v14 = vld [vmem:[%s0] sm:$0xff]
  %v15 = vld [vmem:[%s0 + $0x8] sm:$0xff]
  %v16 = vld [vmem:[%s0 + $0x10] sm:$0xff]
  %v17 = vld [vmem:[%s0 + $0x18] sm:$0xff]
  %v18 = vld [vmem:[%s0 + $0x20] sm:$0xff]
  %v19 = vld [vmem:[%s0 + $0x28] sm:$0xff]
  %v20 = vld [vmem:[%s0 + $0x30] sm:$0xff]
  %v21 = vld [vmem:[%s0 + $0x38] sm:$0xff]
  %v22 = vld [vmem:[%s0 + $0x40] sm:$0xff]
  %v23 = vld [vmem:[%s1] sm:$0x1]
  %v25 = vlaneseq
  %v26 = vshrl.u32 %v25, 7
  %v27 = vsub.s32 0, %v26
  %v28 = vrot.slane %v23, %v27
  %v30 = vmul.f32 %v14, %v28
  %v31 = vmul.f32 %v15, %v28
  %v32 = vmul.f32 %v16, %v28
  %v33 = vmul.f32 %v17, %v28
  %v34 = vmul.f32 %v18, %v28
  %v35 = vmul.f32 %v19, %v28
  %v36 = vmul.f32 %v20, %v28
  %v37 = vmul.f32 %v21, %v28
  %v38 = vmul.f32 %v22, %v28
  %v39 = vld [vmem:[%s2] sm:$0x1]
  %v41 = vlaneseq
  %v42 = vshrl.u32 %v41, 7
  %v43 = vsub.s32 0, %v42
  %v44 = vrot.slane %v39, %v43
  %v46 = vadd.f32 %v30, %v44
  %v47 = vadd.f32 %v31, %v44
  %v48 = vadd.f32 %v32, %v44
  %v49 = vadd.f32 %v33, %v44
  %v50 = vadd.f32 %v34, %v44
  %v51 = vadd.f32 %v35, %v44
  %v52 = vadd.f32 %v36, %v44
  %v53 = vadd.f32 %v37, %v44
  %v54 = vadd.f32 %v38, %v44
  %v55 = vmax.f32 %v46, 0.0
  %v56 = vmax.f32 %v47, 0.0
  %v57 = vmax.f32 %v48, 0.0
  %v58 = vmax.f32 %v49, 0.0
  %v59 = vmax.f32 %v50, 0.0
  %v60 = vmax.f32 %v51, 0.0
  %v61 = vmax.f32 %v52, 0.0
  %v62 = vmax.f32 %v53, 0.0
  %v63 = vmax.f32 %v54, 0.0
  %vm64 = vcmask 523264
  %65 = vst.msk [vmem:[%s3] sm:$0xff] %vm64, %v55
  %66 = vst.msk [vmem:[%s3 + $0x8] sm:$0xff] %vm64, %v56
  %67 = vst.msk [vmem:[%s3 + $0x10] sm:$0xff] %vm64, %v57
  %68 = vst.msk [vmem:[%s3 + $0x18] sm:$0xff] %vm64, %v58
  %69 = vst.msk [vmem:[%s3 + $0x20] sm:$0xff] %vm64, %v59
  %70 = vst.msk [vmem:[%s3 + $0x28] sm:$0xff] %vm64, %v60
  %71 = vst.msk [vmem:[%s3 + $0x30] sm:$0xff] %vm64, %v61
  %72 = vst.msk [vmem:[%s3 + $0x38] sm:$0xff] %vm64, %v62
  %73 = vst.msk [vmem:[%s3 + $0x40] sm:$0xff] %vm64, %v63
  // Predicated region
  $region14: #{down_selfattn_interp_up.7} parent=0 // pred_check
    _
  $region15: #{down_selfattn_interp_up.7} parent=0 // pred_check_branch
    %75 = sbr.rel (0) target = $region17
  $region16: #{down_selfattn_interp_up.7} parent=0 // pred_region
    _
  $region17: #{down_selfattn_interp_up.7} parent=0 // pred_fallthru
    _
  // Predicated region
  $region18: #{down_selfattn_interp_up.7} parent=0 // pred_check
    _
  $region19: #{down_selfattn_interp_up.7} parent=0 // pred_check_branch
    %77 = sbr.rel (0) target = $region21
  $region20: #{down_selfattn_interp_up.7} parent=0 // pred_region
    _
  $region21: #{down_selfattn_interp_up.7} parent=0 // pred_fallthru
    _

</llo_original>
